<compile_context>
chip_gen: v7x
topology: tpu7x:2x2x1
jax: 0.10.0
libtpu: 0.0.40
codegen_flags: <defaults>
</compile_context>

<pallas_src>
import functools

import numpy as np
import jax
import jax.numpy as jnp
from jax.experimental import pallas as pl
from jax.experimental.pallas import tpu as pltpu


# ----------------------------------------------------------------------------
# Fixed Gaussian kernel (exactly reproduces GaussianLayer.weights_init()).
# ----------------------------------------------------------------------------
def _gaussian_5x5():
    """scipy.ndimage.gaussian_filter(n, sigma=1) with n = zeros((5,5)); n[3,3] = 1.

    scipy uses truncate=4.0 -> radius 4, separable 1-D correlation per axis with
    'reflect' boundary (== np.pad mode='symmetric').
    """
    sigma, radius = 1.0, 4
    t = np.arange(-radius, radius + 1, dtype=np.float64)
    g1 = np.exp(-0.5 * t * t / (sigma * sigma))
    g1 /= g1.sum()
    n = np.zeros((5, 5), np.float64)
    n[3, 3] = 1.0
    p = np.pad(n, radius, mode="symmetric")            # scipy 'reflect' boundary
    tmp = np.zeros((5, 5 + 2 * radius))
    for i in range(5):
        for j in range(5 + 2 * radius):
            tmp[i, j] = np.dot(g1, p[i:i + 2 * radius + 1, j])
    k = np.zeros((5, 5))
    for i in range(5):
        for j in range(5):
            k[i, j] = np.dot(g1, tmp[i, j:j + 2 * radius + 1])
    return k.astype(np.float32)


# ----------------------------------------------------------------------------
# Pallas kernel: 25-tap VPU stencil over a zero-padded VMEM tile.
# ----------------------------------------------------------------------------
def _gaussian5x5_kernel(xp_ref, o_ref, *, taps, H, W):
    # xp_ref block: (1, H+8, W+128) — input zero-padded (conv halo + alignment).
    # o_ref  block: (1, H, W)       — lane-dense (W is a multiple of 128).
    # Cross-correlation (PyTorch conv semantics), zero padding = 2.
    xp = xp_ref[0]                                     # single VMEM tile load
    acc = taps[0][0] * xp[0:H, 0:W]
    for i in range(5):
        for j in range(5):
            if i == 0 and j == 0:
                continue
            acc = acc + taps[i][j] * xp[i:i + H, j:j + W]
    o_ref[0] = acc


def _ceil_to(a, m):
    return ((a + m - 1) // m) * m


def gaussian_layer(x):
    """Forward pass of GaussianLayer: 5x5 Gaussian blur, stride 1, zero padding 2."""
    k = _gaussian_5x5()
    taps = tuple(tuple(float(k[i, j]) for j in range(5)) for i in range(5))

    N, C, H, W = x.shape
    assert C == 1, "GaussianLayer is a 1->1 channel conv"
    Hp = _ceil_to(H, 8)        # sublane-aligned output rows
    Wp = _ceil_to(W, 128)      # lane-dense output columns (unmasked stores)

    xin = x.astype(jnp.float32).reshape(N * C, H, W)
    # Zero padding: 2-px conv halo on top/left, halo + alignment on bottom/right.
    # All padding is zero, identical to the conv's padding=2, so rows/cols >= H/W in
    # the output are just blur-of-zeros and are sliced off below.
    xpad = jnp.pad(xin, ((0, 0), (2, Hp + 6 - H), (2, Wp + 126 - W)))

    out = pl.pallas_call(
        functools.partial(_gaussian5x5_kernel, taps=taps, H=Hp, W=Wp),
        out_shape=jax.ShapeDtypeStruct((N * C, Hp, Wp), jnp.float32),
        grid_spec=pltpu.PrefetchScalarGridSpec(
            num_scalar_prefetch=0,
            grid=(N * C,),
            in_specs=[pl.BlockSpec((1, Hp + 8, Wp + 128), lambda i: (i, 0, 0))],
            out_specs=pl.BlockSpec((1, Hp, Wp), lambda i: (i, 0, 0)),
        ),
        compiler_params=pltpu.CompilerParams(
            dimension_semantics=("parallel",)),
    )(xpad)

    return out[:, :H, :W].reshape(N, C, H, W)


# ----------------------------------------------------------------------------
# Pure-JAX reference (same math, no Pallas) for a correctness check.
# ----------------------------------------------------------------------------
def gaussian_layer_reference(x):
    k = jnp.asarray(_gaussian_5x5())
    N, C, H, W = x.shape
    xp = jnp.pad(x.astype(jnp.float32), ((0, 0), (0, 0), (2, 2), (2, 2)))
    out = jnp.zeros((N, C, H, W), jnp.float32)
    for i in range(5):
        for j in range(5):
            out = out + k[i, j] * xp[:, :, i:i + H, j:j + W]
    return out


# ----------------------------------------------------------------------------
if __name__ == "__main__":
    key = jax.random.PRNGKey(0)
    # Module forces 1 input channel; 128x128 spatial keeps the output lane-dense
    # while staying tiny (2 * 64 KiB).
    x = jax.random.uniform(key, (2, 1, 128, 128), jnp.float32)

    out = jax.jit(gaussian_layer)(x)
    jax.block_until_ready(out)

    ref = gaussian_layer_reference(x)
    assert out.shape == x.shape
    assert bool(jnp.all(jnp.isfinite(out)))
    assert bool(jnp.allclose(out, ref, atol=1e-5, rtol=1e-5))
    print("KERNEL_OK")
</pallas_src>

<mosaic_0001>
module attributes {stable_mosaic.version = 11 : i64} {
  func.func @_gaussian5x5_kernel(%arg0: i32, %arg1: memref<1x136x256xf32, #tpu.memory_space<vmem>>, %arg2: memref<1x128x128xf32, #tpu.memory_space<vmem>>) attributes {dimension_semantics = [#tpu.dimension_semantics<parallel>], iteration_bounds = array<i64: 2>, scalar_prefetch = 0 : i64, scratch_operands = 0 : i64, tpu.core_type = #tpu.core_type<tc>, window_params = [{transform_indices = @transform_0, window_bounds = array<i64: 1, 136, 256>}, {transform_indices = @transform_1, window_bounds = array<i64: 1, 128, 128>}]} {
    %c0 = arith.constant 0 : index
    %c0_0 = arith.constant 0 : index
    %c0_1 = arith.constant 0 : index
    %0 = vector.load %arg1[%c0, %c0_0, %c0_1] : memref<1x136x256xf32, #tpu.memory_space<vmem>>, vector<1x136x256xf32>
    %1 = vector.shape_cast %0 : vector<1x136x256xf32> to vector<136x256xf32>
    %2 = vector.extract_strided_slice %1 {offsets = [0, 0], sizes = [128, 128], strides = [1, 1]} : vector<136x256xf32> to vector<128x128xf32>
    %cst = arith.constant 2.08455458E-5 : f32
    %3 = vector.broadcast %cst : f32 to vector<128x128xf32>
    %4 = arith.mulf %3, %2 : vector<128x128xf32>
    %5 = vector.extract_strided_slice %1 {offsets = [0, 1], sizes = [128, 128], strides = [1, 1]} : vector<136x256xf32> to vector<128x128xf32>
    %cst_2 = arith.constant 2.46506883E-4 : f32
    %6 = vector.broadcast %cst_2 : f32 to vector<128x128xf32>
    %7 = arith.mulf %6, %5 : vector<128x128xf32>
    %8 = arith.addf %4, %7 : vector<128x128xf32>
    %9 = vector.extract_strided_slice %1 {offsets = [0, 2], sizes = [128, 128], strides = [1, 1]} : vector<136x256xf32> to vector<128x128xf32>
    %cst_3 = arith.constant 0.00110537815 : f32
    %10 = vector.broadcast %cst_3 : f32 to vector<128x128xf32>
    %11 = arith.mulf %10, %9 : vector<128x128xf32>
    %12 = arith.addf %8, %11 : vector<128x128xf32>
    %13 = vector.extract_strided_slice %1 {offsets = [0, 3], sizes = [128, 128], strides = [1, 1]} : vector<136x256xf32> to vector<128x128xf32>
    %cst_4 = arith.constant 0.0018416876 : f32
    %14 = vector.broadcast %cst_4 : f32 to vector<128x128xf32>
    %15 = arith.mulf %14, %13 : vector<128x128xf32>
    %16 = arith.addf %12, %15 : vector<128x128xf32>
    %17 = vector.extract_strided_slice %1 {offsets = [0, 4], sizes = [128, 128], strides = [1, 1]} : vector<136x256xf32> to vector<128x128xf32>
    %cst_5 = arith.constant 0.00135127397 : f32
    %18 = vector.broadcast %cst_5 : f32 to vector<128x128xf32>
    %19 = arith.mulf %18, %17 : vector<128x128xf32>
    %20 = arith.addf %16, %19 : vector<128x128xf32>
    %21 = vector.extract_strided_slice %1 {offsets = [1, 0], sizes = [128, 128], strides = [1, 1]} : vector<136x256xf32> to vector<128x128xf32>
    %cst_6 = arith.constant 2.46506883E-4 : f32
    %22 = vector.broadcast %cst_6 : f32 to vector<128x128xf32>
    %23 = arith.mulf %22, %21 : vector<128x128xf32>
    %24 = arith.addf %20, %23 : vector<128x128xf32>
    %25 = vector.extract_strided_slice %1 {offsets = [1, 1], sizes = [128, 128], strides = [1, 1]} : vector<136x256xf32> to vector<128x128xf32>
    %cst_7 = arith.constant 0.00291504175 : f32
    %26 = vector.broadcast %cst_7 : f32 to vector<128x128xf32>
    %27 = arith.mulf %26, %25 : vector<128x128xf32>
    %28 = arith.addf %24, %27 : vector<128x128xf32>
    %29 = vector.extract_strided_slice %1 {offsets = [1, 2], sizes = [128, 128], strides = [1, 1]} : vector<136x256xf32> to vector<128x128xf32>
    %cst_8 = arith.constant 0.013071537 : f32
    %30 = vector.broadcast %cst_8 : f32 to vector<128x128xf32>
    %31 = arith.mulf %30, %29 : vector<128x128xf32>
    %32 = arith.addf %28, %31 : vector<128x128xf32>
    %33 = vector.extract_strided_slice %1 {offsets = [1, 3], sizes = [128, 128], strides = [1, 1]} : vector<136x256xf32> to vector<128x128xf32>
    %cst_9 = arith.constant 0.0217786897 : f32
    %34 = vector.broadcast %cst_9 : f32 to vector<128x128xf32>
    %35 = arith.mulf %34, %33 : vector<128x128xf32>
    %36 = arith.addf %32, %35 : vector<128x128xf32>
    %37 = vector.extract_strided_slice %1 {offsets = [1, 4], sizes = [128, 128], strides = [1, 1]} : vector<136x256xf32> to vector<128x128xf32>
    %cst_10 = arith.constant 0.0159793533 : f32
    %38 = vector.broadcast %cst_10 : f32 to vector<128x128xf32>
    %39 = arith.mulf %38, %37 : vector<128x128xf32>
    %40 = arith.addf %36, %39 : vector<128x128xf32>
    %41 = vector.extract_strided_slice %1 {offsets = [2, 0], sizes = [128, 128], strides = [1, 1]} : vector<136x256xf32> to vector<128x128xf32>
    %cst_11 = arith.constant 0.00110537815 : f32
    %42 = vector.broadcast %cst_11 : f32 to vector<128x128xf32>
    %43 = arith.mulf %42, %41 : vector<128x128xf32>
    %44 = arith.addf %40, %43 : vector<128x128xf32>
    %45 = vector.extract_strided_slice %1 {offsets = [2, 1], sizes = [128, 128], strides = [1, 1]} : vector<136x256xf32> to vector<128x128xf32>
    %cst_12 = arith.constant 0.013071537 : f32
    %46 = vector.broadcast %cst_12 : f32 to vector<128x128xf32>
    %47 = arith.mulf %46, %45 : vector<128x128xf32>
    %48 = arith.addf %44, %47 : vector<128x128xf32>
    %49 = vector.extract_strided_slice %1 {offsets = [2, 2], sizes = [128, 128], strides = [1, 1]} : vector<136x256xf32> to vector<128x128xf32>
    %cst_13 = arith.constant 0.0586149655 : f32
    %50 = vector.broadcast %cst_13 : f32 to vector<128x128xf32>
    %51 = arith.mulf %50, %49 : vector<128x128xf32>
    %52 = arith.addf %48, %51 : vector<128x128xf32>
    %53 = vector.extract_strided_slice %1 {offsets = [2, 3], sizes = [128, 128], strides = [1, 1]} : vector<136x256xf32> to vector<128x128xf32>
    %cst_14 = arith.constant 0.0976592972 : f32
    %54 = vector.broadcast %cst_14 : f32 to vector<128x128xf32>
    %55 = arith.mulf %54, %53 : vector<128x128xf32>
    %56 = arith.addf %52, %55 : vector<128x128xf32>
    %57 = vector.extract_strided_slice %1 {offsets = [2, 4], sizes = [128, 128], strides = [1, 1]} : vector<136x256xf32> to vector<128x128xf32>
    %cst_15 = arith.constant 7.165410e-02 : f32
    %58 = vector.broadcast %cst_15 : f32 to vector<128x128xf32>
    %59 = arith.mulf %58, %57 : vector<128x128xf32>
    %60 = arith.addf %56, %59 : vector<128x128xf32>
    %61 = vector.extract_strided_slice %1 {offsets = [3, 0], sizes = [128, 128], strides = [1, 1]} : vector<136x256xf32> to vector<128x128xf32>
    %cst_16 = arith.constant 0.0018416876 : f32
    %62 = vector.broadcast %cst_16 : f32 to vector<128x128xf32>
    %63 = arith.mulf %62, %61 : vector<128x128xf32>
    %64 = arith.addf %60, %63 : vector<128x128xf32>
    %65 = vector.extract_strided_slice %1 {offsets = [3, 1], sizes = [128, 128], strides = [1, 1]} : vector<136x256xf32> to vector<128x128xf32>
    %cst_17 = arith.constant 0.0217786897 : f32
    %66 = vector.broadcast %cst_17 : f32 to vector<128x128xf32>
    %67 = arith.mulf %66, %65 : vector<128x128xf32>
    %68 = arith.addf %64, %67 : vector<128x128xf32>
    %69 = vector.extract_strided_slice %1 {offsets = [3, 2], sizes = [128, 128], strides = [1, 1]} : vector<136x256xf32> to vector<128x128xf32>
    %cst_18 = arith.constant 0.0976592972 : f32
    %70 = vector.broadcast %cst_18 : f32 to vector<128x128xf32>
    %71 = arith.mulf %70, %69 : vector<128x128xf32>
    %72 = arith.addf %68, %71 : vector<128x128xf32>
    %73 = vector.extract_strided_slice %1 {offsets = [3, 3], sizes = [128, 128], strides = [1, 1]} : vector<136x256xf32> to vector<128x128xf32>
    %cst_19 = arith.constant 0.162711665 : f32
    %74 = vector.broadcast %cst_19 : f32 to vector<128x128xf32>
    %75 = arith.mulf %74, %73 : vector<128x128xf32>
    %76 = arith.addf %72, %75 : vector<128x128xf32>
    %77 = vector.extract_strided_slice %1 {offsets = [3, 4], sizes = [128, 128], strides = [1, 1]} : vector<136x256xf32> to vector<128x128xf32>
    %cst_20 = arith.constant 1.193840e-01 : f32
    %78 = vector.broadcast %cst_20 : f32 to vector<128x128xf32>
    %79 = arith.mulf %78, %77 : vector<128x128xf32>
    %80 = arith.addf %76, %79 : vector<128x128xf32>
    %81 = vector.extract_strided_slice %1 {offsets = [4, 0], sizes = [128, 128], strides = [1, 1]} : vector<136x256xf32> to vector<128x128xf32>
    %cst_21 = arith.constant 0.00135127397 : f32
    %82 = vector.broadcast %cst_21 : f32 to vector<128x128xf32>
    %83 = arith.mulf %82, %81 : vector<128x128xf32>
    %84 = arith.addf %80, %83 : vector<128x128xf32>
    %85 = vector.extract_strided_slice %1 {offsets = [4, 1], sizes = [128, 128], strides = [1, 1]} : vector<136x256xf32> to vector<128x128xf32>
    %cst_22 = arith.constant 0.0159793533 : f32
    %86 = vector.broadcast %cst_22 : f32 to vector<128x128xf32>
    %87 = arith.mulf %86, %85 : vector<128x128xf32>
    %88 = arith.addf %84, %87 : vector<128x128xf32>
    %89 = vector.extract_strided_slice %1 {offsets = [4, 2], sizes = [128, 128], strides = [1, 1]} : vector<136x256xf32> to vector<128x128xf32>
    %cst_23 = arith.constant 7.165410e-02 : f32
    %90 = vector.broadcast %cst_23 : f32 to vector<128x128xf32>
    %91 = arith.mulf %90, %89 : vector<128x128xf32>
    %92 = arith.addf %88, %91 : vector<128x128xf32>
    %93 = vector.extract_strided_slice %1 {offsets = [4, 3], sizes = [128, 128], strides = [1, 1]} : vector<136x256xf32> to vector<128x128xf32>
    %cst_24 = arith.constant 1.193840e-01 : f32
    %94 = vector.broadcast %cst_24 : f32 to vector<128x128xf32>
    %95 = arith.mulf %94, %93 : vector<128x128xf32>
    %96 = arith.addf %92, %95 : vector<128x128xf32>
    %97 = vector.extract_strided_slice %1 {offsets = [4, 4], sizes = [128, 128], strides = [1, 1]} : vector<136x256xf32> to vector<128x128xf32>
    %cst_25 = arith.constant 0.087593846 : f32
    %98 = vector.broadcast %cst_25 : f32 to vector<128x128xf32>
    %99 = arith.mulf %98, %97 : vector<128x128xf32>
    %100 = arith.addf %96, %99 : vector<128x128xf32>
    %c0_26 = arith.constant 0 : index
    %c0_27 = arith.constant 0 : index
    %c0_28 = arith.constant 0 : index
    %101 = vector.load %arg2[%c0_26, %c0_27, %c0_28] : memref<1x128x128xf32, #tpu.memory_space<vmem>>, vector<1x128x128xf32>
    %102 = vector.shape_cast %101 : vector<1x128x128xf32> to vector<128x128xf32>
    %103 = vector.shape_cast %100 : vector<128x128xf32> to vector<1x128x128xf32>
    tpu.vector_store %arg2[%c0_26, %c0_27, %c0_28], %103 {strides = array<i32>} : memref<1x128x128xf32, #tpu.memory_space<vmem>>, vector<1x128x128xf32>,
    return
  }
  func.func @transform_0(%arg0: i32) -> (i32, i32, i32) {
    %c0_i32 = arith.constant 0 : i32
    %c0_i32_0 = arith.constant 0 : i32
    %c0_i32_1 = arith.constant 0 : i32
    return %arg0, %c0_i32, %c0_i32_0 : i32, i32, i32
  }
  func.func @transform_1(%arg0: i32) -> (i32, i32, i32) {
    %c0_i32 = arith.constant 0 : i32
    %c0_i32_0 = arith.constant 0 : i32
    %c0_i32_1 = arith.constant 0 : i32
    return %arg0, %c0_i32, %c0_i32_0 : i32, i32, i32
  }
}

</mosaic_0001>

<llo_original>
// kernel: gaussian_layer.1
$region0: #{gaussian_layer.1}
  #allocation0 [shape = 'u32[]', space=smem, size = 0x4, offset = 0x4, fixed_abs, tag = 'smem constant byte address 0x4 - core index']
  #allocation1 [shape = 'u32[144,128]{1,0:T(1,128)}', space=vmem, size = 0x12000, scoped, tag = 'internal scratch']
  %s0 = inlined_call_operand.vmem [shape: f32[2,136,256], index: 0, kind: input, shape index: {}]
  %s1 = inlined_call_operand.hbm [shape: f32[2,128,128], index: 1, kind: output, shape index: {}]
  %s2 = sld [smem:[#allocation0]]
  $region37: #{gaussian_layer.1} parent=0
    _
  %s4 = ssub.s32 1, %s2
  %s5 = scalar_select 0, %s4, %s2
  $region1: #{gaussian_layer.1} parent=0
    #allocation2 [shape = 'u8[131072]{0}', space=vmem, size = 0x20000, scoped, tag = 'output window, operand 0']
    #allocation3 [shape = 's32[2]{0}', space=sflag, size = 0x8, scoped, tag = 'scoped memory for gaussian_layer.1']
    %6 = vsyncpa [#allocation3], 0
    %s7 = scalar_lea.sflag [#allocation3], 1
    %8 = vsyncpa %s7, 0
    loop: start=0, step=1, limit=4
    $region2: #{gaussian_layer.1} parent=1 // loop_pre_header
      _
    $region3: #{gaussian_layer.1} parent=1 // loop_header
      %s10 = sphi 0, %s14
      %p11 = scmp.ge.s32.totalorder %s10, 4
      %s20 = sphi 0, %s22
      %s23 = sphi 0, %s20
      %s24 = sphi 0, %s23
      %s40 = sphi 0, %s24
      %s46 = sphi 0, %s48
      %s49 = sphi 0, %s46
      %s50 = sphi 0, %s49
      %s66 = sphi 0, %s50
    $region4: #{gaussian_layer.1} parent=1 // loop_header_branch
      %13 = sbr.rel (%p11) target = $region8
    $region5: #{gaussian_layer.1} parent=1 // loop_body
      %s15 = ssub.s32 %s10, 1
      %s16 = ssub.s32 %s10, 2
      %s17 = sadd.s32 %s10, 1
      %s18 = ssub.s32 %s10, %s17
      %p19 = scmp.eq.s32.totalorder %s18, 0
      %s21 = sadd.s32 %s20, 1
      %s22 = scalar_select %p19, %s20, %s21
      %p25 = pneg %p19
      %p26 = scmp.eq.s32.totalorder %s10, 1
      %p27 = por %p25, %p26
      %p28 = scmp.ne.s32.totalorder %s20, %s23
      %p29 = scmp.eq.s32.totalorder %s10, 0
      %p30 = por %p28, %p29
      %p31 = scmp.ne.s32.totalorder %s20, %s23
      %p32 = scmp.eq.s32.totalorder %s15, 1
      %p33 = por %p31, %p32
      %p34 = scmp.ne.s32.totalorder %s23, %s24
      %p35 = scmp.eq.s32.totalorder %s15, 0
      %p36 = por %p34, %p35
      %p37 = scmp.ne.s32.totalorder %s23, %s24
      %p38 = scmp.eq.s32.totalorder %s16, 1
      %p39 = por %p37, %p38
      %p41 = scmp.ne.s32.totalorder %s24, %s40
      %p42 = scmp.eq.s32.totalorder %s16, 0
      %p43 = por %p41, %p42
      %s44 = ssub.s32 %s10, %s17
      %p45 = scmp.eq.s32.totalorder %s44, 0
      %s47 = sadd.s32 %s46, 1
      %s48 = scalar_select %p45, %s46, %s47
      %p51 = pneg %p45
      %p52 = scmp.eq.s32.totalorder %s10, 1
      %p53 = por %p51, %p52
      %p54 = scmp.ne.s32.totalorder %s46, %s49
      %p55 = scmp.eq.s32.totalorder %s10, 0
      %p56 = por %p54, %p55
      %p57 = scmp.ne.s32.totalorder %s46, %s49
      %p58 = scmp.eq.s32.totalorder %s15, 1
      %p59 = por %p57, %p58
      %p60 = scmp.ne.s32.totalorder %s49, %s50
      %p61 = scmp.eq.s32.totalorder %s15, 0
      %p62 = por %p60, %p61
      %p63 = scmp.ne.s32.totalorder %s49, %s50
      %p64 = scmp.eq.s32.totalorder %s16, 1
      %p65 = por %p63, %p64
      %p67 = scmp.ne.s32.totalorder %s50, %s66
      %p68 = scmp.eq.s32.totalorder %s16, 0
      %p69 = por %p67, %p68
      %p70 = scmp.le.s32.totalorder 1, %s10
      %p71 = scmp.lt.s32.totalorder %s10, 3
      %p72 = pnand %p70, %p71
      %p73 = pneg %p72
      // Predicated region
      $region9: #{gaussian_layer.1} parent=5 // pred_check
        _
      $region10: #{gaussian_layer.1} parent=5 // pred_check_branch
        %75 = sbr.rel (%p72) target = $region12
      $region11: #{gaussian_layer.1} parent=5 // pred_region
        %s76 = ssub.s32 %s10, 1
      $region12: #{gaussian_layer.1} parent=5 // pred_fallthru
        _
      %p77 = scmp.lt.s32.totalorder %s10, 2
      // Predicated region
      $region13: #{gaussian_layer.1} parent=5 // pred_check
        %p78 = pneg %p77
      $region14: #{gaussian_layer.1} parent=5 // pred_check_branch
        %80 = sbr.rel (%p78) target = $region16
      $region15: #{gaussian_layer.1} parent=5 // pred_region
        // Predicated region
        $region17: #{gaussian_layer.1} parent=15 // pred_check
          %p81 = pneg %p30
        $region18: #{gaussian_layer.1} parent=15 // pred_check_branch
          %83 = sbr.rel (%p81) target = $region20
        $region19: #{gaussian_layer.1} parent=15 // pred_region
          %p84 = scmp.lt.s32.totalorder %s10, 1
          %s85 = scalar_select %p84, %s10, 1
          %s86 = smul.addr %s85, 34
          %s87 = smul.addr %s86, 8
          %s88 = scalar_lea.vmem %s0, %s87
        $region20: #{gaussian_layer.1} parent=15 // pred_fallthru
          _
      $region16: #{gaussian_layer.1} parent=5 // pred_fallthru
        _
      %p89 = scmp.le.s32.totalorder 1, %s10
      %p90 = scmp.lt.s32.totalorder %s10, 3
      %p91 = pnand %p89, %p90
      %p92 = pneg %p91
      // Predicated region
      $region21: #{gaussian_layer.1} parent=5 // pred_check
        _
      $region22: #{gaussian_layer.1} parent=5 // pred_check_branch
        %94 = sbr.rel (%p91) target = $region24
      $region23: #{gaussian_layer.1} parent=5 // pred_region
        %s95 = ssub.s32 %s10, 1
        %p96 = scmp.lt.s32.totalorder %s15, 1
        %s97 = scalar_select %p96, %s15, 1
        %s98 = smul.addr %s97, 34
        %s99 = smul.addr %s98, 8
        %s100 = scalar_lea.vmem %s0, %s99
        %p101 = pneg %p36
        %p102 = pneg %p33
        %p103 = pneg %p62
        %p104 = pneg %p59
        %s105 = sand.u32 %s49, 1
        %s106 = scalar_lea.sflag [#allocation3], %s105
        %s107 = sand.u32 %s49, 1
        %s108 = smul.addr %s107, 128
        %s109 = scalar_lea.vmem [#allocation2], %s108
        %p110 = scmp.lt.s32.totalorder %s15, 1
        %s111 = scalar_select %p110, %s15, 1
        %s112 = smul.addr %s111, 34
        %s113 = smul.addr %s112, 8
        %s114 = scalar_lea.vmem %s0, %s113
        %v115 = vld [vmem:[%s114] sm:$0xff]
        %v116 = vld [vmem:[%s114 + $0x8] sm:$0xff]
        %v117 = vld [vmem:[%s114 + $0x10] sm:$0xff]
        %v118 = vld [vmem:[%s114 + $0x18] sm:$0xff]
        %v119 = vld [vmem:[%s114 + $0x20] sm:$0xff]
        %v120 = vld [vmem:[%s114 + $0x28] sm:$0xff]
        %v121 = vld [vmem:[%s114 + $0x30] sm:$0xff]
        %v122 = vld [vmem:[%s114 + $0x38] sm:$0xff]
        %v123 = vld [vmem:[%s114 + $0x40] sm:$0xff]
        %v124 = vld [vmem:[%s114 + $0x48] sm:$0xff]
        %v125 = vld [vmem:[%s114 + $0x50] sm:$0xff]
        %v126 = vld [vmem:[%s114 + $0x58] sm:$0xff]
        %v127 = vld [vmem:[%s114 + $0x60] sm:$0xff]
        %v128 = vld [vmem:[%s114 + $0x68] sm:$0xff]
        %v129 = vld [vmem:[%s114 + $0x70] sm:$0xff]
        %v130 = vld [vmem:[%s114 + $0x78] sm:$0xff]
        %v131 = vld [vmem:[%s114 + $0x80] sm:$0xff]
        %v132 = vld [vmem:[%s114 + $0x88] sm:$0xff]
        %v133 = vld [vmem:[%s114 + $0x90] sm:$0xff]
        %v134 = vld [vmem:[%s114 + $0x98] sm:$0xff]
        %v135 = vld [vmem:[%s114 + $0xa0] sm:$0xff]
        %v136 = vld [vmem:[%s114 + $0xa8] sm:$0xff]
        %v137 = vld [vmem:[%s114 + $0xb0] sm:$0xff]
        %v138 = vld [vmem:[%s114 + $0xb8] sm:$0xff]
        %v139 = vld [vmem:[%s114 + $0xc0] sm:$0xff]
        %v140 = vld [vmem:[%s114 + $0xc8] sm:$0xff]
        %v141 = vld [vmem:[%s114 + $0xd0] sm:$0xff]
        %v142 = vld [vmem:[%s114 + $0xd8] sm:$0xff]
        %v143 = vld [vmem:[%s114 + $0xe0] sm:$0xff]
        %v144 = vld [vmem:[%s114 + $0xe8] sm:$0xff]
        %v145 = vld [vmem:[%s114 + $0xf0] sm:$0xff]
        %v146 = vld [vmem:[%s114 + $0xf8] sm:$0xff]
        %v147 = vld [vmem:[%s114 + $0x100] sm:$0xff]
        %v148 = vld [vmem:[%s114 + $0x108] sm:$0xff]
        %v149 = vmul.f32 %v115, 2.0845546e-05
        %v150 = vmul.f32 %v117, 2.0845546e-05
        %v151 = vmul.f32 %v119, 2.0845546e-05
        %v152 = vmul.f32 %v121, 2.0845546e-05
        %v153 = vmul.f32 %v123, 2.0845546e-05
        %v154 = vmul.f32 %v125, 2.0845546e-05
        %v155 = vmul.f32 %v127, 2.0845546e-05
        %v156 = vmul.f32 %v129, 2.0845546e-05
        %v157 = vmul.f32 %v131, 2.0845546e-05
        %v158 = vmul.f32 %v133, 2.0845546e-05
        %v159 = vmul.f32 %v135, 2.0845546e-05
        %v160 = vmul.f32 %v137, 2.0845546e-05
        %v161 = vmul.f32 %v139, 2.0845546e-05
        %v162 = vmul.f32 %v141, 2.0845546e-05
        %v163 = vmul.f32 %v143, 2.0845546e-05
        %v164 = vmul.f32 %v145, 2.0845546e-05
        %v165 = vmul.f32 %v115, 0.00024650688
        %v166 = vmul.f32 %v116, 0.00024650688
        %v167 = vmul.f32 %v117, 0.00024650688
        %v168 = vmul.f32 %v118, 0.00024650688
        %v169 = vmul.f32 %v119, 0.00024650688
        %v170 = vmul.f32 %v120, 0.00024650688
        %v171 = vmul.f32 %v121, 0.00024650688
        %v172 = vmul.f32 %v122, 0.00024650688
        %v173 = vmul.f32 %v123, 0.00024650688
        %v174 = vmul.f32 %v124, 0.00024650688
        %v175 = vmul.f32 %v125, 0.00024650688
        %v176 = vmul.f32 %v126, 0.00024650688
        %v177 = vmul.f32 %v127, 0.00024650688
        %v178 = vmul.f32 %v128, 0.00024650688
        %v179 = vmul.f32 %v129, 0.00024650688
        %v180 = vmul.f32 %v130, 0.00024650688
        %v181 = vmul.f32 %v131, 0.00024650688
        %v182 = vmul.f32 %v132, 0.00024650688
        %v183 = vmul.f32 %v133, 0.00024650688
        %v184 = vmul.f32 %v134, 0.00024650688
        %v185 = vmul.f32 %v135, 0.00024650688
        %v186 = vmul.f32 %v136, 0.00024650688
        %v187 = vmul.f32 %v137, 0.00024650688
        %v188 = vmul.f32 %v138, 0.00024650688
        %v189 = vmul.f32 %v139, 0.00024650688
        %v190 = vmul.f32 %v140, 0.00024650688
        %v191 = vmul.f32 %v141, 0.00024650688
        %v192 = vmul.f32 %v142, 0.00024650688
        %v193 = vmul.f32 %v143, 0.00024650688
        %v194 = vmul.f32 %v144, 0.00024650688
        %v195 = vmul.f32 %v145, 0.00024650688
        %v196 = vmul.f32 %v146, 0.00024650688
        %229 = vrot.lane.b32.xlu0 %v165, 127
        %v230 = vpop.permute.xlu0 %229
        %231 = vrot.lane.b32.xlu0 %v166, 127
        %v232 = vpop.permute.xlu0 %231
        %233 = vrot.lane.b32.xlu0 %v167, 127
        %v234 = vpop.permute.xlu0 %233
        %235 = vrot.lane.b32.xlu0 %v168, 127
        %v236 = vpop.permute.xlu0 %235
        %237 = vrot.lane.b32.xlu0 %v169, 127
        %v238 = vpop.permute.xlu0 %237
        %239 = vrot.lane.b32.xlu0 %v170, 127
        %v240 = vpop.permute.xlu0 %239
        %241 = vrot.lane.b32.xlu0 %v171, 127
        %v242 = vpop.permute.xlu0 %241
        %243 = vrot.lane.b32.xlu0 %v172, 127
        %v244 = vpop.permute.xlu0 %243
        %245 = vrot.lane.b32.xlu0 %v173, 127
        %v246 = vpop.permute.xlu0 %245
        %247 = vrot.lane.b32.xlu0 %v174, 127
        %v248 = vpop.permute.xlu0 %247
        %249 = vrot.lane.b32.xlu0 %v175, 127
        %v250 = vpop.permute.xlu0 %249
        %251 = vrot.lane.b32.xlu0 %v176, 127
        %v252 = vpop.permute.xlu0 %251
        %253 = vrot.lane.b32.xlu0 %v177, 127
        %v254 = vpop.permute.xlu0 %253
        %255 = vrot.lane.b32.xlu0 %v178, 127
        %v256 = vpop.permute.xlu0 %255
        %257 = vrot.lane.b32.xlu0 %v179, 127
        %v258 = vpop.permute.xlu0 %257
        %259 = vrot.lane.b32.xlu0 %v180, 127
        %v260 = vpop.permute.xlu0 %259
        %261 = vrot.lane.b32.xlu0 %v181, 127
        %v262 = vpop.permute.xlu0 %261
        %263 = vrot.lane.b32.xlu0 %v182, 127
        %v264 = vpop.permute.xlu0 %263
        %265 = vrot.lane.b32.xlu0 %v183, 127
        %v266 = vpop.permute.xlu0 %265
        %267 = vrot.lane.b32.xlu0 %v184, 127
        %v268 = vpop.permute.xlu0 %267
        %269 = vrot.lane.b32.xlu0 %v185, 127
        %v270 = vpop.permute.xlu0 %269
        %271 = vrot.lane.b32.xlu0 %v186, 127
        %v272 = vpop.permute.xlu0 %271
        %273 = vrot.lane.b32.xlu0 %v187, 127
        %v274 = vpop.permute.xlu0 %273
        %275 = vrot.lane.b32.xlu0 %v188, 127
        %v276 = vpop.permute.xlu0 %275
        %277 = vrot.lane.b32.xlu0 %v189, 127
        %v278 = vpop.permute.xlu0 %277
        %279 = vrot.lane.b32.xlu0 %v190, 127
        %v280 = vpop.permute.xlu0 %279
        %281 = vrot.lane.b32.xlu0 %v191, 127
        %v282 = vpop.permute.xlu0 %281
        %283 = vrot.lane.b32.xlu0 %v192, 127
        %v284 = vpop.permute.xlu0 %283
        %285 = vrot.lane.b32.xlu0 %v193, 127
        %v286 = vpop.permute.xlu0 %285
        %287 = vrot.lane.b32.xlu0 %v194, 127
        %v288 = vpop.permute.xlu0 %287
        %289 = vrot.lane.b32.xlu0 %v195, 127
        %v290 = vpop.permute.xlu0 %289
        %291 = vrot.lane.b32.xlu0 %v196, 127
        %v292 = vpop.permute.xlu0 %291
        %vm293 = vcmask 1039360
        %v294 = vsel %vm293, %v230, %v232
        %v295 = vsel %vm293, %v234, %v236
        %v296 = vsel %vm293, %v238, %v240
        %v297 = vsel %vm293, %v242, %v244
        %v298 = vsel %vm293, %v246, %v248
        %v299 = vsel %vm293, %v250, %v252
        %v300 = vsel %vm293, %v254, %v256
        %v301 = vsel %vm293, %v258, %v260
        %v302 = vsel %vm293, %v262, %v264
        %v303 = vsel %vm293, %v266, %v268
        %v304 = vsel %vm293, %v270, %v272
        %v305 = vsel %vm293, %v274, %v276
        %v306 = vsel %vm293, %v278, %v280
        %v307 = vsel %vm293, %v282, %v284
        %v308 = vsel %vm293, %v286, %v288
        %v309 = vsel %vm293, %v290, %v292
        %v326 = vadd.f32 %v149, %v294
        %v327 = vadd.f32 %v150, %v295
        %v328 = vadd.f32 %v151, %v296
        %v329 = vadd.f32 %v152, %v297
        %v330 = vadd.f32 %v153, %v298
        %v331 = vadd.f32 %v154, %v299
        %v332 = vadd.f32 %v155, %v300
        %v333 = vadd.f32 %v156, %v301
        %v334 = vadd.f32 %v157, %v302
        %v335 = vadd.f32 %v158, %v303
        %v336 = vadd.f32 %v159, %v304
        %v337 = vadd.f32 %v160, %v305
        %v338 = vadd.f32 %v161, %v306
        %v339 = vadd.f32 %v162, %v307
        %v340 = vadd.f32 %v163, %v308
        %v341 = vadd.f32 %v164, %v309
        %v342 = vmul.f32 %v115, 0.0011053781
        %v343 = vmul.f32 %v116, 0.0011053781
        %v344 = vmul.f32 %v117, 0.0011053781
        %v345 = vmul.f32 %v118, 0.0011053781
        %v346 = vmul.f32 %v119, 0.0011053781
        %v347 = vmul.f32 %v120, 0.0011053781
        %v348 = vmul.f32 %v121, 0.0011053781
        %v349 = vmul.f32 %v122, 0.0011053781
        %v350 = vmul.f32 %v123, 0.0011053781
        %v351 = vmul.f32 %v124, 0.0011053781
        %v352 = vmul.f32 %v125, 0.0011053781
        %v353 = vmul.f32 %v126, 0.0011053781
        %v354 = vmul.f32 %v127, 0.0011053781
        %v355 = vmul.f32 %v128, 0.0011053781
        %v356 = vmul.f32 %v129, 0.0011053781
        %v357 = vmul.f32 %v130, 0.0011053781
        %v358 = vmul.f32 %v131, 0.0011053781
        %v359 = vmul.f32 %v132, 0.0011053781
        %v360 = vmul.f32 %v133, 0.0011053781
        %v361 = vmul.f32 %v134, 0.0011053781
        %v362 = vmul.f32 %v135, 0.0011053781
        %v363 = vmul.f32 %v136, 0.0011053781
        %v364 = vmul.f32 %v137, 0.0011053781
        %v365 = vmul.f32 %v138, 0.0011053781
        %v366 = vmul.f32 %v139, 0.0011053781
        %v367 = vmul.f32 %v140, 0.0011053781
        %v368 = vmul.f32 %v141, 0.0011053781
        %v369 = vmul.f32 %v142, 0.0011053781
        %v370 = vmul.f32 %v143, 0.0011053781
        %v371 = vmul.f32 %v144, 0.0011053781
        %v372 = vmul.f32 %v145, 0.0011053781
        %v373 = vmul.f32 %v146, 0.0011053781
        %406 = vrot.lane.b32.xlu0 %v342, 126
        %v407 = vpop.permute.xlu0 %406
        %408 = vrot.lane.b32.xlu0 %v343, 126
        %v409 = vpop.permute.xlu0 %408
        %410 = vrot.lane.b32.xlu0 %v344, 126
        %v411 = vpop.permute.xlu0 %410
        %412 = vrot.lane.b32.xlu0 %v345, 126
        %v413 = vpop.permute.xlu0 %412
        %414 = vrot.lane.b32.xlu0 %v346, 126
        %v415 = vpop.permute.xlu0 %414
        %416 = vrot.lane.b32.xlu0 %v347, 126
        %v417 = vpop.permute.xlu0 %416
        %418 = vrot.lane.b32.xlu0 %v348, 126
        %v419 = vpop.permute.xlu0 %418
        %420 = vrot.lane.b32.xlu0 %v349, 126
        %v421 = vpop.permute.xlu0 %420
        %422 = vrot.lane.b32.xlu0 %v350, 126
        %v423 = vpop.permute.xlu0 %422
        %424 = vrot.lane.b32.xlu0 %v351, 126
        %v425 = vpop.permute.xlu0 %424
        %426 = vrot.lane.b32.xlu0 %v352, 126
        %v427 = vpop.permute.xlu0 %426
        %428 = vrot.lane.b32.xlu0 %v353, 126
        %v429 = vpop.permute.xlu0 %428
        %430 = vrot.lane.b32.xlu0 %v354, 126
        %v431 = vpop.permute.xlu0 %430
        %432 = vrot.lane.b32.xlu0 %v355, 126
        %v433 = vpop.permute.xlu0 %432
        %434 = vrot.lane.b32.xlu0 %v356, 126
        %v435 = vpop.permute.xlu0 %434
        %436 = vrot.lane.b32.xlu0 %v357, 126
        %v437 = vpop.permute.xlu0 %436
        %438 = vrot.lane.b32.xlu0 %v358, 126
        %v439 = vpop.permute.xlu0 %438
        %440 = vrot.lane.b32.xlu0 %v359, 126
        %v441 = vpop.permute.xlu0 %440
        %442 = vrot.lane.b32.xlu0 %v360, 126
        %v443 = vpop.permute.xlu0 %442
        %444 = vrot.lane.b32.xlu0 %v361, 126
        %v445 = vpop.permute.xlu0 %444
        %446 = vrot.lane.b32.xlu0 %v362, 126
        %v447 = vpop.permute.xlu0 %446
        %448 = vrot.lane.b32.xlu0 %v363, 126
        %v449 = vpop.permute.xlu0 %448
        %450 = vrot.lane.b32.xlu0 %v364, 126
        %v451 = vpop.permute.xlu0 %450
        %452 = vrot.lane.b32.xlu0 %v365, 126
        %v453 = vpop.permute.xlu0 %452
        %454 = vrot.lane.b32.xlu0 %v366, 126
        %v455 = vpop.permute.xlu0 %454
        %456 = vrot.lane.b32.xlu0 %v367, 126
        %v457 = vpop.permute.xlu0 %456
        %458 = vrot.lane.b32.xlu0 %v368, 126
        %v459 = vpop.permute.xlu0 %458
        %460 = vrot.lane.b32.xlu0 %v369, 126
        %v461 = vpop.permute.xlu0 %460
        %462 = vrot.lane.b32.xlu0 %v370, 126
        %v463 = vpop.permute.xlu0 %462
        %464 = vrot.lane.b32.xlu0 %v371, 126
        %v465 = vpop.permute.xlu0 %464
        %466 = vrot.lane.b32.xlu0 %v372, 126
        %v467 = vpop.permute.xlu0 %466
        %468 = vrot.lane.b32.xlu0 %v373, 126
        %v469 = vpop.permute.xlu0 %468
        %vm470 = vcmask 1031168
        %v471 = vsel %vm470, %v407, %v409
        %v472 = vsel %vm470, %v411, %v413
        %v473 = vsel %vm470, %v415, %v417
        %v474 = vsel %vm470, %v419, %v421
        %v475 = vsel %vm470, %v423, %v425
        %v476 = vsel %vm470, %v427, %v429
        %v477 = vsel %vm470, %v431, %v433
        %v478 = vsel %vm470, %v435, %v437
        %v479 = vsel %vm470, %v439, %v441
        %v480 = vsel %vm470, %v443, %v445
        %v481 = vsel %vm470, %v447, %v449
        %v482 = vsel %vm470, %v451, %v453
        %v483 = vsel %vm470, %v455, %v457
        %v484 = vsel %vm470, %v459, %v461
        %v485 = vsel %vm470, %v463, %v465
        %v486 = vsel %vm470, %v467, %v469
        %v503 = vadd.f32 %v326, %v471
        %v504 = vadd.f32 %v327, %v472
        %v505 = vadd.f32 %v328, %v473
        %v506 = vadd.f32 %v329, %v474
        %v507 = vadd.f32 %v330, %v475
        %v508 = vadd.f32 %v331, %v476
        %v509 = vadd.f32 %v332, %v477
        %v510 = vadd.f32 %v333, %v478
        %v511 = vadd.f32 %v334, %v479
        %v512 = vadd.f32 %v335, %v480
        %v513 = vadd.f32 %v336, %v481
        %v514 = vadd.f32 %v337, %v482
        %v515 = vadd.f32 %v338, %v483
        %v516 = vadd.f32 %v339, %v484
        %v517 = vadd.f32 %v340, %v485
        %v518 = vadd.f32 %v341, %v486
        %v519 = vmul.f32 %v115, 0.0018416876
        %v520 = vmul.f32 %v116, 0.0018416876
        %v521 = vmul.f32 %v117, 0.0018416876
        %v522 = vmul.f32 %v118, 0.0018416876
        %v523 = vmul.f32 %v119, 0.0018416876
        %v524 = vmul.f32 %v120, 0.0018416876
        %v525 = vmul.f32 %v121, 0.0018416876
        %v526 = vmul.f32 %v122, 0.0018416876
        %v527 = vmul.f32 %v123, 0.0018416876
        %v528 = vmul.f32 %v124, 0.0018416876
        %v529 = vmul.f32 %v125, 0.0018416876
        %v530 = vmul.f32 %v126, 0.0018416876
        %v531 = vmul.f32 %v127, 0.0018416876
        %v532 = vmul.f32 %v128, 0.0018416876
        %v533 = vmul.f32 %v129, 0.0018416876
        %v534 = vmul.f32 %v130, 0.0018416876
        %v535 = vmul.f32 %v131, 0.0018416876
        %v536 = vmul.f32 %v132, 0.0018416876
        %v537 = vmul.f32 %v133, 0.0018416876
        %v538 = vmul.f32 %v134, 0.0018416876
        %v539 = vmul.f32 %v135, 0.0018416876
        %v540 = vmul.f32 %v136, 0.0018416876
        %v541 = vmul.f32 %v137, 0.0018416876
        %v542 = vmul.f32 %v138, 0.0018416876
        %v543 = vmul.f32 %v139, 0.0018416876
        %v544 = vmul.f32 %v140, 0.0018416876
        %v545 = vmul.f32 %v141, 0.0018416876
        %v546 = vmul.f32 %v142, 0.0018416876
        %v547 = vmul.f32 %v143, 0.0018416876
        %v548 = vmul.f32 %v144, 0.0018416876
        %v549 = vmul.f32 %v145, 0.0018416876
        %v550 = vmul.f32 %v146, 0.0018416876
        %583 = vrot.lane.b32.xlu0 %v519, 125
        %v584 = vpop.permute.xlu0 %583
        %585 = vrot.lane.b32.xlu0 %v520, 125
        %v586 = vpop.permute.xlu0 %585
        %587 = vrot.lane.b32.xlu0 %v521, 125
        %v588 = vpop.permute.xlu0 %587
        %589 = vrot.lane.b32.xlu0 %v522, 125
        %v590 = vpop.permute.xlu0 %589
        %591 = vrot.lane.b32.xlu0 %v523, 125
        %v592 = vpop.permute.xlu0 %591
        %593 = vrot.lane.b32.xlu0 %v524, 125
        %v594 = vpop.permute.xlu0 %593
        %595 = vrot.lane.b32.xlu0 %v525, 125
        %v596 = vpop.permute.xlu0 %595
        %597 = vrot.lane.b32.xlu0 %v526, 125
        %v598 = vpop.permute.xlu0 %597
        %599 = vrot.lane.b32.xlu0 %v527, 125
        %v600 = vpop.permute.xlu0 %599
        %601 = vrot.lane.b32.xlu0 %v528, 125
        %v602 = vpop.permute.xlu0 %601
        %603 = vrot.lane.b32.xlu0 %v529, 125
        %v604 = vpop.permute.xlu0 %603
        %605 = vrot.lane.b32.xlu0 %v530, 125
        %v606 = vpop.permute.xlu0 %605
        %607 = vrot.lane.b32.xlu0 %v531, 125
        %v608 = vpop.permute.xlu0 %607
        %609 = vrot.lane.b32.xlu0 %v532, 125
        %v610 = vpop.permute.xlu0 %609
        %611 = vrot.lane.b32.xlu0 %v533, 125
        %v612 = vpop.permute.xlu0 %611
        %613 = vrot.lane.b32.xlu0 %v534, 125
        %v614 = vpop.permute.xlu0 %613
        %615 = vrot.lane.b32.xlu0 %v535, 125
        %v616 = vpop.permute.xlu0 %615
        %617 = vrot.lane.b32.xlu0 %v536, 125
        %v618 = vpop.permute.xlu0 %617
        %619 = vrot.lane.b32.xlu0 %v537, 125
        %v620 = vpop.permute.xlu0 %619
        %621 = vrot.lane.b32.xlu0 %v538, 125
        %v622 = vpop.permute.xlu0 %621
        %623 = vrot.lane.b32.xlu0 %v539, 125
        %v624 = vpop.permute.xlu0 %623
        %625 = vrot.lane.b32.xlu0 %v540, 125
        %v626 = vpop.permute.xlu0 %625
        %627 = vrot.lane.b32.xlu0 %v541, 125
        %v628 = vpop.permute.xlu0 %627
        %629 = vrot.lane.b32.xlu0 %v542, 125
        %v630 = vpop.permute.xlu0 %629
        %631 = vrot.lane.b32.xlu0 %v543, 125
        %v632 = vpop.permute.xlu0 %631
        %633 = vrot.lane.b32.xlu0 %v544, 125
        %v634 = vpop.permute.xlu0 %633
        %635 = vrot.lane.b32.xlu0 %v545, 125
        %v636 = vpop.permute.xlu0 %635
        %637 = vrot.lane.b32.xlu0 %v546, 125
        %v638 = vpop.permute.xlu0 %637
        %639 = vrot.lane.b32.xlu0 %v547, 125
        %v640 = vpop.permute.xlu0 %639
        %641 = vrot.lane.b32.xlu0 %v548, 125
        %v642 = vpop.permute.xlu0 %641
        %643 = vrot.lane.b32.xlu0 %v549, 125
        %v644 = vpop.permute.xlu0 %643
        %645 = vrot.lane.b32.xlu0 %v550, 125
        %v646 = vpop.permute.xlu0 %645
        %vm647 = vcmask 1022976
        %v648 = vsel %vm647, %v584, %v586
        %v649 = vsel %vm647, %v588, %v590
        %v650 = vsel %vm647, %v592, %v594
        %v651 = vsel %vm647, %v596, %v598
        %v652 = vsel %vm647, %v600, %v602
        %v653 = vsel %vm647, %v604, %v606
        %v654 = vsel %vm647, %v608, %v610
        %v655 = vsel %vm647, %v612, %v614
        %v656 = vsel %vm647, %v616, %v618
        %v657 = vsel %vm647, %v620, %v622
        %v658 = vsel %vm647, %v624, %v626
        %v659 = vsel %vm647, %v628, %v630
        %v660 = vsel %vm647, %v632, %v634
        %v661 = vsel %vm647, %v636, %v638
        %v662 = vsel %vm647, %v640, %v642
        %v663 = vsel %vm647, %v644, %v646
        %v680 = vadd.f32 %v503, %v648
        %v681 = vadd.f32 %v504, %v649
        %v682 = vadd.f32 %v505, %v650
        %v683 = vadd.f32 %v506, %v651
        %v684 = vadd.f32 %v507, %v652
        %v685 = vadd.f32 %v508, %v653
        %v686 = vadd.f32 %v509, %v654
        %v687 = vadd.f32 %v510, %v655
        %v688 = vadd.f32 %v511, %v656
        %v689 = vadd.f32 %v512, %v657
        %v690 = vadd.f32 %v513, %v658
        %v691 = vadd.f32 %v514, %v659
        %v692 = vadd.f32 %v515, %v660
        %v693 = vadd.f32 %v516, %v661
        %v694 = vadd.f32 %v517, %v662
        %v695 = vadd.f32 %v518, %v663
        %v696 = vmul.f32 %v115, 0.001351274
        %v697 = vmul.f32 %v116, 0.001351274
        %v698 = vmul.f32 %v117, 0.001351274
        %v699 = vmul.f32 %v118, 0.001351274
        %v700 = vmul.f32 %v119, 0.001351274
        %v701 = vmul.f32 %v120, 0.001351274
        %v702 = vmul.f32 %v121, 0.001351274
        %v703 = vmul.f32 %v122, 0.001351274
        %v704 = vmul.f32 %v123, 0.001351274
        %v705 = vmul.f32 %v124, 0.001351274
        %v706 = vmul.f32 %v125, 0.001351274
        %v707 = vmul.f32 %v126, 0.001351274
        %v708 = vmul.f32 %v127, 0.001351274
        %v709 = vmul.f32 %v128, 0.001351274
        %v710 = vmul.f32 %v129, 0.001351274
        %v711 = vmul.f32 %v130, 0.001351274
        %v712 = vmul.f32 %v131, 0.001351274
        %v713 = vmul.f32 %v132, 0.001351274
        %v714 = vmul.f32 %v133, 0.001351274
        %v715 = vmul.f32 %v134, 0.001351274
        %v716 = vmul.f32 %v135, 0.001351274
        %v717 = vmul.f32 %v136, 0.001351274
        %v718 = vmul.f32 %v137, 0.001351274
        %v719 = vmul.f32 %v138, 0.001351274
        %v720 = vmul.f32 %v139, 0.001351274
        %v721 = vmul.f32 %v140, 0.001351274
        %v722 = vmul.f32 %v141, 0.001351274
        %v723 = vmul.f32 %v142, 0.001351274
        %v724 = vmul.f32 %v143, 0.001351274
        %v725 = vmul.f32 %v144, 0.001351274
        %v726 = vmul.f32 %v145, 0.001351274
        %v727 = vmul.f32 %v146, 0.001351274
        %760 = vrot.lane.b32.xlu0 %v696, 124
        %v761 = vpop.permute.xlu0 %760
        %762 = vrot.lane.b32.xlu0 %v697, 124
        %v763 = vpop.permute.xlu0 %762
        %764 = vrot.lane.b32.xlu0 %v698, 124
        %v765 = vpop.permute.xlu0 %764
        %766 = vrot.lane.b32.xlu0 %v699, 124
        %v767 = vpop.permute.xlu0 %766
        %768 = vrot.lane.b32.xlu0 %v700, 124
        %v769 = vpop.permute.xlu0 %768
        %770 = vrot.lane.b32.xlu0 %v701, 124
        %v771 = vpop.permute.xlu0 %770
        %772 = vrot.lane.b32.xlu0 %v702, 124
        %v773 = vpop.permute.xlu0 %772
        %774 = vrot.lane.b32.xlu0 %v703, 124
        %v775 = vpop.permute.xlu0 %774
        %776 = vrot.lane.b32.xlu0 %v704, 124
        %v777 = vpop.permute.xlu0 %776
        %778 = vrot.lane.b32.xlu0 %v705, 124
        %v779 = vpop.permute.xlu0 %778
        %780 = vrot.lane.b32.xlu0 %v706, 124
        %v781 = vpop.permute.xlu0 %780
        %782 = vrot.lane.b32.xlu0 %v707, 124
        %v783 = vpop.permute.xlu0 %782
        %784 = vrot.lane.b32.xlu0 %v708, 124
        %v785 = vpop.permute.xlu0 %784
        %786 = vrot.lane.b32.xlu0 %v709, 124
        %v787 = vpop.permute.xlu0 %786
        %788 = vrot.lane.b32.xlu0 %v710, 124
        %v789 = vpop.permute.xlu0 %788
        %790 = vrot.lane.b32.xlu0 %v711, 124
        %v791 = vpop.permute.xlu0 %790
        %792 = vrot.lane.b32.xlu0 %v712, 124
        %v793 = vpop.permute.xlu0 %792
        %794 = vrot.lane.b32.xlu0 %v713, 124
        %v795 = vpop.permute.xlu0 %794
        %796 = vrot.lane.b32.xlu0 %v714, 124
        %v797 = vpop.permute.xlu0 %796
        %798 = vrot.lane.b32.xlu0 %v715, 124
        %v799 = vpop.permute.xlu0 %798
        %800 = vrot.lane.b32.xlu0 %v716, 124
        %v801 = vpop.permute.xlu0 %800
        %802 = vrot.lane.b32.xlu0 %v717, 124
        %v803 = vpop.permute.xlu0 %802
        %804 = vrot.lane.b32.xlu0 %v718, 124
        %v805 = vpop.permute.xlu0 %804
        %806 = vrot.lane.b32.xlu0 %v719, 124
        %v807 = vpop.permute.xlu0 %806
        %808 = vrot.lane.b32.xlu0 %v720, 124
        %v809 = vpop.permute.xlu0 %808
        %810 = vrot.lane.b32.xlu0 %v721, 124
        %v811 = vpop.permute.xlu0 %810
        %812 = vrot.lane.b32.xlu0 %v722, 124
        %v813 = vpop.permute.xlu0 %812
        %814 = vrot.lane.b32.xlu0 %v723, 124
        %v815 = vpop.permute.xlu0 %814
        %816 = vrot.lane.b32.xlu0 %v724, 124
        %v817 = vpop.permute.xlu0 %816
        %818 = vrot.lane.b32.xlu0 %v725, 124
        %v819 = vpop.permute.xlu0 %818
        %820 = vrot.lane.b32.xlu0 %v726, 124
        %v821 = vpop.permute.xlu0 %820
        %822 = vrot.lane.b32.xlu0 %v727, 124
        %v823 = vpop.permute.xlu0 %822
        %vm824 = vcmask 1014784
        %v825 = vsel %vm824, %v761, %v763
        %v826 = vsel %vm824, %v765, %v767
        %v827 = vsel %vm824, %v769, %v771
        %v828 = vsel %vm824, %v773, %v775
        %v829 = vsel %vm824, %v777, %v779
        %v830 = vsel %vm824, %v781, %v783
        %v831 = vsel %vm824, %v785, %v787
        %v832 = vsel %vm824, %v789, %v791
        %v833 = vsel %vm824, %v793, %v795
        %v834 = vsel %vm824, %v797, %v799
        %v835 = vsel %vm824, %v801, %v803
        %v836 = vsel %vm824, %v805, %v807
        %v837 = vsel %vm824, %v809, %v811
        %v838 = vsel %vm824, %v813, %v815
        %v839 = vsel %vm824, %v817, %v819
        %v840 = vsel %vm824, %v821, %v823
        %v857 = vadd.f32 %v680, %v825
        %v858 = vadd.f32 %v681, %v826
        %v859 = vadd.f32 %v682, %v827
        %v860 = vadd.f32 %v683, %v828
        %v861 = vadd.f32 %v684, %v829
        %v862 = vadd.f32 %v685, %v830
        %v863 = vadd.f32 %v686, %v831
        %v864 = vadd.f32 %v687, %v832
        %v865 = vadd.f32 %v688, %v833
        %v866 = vadd.f32 %v689, %v834
        %v867 = vadd.f32 %v690, %v835
        %v868 = vadd.f32 %v691, %v836
        %v869 = vadd.f32 %v692, %v837
        %v870 = vadd.f32 %v693, %v838
        %v871 = vadd.f32 %v694, %v839
        %v872 = vadd.f32 %v695, %v840
        %v873 = vmul.f32 %v147, 0.00024650688
        %vm875 = vcmask 1046528
        %v876 = vrot.slane %v165, 1
        %v877 = vrot.slane %v167, 1
        %v878 = vsel %vm875, %v876, %v877
        %v879 = vrot.slane %v169, 1
        %v880 = vsel %vm875, %v877, %v879
        %v881 = vrot.slane %v171, 1
        %v882 = vsel %vm875, %v879, %v881
        %v883 = vrot.slane %v173, 1
        %v884 = vsel %vm875, %v881, %v883
        %v885 = vrot.slane %v175, 1
        %v886 = vsel %vm875, %v883, %v885
        %v887 = vrot.slane %v177, 1
        %v888 = vsel %vm875, %v885, %v887
        %v889 = vrot.slane %v179, 1
        %v890 = vsel %vm875, %v887, %v889
        %v891 = vrot.slane %v181, 1
        %v892 = vsel %vm875, %v889, %v891
        %v893 = vrot.slane %v183, 1
        %v894 = vsel %vm875, %v891, %v893
        %v895 = vrot.slane %v185, 1
        %v896 = vsel %vm875, %v893, %v895
        %v897 = vrot.slane %v187, 1
        %v898 = vsel %vm875, %v895, %v897
        %v899 = vrot.slane %v189, 1
        %v900 = vsel %vm875, %v897, %v899
        %v901 = vrot.slane %v191, 1
        %v902 = vsel %vm875, %v899, %v901
        %v903 = vrot.slane %v193, 1
        %v904 = vsel %vm875, %v901, %v903
        %v905 = vrot.slane %v195, 1
        %v906 = vsel %vm875, %v903, %v905
        %v907 = vrot.slane %v873, 1
        %v908 = vsel %vm875, %v905, %v907
        %v925 = vadd.f32 %v857, %v878
        %v926 = vadd.f32 %v858, %v880
        %v927 = vadd.f32 %v859, %v882
        %v928 = vadd.f32 %v860, %v884
        %v929 = vadd.f32 %v861, %v886
        %v930 = vadd.f32 %v862, %v888
        %v931 = vadd.f32 %v863, %v890
        %v932 = vadd.f32 %v864, %v892
        %v933 = vadd.f32 %v865, %v894
        %v934 = vadd.f32 %v866, %v896
        %v935 = vadd.f32 %v867, %v898
        %v936 = vadd.f32 %v868, %v900
        %v937 = vadd.f32 %v869, %v902
        %v938 = vadd.f32 %v870, %v904
        %v939 = vadd.f32 %v871, %v906
        %v940 = vadd.f32 %v872, %v908
        %v941 = vmul.f32 %v115, 0.0029150418
        %v942 = vmul.f32 %v116, 0.0029150418
        %v943 = vmul.f32 %v117, 0.0029150418
        %v944 = vmul.f32 %v118, 0.0029150418
        %v945 = vmul.f32 %v119, 0.0029150418
        %v946 = vmul.f32 %v120, 0.0029150418
        %v947 = vmul.f32 %v121, 0.0029150418
        %v948 = vmul.f32 %v122, 0.0029150418
        %v949 = vmul.f32 %v123, 0.0029150418
        %v950 = vmul.f32 %v124, 0.0029150418
        %v951 = vmul.f32 %v125, 0.0029150418
        %v952 = vmul.f32 %v126, 0.0029150418
        %v953 = vmul.f32 %v127, 0.0029150418
        %v954 = vmul.f32 %v128, 0.0029150418
        %v955 = vmul.f32 %v129, 0.0029150418
        %v956 = vmul.f32 %v130, 0.0029150418
        %v957 = vmul.f32 %v131, 0.0029150418
        %v958 = vmul.f32 %v132, 0.0029150418
        %v959 = vmul.f32 %v133, 0.0029150418
        %v960 = vmul.f32 %v134, 0.0029150418
        %v961 = vmul.f32 %v135, 0.0029150418
        %v962 = vmul.f32 %v136, 0.0029150418
        %v963 = vmul.f32 %v137, 0.0029150418
        %v964 = vmul.f32 %v138, 0.0029150418
        %v965 = vmul.f32 %v139, 0.0029150418
        %v966 = vmul.f32 %v140, 0.0029150418
        %v967 = vmul.f32 %v141, 0.0029150418
        %v968 = vmul.f32 %v142, 0.0029150418
        %v969 = vmul.f32 %v143, 0.0029150418
        %v970 = vmul.f32 %v144, 0.0029150418
        %v971 = vmul.f32 %v145, 0.0029150418
        %v972 = vmul.f32 %v146, 0.0029150418
        %v973 = vmul.f32 %v147, 0.0029150418
        %v974 = vmul.f32 %v148, 0.0029150418
        %v1009 = vrot.slane %v941, 1
        %v1010 = vrot.slane %v943, 1
        %v1011 = vsel %vm875, %v1009, %v1010
        %v1012 = vrot.slane %v942, 1
        %v1013 = vrot.slane %v944, 1
        %v1014 = vsel %vm875, %v1012, %v1013
        %v1015 = vrot.slane %v945, 1
        %v1016 = vsel %vm875, %v1010, %v1015
        %v1017 = vrot.slane %v946, 1
        %v1018 = vsel %vm875, %v1013, %v1017
        %v1019 = vrot.slane %v947, 1
        %v1020 = vsel %vm875, %v1015, %v1019
        %v1021 = vrot.slane %v948, 1
        %v1022 = vsel %vm875, %v1017, %v1021
        %v1023 = vrot.slane %v949, 1
        %v1024 = vsel %vm875, %v1019, %v1023
        %v1025 = vrot.slane %v950, 1
        %v1026 = vsel %vm875, %v1021, %v1025
        %v1027 = vrot.slane %v951, 1
        %v1028 = vsel %vm875, %v1023, %v1027
        %v1029 = vrot.slane %v952, 1
        %v1030 = vsel %vm875, %v1025, %v1029
        %v1031 = vrot.slane %v953, 1
        %v1032 = vsel %vm875, %v1027, %v1031
        %v1033 = vrot.slane %v954, 1
        %v1034 = vsel %vm875, %v1029, %v1033
        %v1035 = vrot.slane %v955, 1
        %v1036 = vsel %vm875, %v1031, %v1035
        %v1037 = vrot.slane %v956, 1
        %v1038 = vsel %vm875, %v1033, %v1037
        %v1039 = vrot.slane %v957, 1
        %v1040 = vsel %vm875, %v1035, %v1039
        %v1041 = vrot.slane %v958, 1
        %v1042 = vsel %vm875, %v1037, %v1041
        %v1043 = vrot.slane %v959, 1
        %v1044 = vsel %vm875, %v1039, %v1043
        %v1045 = vrot.slane %v960, 1
        %v1046 = vsel %vm875, %v1041, %v1045
        %v1047 = vrot.slane %v961, 1
        %v1048 = vsel %vm875, %v1043, %v1047
        %v1049 = vrot.slane %v962, 1
        %v1050 = vsel %vm875, %v1045, %v1049
        %v1051 = vrot.slane %v963, 1
        %v1052 = vsel %vm875, %v1047, %v1051
        %v1053 = vrot.slane %v964, 1
        %v1054 = vsel %vm875, %v1049, %v1053
        %v1055 = vrot.slane %v965, 1
        %v1056 = vsel %vm875, %v1051, %v1055
        %v1057 = vrot.slane %v966, 1
        %v1058 = vsel %vm875, %v1053, %v1057
        %v1059 = vrot.slane %v967, 1
        %v1060 = vsel %vm875, %v1055, %v1059
        %v1061 = vrot.slane %v968, 1
        %v1062 = vsel %vm875, %v1057, %v1061
        %v1063 = vrot.slane %v969, 1
        %v1064 = vsel %vm875, %v1059, %v1063
        %v1065 = vrot.slane %v970, 1
        %v1066 = vsel %vm875, %v1061, %v1065
        %v1067 = vrot.slane %v971, 1
        %v1068 = vsel %vm875, %v1063, %v1067
        %v1069 = vrot.slane %v972, 1
        %v1070 = vsel %vm875, %v1065, %v1069
        %v1071 = vrot.slane %v973, 1
        %v1072 = vsel %vm875, %v1067, %v1071
        %v1073 = vrot.slane %v974, 1
        %v1074 = vsel %vm875, %v1069, %v1073
        %1075 = vrot.lane.b32.xlu0 %v1011, 127
        %v1076 = vpop.permute.xlu0 %1075
        %1077 = vrot.lane.b32.xlu0 %v1014, 127
        %v1078 = vpop.permute.xlu0 %1077
        %1079 = vrot.lane.b32.xlu0 %v1016, 127
        %v1080 = vpop.permute.xlu0 %1079
        %1081 = vrot.lane.b32.xlu0 %v1018, 127
        %v1082 = vpop.permute.xlu0 %1081
        %1083 = vrot.lane.b32.xlu0 %v1020, 127
        %v1084 = vpop.permute.xlu0 %1083
        %1085 = vrot.lane.b32.xlu0 %v1022, 127
        %v1086 = vpop.permute.xlu0 %1085
        %1087 = vrot.lane.b32.xlu0 %v1024, 127
        %v1088 = vpop.permute.xlu0 %1087
        %1089 = vrot.lane.b32.xlu0 %v1026, 127
        %v1090 = vpop.permute.xlu0 %1089
        %1091 = vrot.lane.b32.xlu0 %v1028, 127
        %v1092 = vpop.permute.xlu0 %1091
        %1093 = vrot.lane.b32.xlu0 %v1030, 127
        %v1094 = vpop.permute.xlu0 %1093
        %1095 = vrot.lane.b32.xlu0 %v1032, 127
        %v1096 = vpop.permute.xlu0 %1095
        %1097 = vrot.lane.b32.xlu0 %v1034, 127
        %v1098 = vpop.permute.xlu0 %1097
        %1099 = vrot.lane.b32.xlu0 %v1036, 127
        %v1100 = vpop.permute.xlu0 %1099
        %1101 = vrot.lane.b32.xlu0 %v1038, 127
        %v1102 = vpop.permute.xlu0 %1101
        %1103 = vrot.lane.b32.xlu0 %v1040, 127
        %v1104 = vpop.permute.xlu0 %1103
        %1105 = vrot.lane.b32.xlu0 %v1042, 127
        %v1106 = vpop.permute.xlu0 %1105
        %1107 = vrot.lane.b32.xlu0 %v1044, 127
        %v1108 = vpop.permute.xlu0 %1107
        %1109 = vrot.lane.b32.xlu0 %v1046, 127
        %v1110 = vpop.permute.xlu0 %1109
        %1111 = vrot.lane.b32.xlu0 %v1048, 127
        %v1112 = vpop.permute.xlu0 %1111
        %1113 = vrot.lane.b32.xlu0 %v1050, 127
        %v1114 = vpop.permute.xlu0 %1113
        %1115 = vrot.lane.b32.xlu0 %v1052, 127
        %v1116 = vpop.permute.xlu0 %1115
        %1117 = vrot.lane.b32.xlu0 %v1054, 127
        %v1118 = vpop.permute.xlu0 %1117
        %1119 = vrot.lane.b32.xlu0 %v1056, 127
        %v1120 = vpop.permute.xlu0 %1119
        %1121 = vrot.lane.b32.xlu0 %v1058, 127
        %v1122 = vpop.permute.xlu0 %1121
        %1123 = vrot.lane.b32.xlu0 %v1060, 127
        %v1124 = vpop.permute.xlu0 %1123
        %1125 = vrot.lane.b32.xlu0 %v1062, 127
        %v1126 = vpop.permute.xlu0 %1125
        %1127 = vrot.lane.b32.xlu0 %v1064, 127
        %v1128 = vpop.permute.xlu0 %1127
        %1129 = vrot.lane.b32.xlu0 %v1066, 127
        %v1130 = vpop.permute.xlu0 %1129
        %1131 = vrot.lane.b32.xlu0 %v1068, 127
        %v1132 = vpop.permute.xlu0 %1131
        %1133 = vrot.lane.b32.xlu0 %v1070, 127
        %v1134 = vpop.permute.xlu0 %1133
        %1135 = vrot.lane.b32.xlu0 %v1072, 127
        %v1136 = vpop.permute.xlu0 %1135
        %1137 = vrot.lane.b32.xlu0 %v1074, 127
        %v1138 = vpop.permute.xlu0 %1137
        %v1139 = vsel %vm293, %v1076, %v1078
        %v1140 = vsel %vm293, %v1080, %v1082
        %v1141 = vsel %vm293, %v1084, %v1086
        %v1142 = vsel %vm293, %v1088, %v1090
        %v1143 = vsel %vm293, %v1092, %v1094
        %v1144 = vsel %vm293, %v1096, %v1098
        %v1145 = vsel %vm293, %v1100, %v1102
        %v1146 = vsel %vm293, %v1104, %v1106
        %v1147 = vsel %vm293, %v1108, %v1110
        %v1148 = vsel %vm293, %v1112, %v1114
        %v1149 = vsel %vm293, %v1116, %v1118
        %v1150 = vsel %vm293, %v1120, %v1122
        %v1151 = vsel %vm293, %v1124, %v1126
        %v1152 = vsel %vm293, %v1128, %v1130
        %v1153 = vsel %vm293, %v1132, %v1134
        %v1154 = vsel %vm293, %v1136, %v1138
        %v1171 = vadd.f32 %v925, %v1139
        %v1172 = vadd.f32 %v926, %v1140
        %v1173 = vadd.f32 %v927, %v1141
        %v1174 = vadd.f32 %v928, %v1142
        %v1175 = vadd.f32 %v929, %v1143
        %v1176 = vadd.f32 %v930, %v1144
        %v1177 = vadd.f32 %v931, %v1145
        %v1178 = vadd.f32 %v932, %v1146
        %v1179 = vadd.f32 %v933, %v1147
        %v1180 = vadd.f32 %v934, %v1148
        %v1181 = vadd.f32 %v935, %v1149
        %v1182 = vadd.f32 %v936, %v1150
        %v1183 = vadd.f32 %v937, %v1151
        %v1184 = vadd.f32 %v938, %v1152
        %v1185 = vadd.f32 %v939, %v1153
        %v1186 = vadd.f32 %v940, %v1154
        %v1187 = vmul.f32 %v115, 0.013071537
        %v1188 = vmul.f32 %v116, 0.013071537
        %v1189 = vmul.f32 %v117, 0.013071537
        %v1190 = vmul.f32 %v118, 0.013071537
        %v1191 = vmul.f32 %v119, 0.013071537
        %v1192 = vmul.f32 %v120, 0.013071537
        %v1193 = vmul.f32 %v121, 0.013071537
        %v1194 = vmul.f32 %v122, 0.013071537
        %v1195 = vmul.f32 %v123, 0.013071537
        %v1196 = vmul.f32 %v124, 0.013071537
        %v1197 = vmul.f32 %v125, 0.013071537
        %v1198 = vmul.f32 %v126, 0.013071537
        %v1199 = vmul.f32 %v127, 0.013071537
        %v1200 = vmul.f32 %v128, 0.013071537
        %v1201 = vmul.f32 %v129, 0.013071537
        %v1202 = vmul.f32 %v130, 0.013071537
        %v1203 = vmul.f32 %v131, 0.013071537
        %v1204 = vmul.f32 %v132, 0.013071537
        %v1205 = vmul.f32 %v133, 0.013071537
        %v1206 = vmul.f32 %v134, 0.013071537
        %v1207 = vmul.f32 %v135, 0.013071537
        %v1208 = vmul.f32 %v136, 0.013071537
        %v1209 = vmul.f32 %v137, 0.013071537
        %v1210 = vmul.f32 %v138, 0.013071537
        %v1211 = vmul.f32 %v139, 0.013071537
        %v1212 = vmul.f32 %v140, 0.013071537
        %v1213 = vmul.f32 %v141, 0.013071537
        %v1214 = vmul.f32 %v142, 0.013071537
        %v1215 = vmul.f32 %v143, 0.013071537
        %v1216 = vmul.f32 %v144, 0.013071537
        %v1217 = vmul.f32 %v145, 0.013071537
        %v1218 = vmul.f32 %v146, 0.013071537
        %v1219 = vmul.f32 %v147, 0.013071537
        %v1220 = vmul.f32 %v148, 0.013071537
        %v1255 = vrot.slane %v1187, 1
        %v1256 = vrot.slane %v1189, 1
        %v1257 = vsel %vm875, %v1255, %v1256
        %v1258 = vrot.slane %v1188, 1
        %v1259 = vrot.slane %v1190, 1
        %v1260 = vsel %vm875, %v1258, %v1259
        %v1261 = vrot.slane %v1191, 1
        %v1262 = vsel %vm875, %v1256, %v1261
        %v1263 = vrot.slane %v1192, 1
        %v1264 = vsel %vm875, %v1259, %v1263
        %v1265 = vrot.slane %v1193, 1
        %v1266 = vsel %vm875, %v1261, %v1265
        %v1267 = vrot.slane %v1194, 1
        %v1268 = vsel %vm875, %v1263, %v1267
        %v1269 = vrot.slane %v1195, 1
        %v1270 = vsel %vm875, %v1265, %v1269
        %v1271 = vrot.slane %v1196, 1
        %v1272 = vsel %vm875, %v1267, %v1271
        %v1273 = vrot.slane %v1197, 1
        %v1274 = vsel %vm875, %v1269, %v1273
        %v1275 = vrot.slane %v1198, 1
        %v1276 = vsel %vm875, %v1271, %v1275
        %v1277 = vrot.slane %v1199, 1
        %v1278 = vsel %vm875, %v1273, %v1277
        %v1279 = vrot.slane %v1200, 1
        %v1280 = vsel %vm875, %v1275, %v1279
        %v1281 = vrot.slane %v1201, 1
        %v1282 = vsel %vm875, %v1277, %v1281
        %v1283 = vrot.slane %v1202, 1
        %v1284 = vsel %vm875, %v1279, %v1283
        %v1285 = vrot.slane %v1203, 1
        %v1286 = vsel %vm875, %v1281, %v1285
        %v1287 = vrot.slane %v1204, 1
        %v1288 = vsel %vm875, %v1283, %v1287
        %v1289 = vrot.slane %v1205, 1
        %v1290 = vsel %vm875, %v1285, %v1289
        %v1291 = vrot.slane %v1206, 1
        %v1292 = vsel %vm875, %v1287, %v1291
        %v1293 = vrot.slane %v1207, 1
        %v1294 = vsel %vm875, %v1289, %v1293
        %v1295 = vrot.slane %v1208, 1
        %v1296 = vsel %vm875, %v1291, %v1295
        %v1297 = vrot.slane %v1209, 1
        %v1298 = vsel %vm875, %v1293, %v1297
        %v1299 = vrot.slane %v1210, 1
        %v1300 = vsel %vm875, %v1295, %v1299
        %v1301 = vrot.slane %v1211, 1
        %v1302 = vsel %vm875, %v1297, %v1301
        %v1303 = vrot.slane %v1212, 1
        %v1304 = vsel %vm875, %v1299, %v1303
        %v1305 = vrot.slane %v1213, 1
        %v1306 = vsel %vm875, %v1301, %v1305
        %v1307 = vrot.slane %v1214, 1
        %v1308 = vsel %vm875, %v1303, %v1307
        %v1309 = vrot.slane %v1215, 1
        %v1310 = vsel %vm875, %v1305, %v1309
        %v1311 = vrot.slane %v1216, 1
        %v1312 = vsel %vm875, %v1307, %v1311
        %v1313 = vrot.slane %v1217, 1
        %v1314 = vsel %vm875, %v1309, %v1313
        %v1315 = vrot.slane %v1218, 1
        %v1316 = vsel %vm875, %v1311, %v1315
        %v1317 = vrot.slane %v1219, 1
        %v1318 = vsel %vm875, %v1313, %v1317
        %v1319 = vrot.slane %v1220, 1
        %v1320 = vsel %vm875, %v1315, %v1319
        %1321 = vrot.lane.b32.xlu0 %v1257, 126
        %v1322 = vpop.permute.xlu0 %1321
        %1323 = vrot.lane.b32.xlu0 %v1260, 126
        %v1324 = vpop.permute.xlu0 %1323
        %1325 = vrot.lane.b32.xlu0 %v1262, 126
        %v1326 = vpop.permute.xlu0 %1325
        %1327 = vrot.lane.b32.xlu0 %v1264, 126
        %v1328 = vpop.permute.xlu0 %1327
        %1329 = vrot.lane.b32.xlu0 %v1266, 126
        %v1330 = vpop.permute.xlu0 %1329
        %1331 = vrot.lane.b32.xlu0 %v1268, 126
        %v1332 = vpop.permute.xlu0 %1331
        %1333 = vrot.lane.b32.xlu0 %v1270, 126
        %v1334 = vpop.permute.xlu0 %1333
        %1335 = vrot.lane.b32.xlu0 %v1272, 126
        %v1336 = vpop.permute.xlu0 %1335
        %1337 = vrot.lane.b32.xlu0 %v1274, 126
        %v1338 = vpop.permute.xlu0 %1337
        %1339 = vrot.lane.b32.xlu0 %v1276, 126
        %v1340 = vpop.permute.xlu0 %1339
        %1341 = vrot.lane.b32.xlu0 %v1278, 126
        %v1342 = vpop.permute.xlu0 %1341
        %1343 = vrot.lane.b32.xlu0 %v1280, 126
        %v1344 = vpop.permute.xlu0 %1343
        %1345 = vrot.lane.b32.xlu0 %v1282, 126
        %v1346 = vpop.permute.xlu0 %1345
        %1347 = vrot.lane.b32.xlu0 %v1284, 126
        %v1348 = vpop.permute.xlu0 %1347
        %1349 = vrot.lane.b32.xlu0 %v1286, 126
        %v1350 = vpop.permute.xlu0 %1349
        %1351 = vrot.lane.b32.xlu0 %v1288, 126
        %v1352 = vpop.permute.xlu0 %1351
        %1353 = vrot.lane.b32.xlu0 %v1290, 126
        %v1354 = vpop.permute.xlu0 %1353
        %1355 = vrot.lane.b32.xlu0 %v1292, 126
        %v1356 = vpop.permute.xlu0 %1355
        %1357 = vrot.lane.b32.xlu0 %v1294, 126
        %v1358 = vpop.permute.xlu0 %1357
        %1359 = vrot.lane.b32.xlu0 %v1296, 126
        %v1360 = vpop.permute.xlu0 %1359
        %1361 = vrot.lane.b32.xlu0 %v1298, 126
        %v1362 = vpop.permute.xlu0 %1361
        %1363 = vrot.lane.b32.xlu0 %v1300, 126
        %v1364 = vpop.permute.xlu0 %1363
        %1365 = vrot.lane.b32.xlu0 %v1302, 126
        %v1366 = vpop.permute.xlu0 %1365
        %1367 = vrot.lane.b32.xlu0 %v1304, 126
        %v1368 = vpop.permute.xlu0 %1367
        %1369 = vrot.lane.b32.xlu0 %v1306, 126
        %v1370 = vpop.permute.xlu0 %1369
        %1371 = vrot.lane.b32.xlu0 %v1308, 126
        %v1372 = vpop.permute.xlu0 %1371
        %1373 = vrot.lane.b32.xlu0 %v1310, 126
        %v1374 = vpop.permute.xlu0 %1373
        %1375 = vrot.lane.b32.xlu0 %v1312, 126
        %v1376 = vpop.permute.xlu0 %1375
        %1377 = vrot.lane.b32.xlu0 %v1314, 126
        %v1378 = vpop.permute.xlu0 %1377
        %1379 = vrot.lane.b32.xlu0 %v1316, 126
        %v1380 = vpop.permute.xlu0 %1379
        %1381 = vrot.lane.b32.xlu0 %v1318, 126
        %v1382 = vpop.permute.xlu0 %1381
        %1383 = vrot.lane.b32.xlu0 %v1320, 126
        %v1384 = vpop.permute.xlu0 %1383
        %v1385 = vsel %vm470, %v1322, %v1324
        %v1386 = vsel %vm470, %v1326, %v1328
        %v1387 = vsel %vm470, %v1330, %v1332
        %v1388 = vsel %vm470, %v1334, %v1336
        %v1389 = vsel %vm470, %v1338, %v1340
        %v1390 = vsel %vm470, %v1342, %v1344
        %v1391 = vsel %vm470, %v1346, %v1348
        %v1392 = vsel %vm470, %v1350, %v1352
        %v1393 = vsel %vm470, %v1354, %v1356
        %v1394 = vsel %vm470, %v1358, %v1360
        %v1395 = vsel %vm470, %v1362, %v1364
        %v1396 = vsel %vm470, %v1366, %v1368
        %v1397 = vsel %vm470, %v1370, %v1372
        %v1398 = vsel %vm470, %v1374, %v1376
        %v1399 = vsel %vm470, %v1378, %v1380
        %v1400 = vsel %vm470, %v1382, %v1384
        %v1417 = vadd.f32 %v1171, %v1385
        %v1418 = vadd.f32 %v1172, %v1386
        %v1419 = vadd.f32 %v1173, %v1387
        %v1420 = vadd.f32 %v1174, %v1388
        %v1421 = vadd.f32 %v1175, %v1389
        %v1422 = vadd.f32 %v1176, %v1390
        %v1423 = vadd.f32 %v1177, %v1391
        %v1424 = vadd.f32 %v1178, %v1392
        %v1425 = vadd.f32 %v1179, %v1393
        %v1426 = vadd.f32 %v1180, %v1394
        %v1427 = vadd.f32 %v1181, %v1395
        %v1428 = vadd.f32 %v1182, %v1396
        %v1429 = vadd.f32 %v1183, %v1397
        %v1430 = vadd.f32 %v1184, %v1398
        %v1431 = vadd.f32 %v1185, %v1399
        %v1432 = vadd.f32 %v1186, %v1400
        %v1433 = vmul.f32 %v115, 0.02177869
        %v1434 = vmul.f32 %v116, 0.02177869
        %v1435 = vmul.f32 %v117, 0.02177869
        %v1436 = vmul.f32 %v118, 0.02177869
        %v1437 = vmul.f32 %v119, 0.02177869
        %v1438 = vmul.f32 %v120, 0.02177869
        %v1439 = vmul.f32 %v121, 0.02177869
        %v1440 = vmul.f32 %v122, 0.02177869
        %v1441 = vmul.f32 %v123, 0.02177869
        %v1442 = vmul.f32 %v124, 0.02177869
        %v1443 = vmul.f32 %v125, 0.02177869
        %v1444 = vmul.f32 %v126, 0.02177869
        %v1445 = vmul.f32 %v127, 0.02177869
        %v1446 = vmul.f32 %v128, 0.02177869
        %v1447 = vmul.f32 %v129, 0.02177869
        %v1448 = vmul.f32 %v130, 0.02177869
        %v1449 = vmul.f32 %v131, 0.02177869
        %v1450 = vmul.f32 %v132, 0.02177869
        %v1451 = vmul.f32 %v133, 0.02177869
        %v1452 = vmul.f32 %v134, 0.02177869
        %v1453 = vmul.f32 %v135, 0.02177869
        %v1454 = vmul.f32 %v136, 0.02177869
        %v1455 = vmul.f32 %v137, 0.02177869
        %v1456 = vmul.f32 %v138, 0.02177869
        %v1457 = vmul.f32 %v139, 0.02177869
        %v1458 = vmul.f32 %v140, 0.02177869
        %v1459 = vmul.f32 %v141, 0.02177869
        %v1460 = vmul.f32 %v142, 0.02177869
        %v1461 = vmul.f32 %v143, 0.02177869
        %v1462 = vmul.f32 %v144, 0.02177869
        %v1463 = vmul.f32 %v145, 0.02177869
        %v1464 = vmul.f32 %v146, 0.02177869
        %v1465 = vmul.f32 %v147, 0.02177869
        %v1466 = vmul.f32 %v148, 0.02177869
        %v1501 = vrot.slane %v1433, 1
        %v1502 = vrot.slane %v1435, 1
        %v1503 = vsel %vm875, %v1501, %v1502
        %v1504 = vrot.slane %v1434, 1
        %v1505 = vrot.slane %v1436, 1
        %v1506 = vsel %vm875, %v1504, %v1505
        %v1507 = vrot.slane %v1437, 1
        %v1508 = vsel %vm875, %v1502, %v1507
        %v1509 = vrot.slane %v1438, 1
        %v1510 = vsel %vm875, %v1505, %v1509
        %v1511 = vrot.slane %v1439, 1
        %v1512 = vsel %vm875, %v1507, %v1511
        %v1513 = vrot.slane %v1440, 1
        %v1514 = vsel %vm875, %v1509, %v1513
        %v1515 = vrot.slane %v1441, 1
        %v1516 = vsel %vm875, %v1511, %v1515
        %v1517 = vrot.slane %v1442, 1
        %v1518 = vsel %vm875, %v1513, %v1517
        %v1519 = vrot.slane %v1443, 1
        %v1520 = vsel %vm875, %v1515, %v1519
        %v1521 = vrot.slane %v1444, 1
        %v1522 = vsel %vm875, %v1517, %v1521
        %v1523 = vrot.slane %v1445, 1
        %v1524 = vsel %vm875, %v1519, %v1523
        %v1525 = vrot.slane %v1446, 1
        %v1526 = vsel %vm875, %v1521, %v1525
        %v1527 = vrot.slane %v1447, 1
        %v1528 = vsel %vm875, %v1523, %v1527
        %v1529 = vrot.slane %v1448, 1
        %v1530 = vsel %vm875, %v1525, %v1529
        %v1531 = vrot.slane %v1449, 1
        %v1532 = vsel %vm875, %v1527, %v1531
        %v1533 = vrot.slane %v1450, 1
        %v1534 = vsel %vm875, %v1529, %v1533
        %v1535 = vrot.slane %v1451, 1
        %v1536 = vsel %vm875, %v1531, %v1535
        %v1537 = vrot.slane %v1452, 1
        %v1538 = vsel %vm875, %v1533, %v1537
        %v1539 = vrot.slane %v1453, 1
        %v1540 = vsel %vm875, %v1535, %v1539
        %v1541 = vrot.slane %v1454, 1
        %v1542 = vsel %vm875, %v1537, %v1541
        %v1543 = vrot.slane %v1455, 1
        %v1544 = vsel %vm875, %v1539, %v1543
        %v1545 = vrot.slane %v1456, 1
        %v1546 = vsel %vm875, %v1541, %v1545
        %v1547 = vrot.slane %v1457, 1
        %v1548 = vsel %vm875, %v1543, %v1547
        %v1549 = vrot.slane %v1458, 1
        %v1550 = vsel %vm875, %v1545, %v1549
        %v1551 = vrot.slane %v1459, 1
        %v1552 = vsel %vm875, %v1547, %v1551
        %v1553 = vrot.slane %v1460, 1
        %v1554 = vsel %vm875, %v1549, %v1553
        %v1555 = vrot.slane %v1461, 1
        %v1556 = vsel %vm875, %v1551, %v1555
        %v1557 = vrot.slane %v1462, 1
        %v1558 = vsel %vm875, %v1553, %v1557
        %v1559 = vrot.slane %v1463, 1
        %v1560 = vsel %vm875, %v1555, %v1559
        %v1561 = vrot.slane %v1464, 1
        %v1562 = vsel %vm875, %v1557, %v1561
        %v1563 = vrot.slane %v1465, 1
        %v1564 = vsel %vm875, %v1559, %v1563
        %v1565 = vrot.slane %v1466, 1
        %v1566 = vsel %vm875, %v1561, %v1565
        %1567 = vrot.lane.b32.xlu0 %v1503, 125
        %v1568 = vpop.permute.xlu0 %1567
        %1569 = vrot.lane.b32.xlu0 %v1506, 125
        %v1570 = vpop.permute.xlu0 %1569
        %1571 = vrot.lane.b32.xlu0 %v1508, 125
        %v1572 = vpop.permute.xlu0 %1571
        %1573 = vrot.lane.b32.xlu0 %v1510, 125
        %v1574 = vpop.permute.xlu0 %1573
        %1575 = vrot.lane.b32.xlu0 %v1512, 125
        %v1576 = vpop.permute.xlu0 %1575
        %1577 = vrot.lane.b32.xlu0 %v1514, 125
        %v1578 = vpop.permute.xlu0 %1577
        %1579 = vrot.lane.b32.xlu0 %v1516, 125
        %v1580 = vpop.permute.xlu0 %1579
        %1581 = vrot.lane.b32.xlu0 %v1518, 125
        %v1582 = vpop.permute.xlu0 %1581
        %1583 = vrot.lane.b32.xlu0 %v1520, 125
        %v1584 = vpop.permute.xlu0 %1583
        %1585 = vrot.lane.b32.xlu0 %v1522, 125
        %v1586 = vpop.permute.xlu0 %1585
        %1587 = vrot.lane.b32.xlu0 %v1524, 125
        %v1588 = vpop.permute.xlu0 %1587
        %1589 = vrot.lane.b32.xlu0 %v1526, 125
        %v1590 = vpop.permute.xlu0 %1589
        %1591 = vrot.lane.b32.xlu0 %v1528, 125
        %v1592 = vpop.permute.xlu0 %1591
        %1593 = vrot.lane.b32.xlu0 %v1530, 125
        %v1594 = vpop.permute.xlu0 %1593
        %1595 = vrot.lane.b32.xlu0 %v1532, 125
        %v1596 = vpop.permute.xlu0 %1595
        %1597 = vrot.lane.b32.xlu0 %v1534, 125
        %v1598 = vpop.permute.xlu0 %1597
        %1599 = vrot.lane.b32.xlu0 %v1536, 125
        %v1600 = vpop.permute.xlu0 %1599
        %1601 = vrot.lane.b32.xlu0 %v1538, 125
        %v1602 = vpop.permute.xlu0 %1601
        %1603 = vrot.lane.b32.xlu0 %v1540, 125
        %v1604 = vpop.permute.xlu0 %1603
        %1605 = vrot.lane.b32.xlu0 %v1542, 125
        %v1606 = vpop.permute.xlu0 %1605
        %1607 = vrot.lane.b32.xlu0 %v1544, 125
        %v1608 = vpop.permute.xlu0 %1607
        %1609 = vrot.lane.b32.xlu0 %v1546, 125
        %v1610 = vpop.permute.xlu0 %1609
        %1611 = vrot.lane.b32.xlu0 %v1548, 125
        %v1612 = vpop.permute.xlu0 %1611
        %1613 = vrot.lane.b32.xlu0 %v1550, 125
        %v1614 = vpop.permute.xlu0 %1613
        %1615 = vrot.lane.b32.xlu0 %v1552, 125
        %v1616 = vpop.permute.xlu0 %1615
        %1617 = vrot.lane.b32.xlu0 %v1554, 125
        %v1618 = vpop.permute.xlu0 %1617
        %1619 = vrot.lane.b32.xlu0 %v1556, 125
        %v1620 = vpop.permute.xlu0 %1619
        %1621 = vrot.lane.b32.xlu0 %v1558, 125
        %v1622 = vpop.permute.xlu0 %1621
        %1623 = vrot.lane.b32.xlu0 %v1560, 125
        %v1624 = vpop.permute.xlu0 %1623
        %1625 = vrot.lane.b32.xlu0 %v1562, 125
        %v1626 = vpop.permute.xlu0 %1625
        %1627 = vrot.lane.b32.xlu0 %v1564, 125
        %v1628 = vpop.permute.xlu0 %1627
        %1629 = vrot.lane.b32.xlu0 %v1566, 125
        %v1630 = vpop.permute.xlu0 %1629
        %v1631 = vsel %vm647, %v1568, %v1570
        %v1632 = vsel %vm647, %v1572, %v1574
        %v1633 = vsel %vm647, %v1576, %v1578
        %v1634 = vsel %vm647, %v1580, %v1582
        %v1635 = vsel %vm647, %v1584, %v1586
        %v1636 = vsel %vm647, %v1588, %v1590
        %v1637 = vsel %vm647, %v1592, %v1594
        %v1638 = vsel %vm647, %v1596, %v1598
        %v1639 = vsel %vm647, %v1600, %v1602
        %v1640 = vsel %vm647, %v1604, %v1606
        %v1641 = vsel %vm647, %v1608, %v1610
        %v1642 = vsel %vm647, %v1612, %v1614
        %v1643 = vsel %vm647, %v1616, %v1618
        %v1644 = vsel %vm647, %v1620, %v1622
        %v1645 = vsel %vm647, %v1624, %v1626
        %v1646 = vsel %vm647, %v1628, %v1630
        %v1663 = vadd.f32 %v1417, %v1631
        %v1664 = vadd.f32 %v1418, %v1632
        %v1665 = vadd.f32 %v1419, %v1633
        %v1666 = vadd.f32 %v1420, %v1634
        %v1667 = vadd.f32 %v1421, %v1635
        %v1668 = vadd.f32 %v1422, %v1636
        %v1669 = vadd.f32 %v1423, %v1637
        %v1670 = vadd.f32 %v1424, %v1638
        %v1671 = vadd.f32 %v1425, %v1639
        %v1672 = vadd.f32 %v1426, %v1640
        %v1673 = vadd.f32 %v1427, %v1641
        %v1674 = vadd.f32 %v1428, %v1642
        %v1675 = vadd.f32 %v1429, %v1643
        %v1676 = vadd.f32 %v1430, %v1644
        %v1677 = vadd.f32 %v1431, %v1645
        %v1678 = vadd.f32 %v1432, %v1646
        %v1679 = vmul.f32 %v115, 0.015979353
        %v1680 = vmul.f32 %v116, 0.015979353
        %v1681 = vmul.f32 %v117, 0.015979353
        %v1682 = vmul.f32 %v118, 0.015979353
        %v1683 = vmul.f32 %v119, 0.015979353
        %v1684 = vmul.f32 %v120, 0.015979353
        %v1685 = vmul.f32 %v121, 0.015979353
        %v1686 = vmul.f32 %v122, 0.015979353
        %v1687 = vmul.f32 %v123, 0.015979353
        %v1688 = vmul.f32 %v124, 0.015979353
        %v1689 = vmul.f32 %v125, 0.015979353
        %v1690 = vmul.f32 %v126, 0.015979353
        %v1691 = vmul.f32 %v127, 0.015979353
        %v1692 = vmul.f32 %v128, 0.015979353
        %v1693 = vmul.f32 %v129, 0.015979353
        %v1694 = vmul.f32 %v130, 0.015979353
        %v1695 = vmul.f32 %v131, 0.015979353
        %v1696 = vmul.f32 %v132, 0.015979353
        %v1697 = vmul.f32 %v133, 0.015979353
        %v1698 = vmul.f32 %v134, 0.015979353
        %v1699 = vmul.f32 %v135, 0.015979353
        %v1700 = vmul.f32 %v136, 0.015979353
        %v1701 = vmul.f32 %v137, 0.015979353
        %v1702 = vmul.f32 %v138, 0.015979353
        %v1703 = vmul.f32 %v139, 0.015979353
        %v1704 = vmul.f32 %v140, 0.015979353
        %v1705 = vmul.f32 %v141, 0.015979353
        %v1706 = vmul.f32 %v142, 0.015979353
        %v1707 = vmul.f32 %v143, 0.015979353
        %v1708 = vmul.f32 %v144, 0.015979353
        %v1709 = vmul.f32 %v145, 0.015979353
        %v1710 = vmul.f32 %v146, 0.015979353
        %v1711 = vmul.f32 %v147, 0.015979353
        %v1712 = vmul.f32 %v148, 0.015979353
        %v1747 = vrot.slane %v1679, 1
        %v1748 = vrot.slane %v1681, 1
        %v1749 = vsel %vm875, %v1747, %v1748
        %v1750 = vrot.slane %v1680, 1
        %v1751 = vrot.slane %v1682, 1
        %v1752 = vsel %vm875, %v1750, %v1751
        %v1753 = vrot.slane %v1683, 1
        %v1754 = vsel %vm875, %v1748, %v1753
        %v1755 = vrot.slane %v1684, 1
        %v1756 = vsel %vm875, %v1751, %v1755
        %v1757 = vrot.slane %v1685, 1
        %v1758 = vsel %vm875, %v1753, %v1757
        %v1759 = vrot.slane %v1686, 1
        %v1760 = vsel %vm875, %v1755, %v1759
        %v1761 = vrot.slane %v1687, 1
        %v1762 = vsel %vm875, %v1757, %v1761
        %v1763 = vrot.slane %v1688, 1
        %v1764 = vsel %vm875, %v1759, %v1763
        %v1765 = vrot.slane %v1689, 1
        %v1766 = vsel %vm875, %v1761, %v1765
        %v1767 = vrot.slane %v1690, 1
        %v1768 = vsel %vm875, %v1763, %v1767
        %v1769 = vrot.slane %v1691, 1
        %v1770 = vsel %vm875, %v1765, %v1769
        %v1771 = vrot.slane %v1692, 1
        %v1772 = vsel %vm875, %v1767, %v1771
        %v1773 = vrot.slane %v1693, 1
        %v1774 = vsel %vm875, %v1769, %v1773
        %v1775 = vrot.slane %v1694, 1
        %v1776 = vsel %vm875, %v1771, %v1775
        %v1777 = vrot.slane %v1695, 1
        %v1778 = vsel %vm875, %v1773, %v1777
        %v1779 = vrot.slane %v1696, 1
        %v1780 = vsel %vm875, %v1775, %v1779
        %v1781 = vrot.slane %v1697, 1
        %v1782 = vsel %vm875, %v1777, %v1781
        %v1783 = vrot.slane %v1698, 1
        %v1784 = vsel %vm875, %v1779, %v1783
        %v1785 = vrot.slane %v1699, 1
        %v1786 = vsel %vm875, %v1781, %v1785
        %v1787 = vrot.slane %v1700, 1
        %v1788 = vsel %vm875, %v1783, %v1787
        %v1789 = vrot.slane %v1701, 1
        %v1790 = vsel %vm875, %v1785, %v1789
        %v1791 = vrot.slane %v1702, 1
        %v1792 = vsel %vm875, %v1787, %v1791
        %v1793 = vrot.slane %v1703, 1
        %v1794 = vsel %vm875, %v1789, %v1793
        %v1795 = vrot.slane %v1704, 1
        %v1796 = vsel %vm875, %v1791, %v1795
        %v1797 = vrot.slane %v1705, 1
        %v1798 = vsel %vm875, %v1793, %v1797
        %v1799 = vrot.slane %v1706, 1
        %v1800 = vsel %vm875, %v1795, %v1799
        %v1801 = vrot.slane %v1707, 1
        %v1802 = vsel %vm875, %v1797, %v1801
        %v1803 = vrot.slane %v1708, 1
        %v1804 = vsel %vm875, %v1799, %v1803
        %v1805 = vrot.slane %v1709, 1
        %v1806 = vsel %vm875, %v1801, %v1805
        %v1807 = vrot.slane %v1710, 1
        %v1808 = vsel %vm875, %v1803, %v1807
        %v1809 = vrot.slane %v1711, 1
        %v1810 = vsel %vm875, %v1805, %v1809
        %v1811 = vrot.slane %v1712, 1
        %v1812 = vsel %vm875, %v1807, %v1811
        %1813 = vrot.lane.b32.xlu0 %v1749, 124
        %v1814 = vpop.permute.xlu0 %1813
        %1815 = vrot.lane.b32.xlu0 %v1752, 124
        %v1816 = vpop.permute.xlu0 %1815
        %1817 = vrot.lane.b32.xlu0 %v1754, 124
        %v1818 = vpop.permute.xlu0 %1817
        %1819 = vrot.lane.b32.xlu0 %v1756, 124
        %v1820 = vpop.permute.xlu0 %1819
        %1821 = vrot.lane.b32.xlu0 %v1758, 124
        %v1822 = vpop.permute.xlu0 %1821
        %1823 = vrot.lane.b32.xlu0 %v1760, 124
        %v1824 = vpop.permute.xlu0 %1823
        %1825 = vrot.lane.b32.xlu0 %v1762, 124
        %v1826 = vpop.permute.xlu0 %1825
        %1827 = vrot.lane.b32.xlu0 %v1764, 124
        %v1828 = vpop.permute.xlu0 %1827
        %1829 = vrot.lane.b32.xlu0 %v1766, 124
        %v1830 = vpop.permute.xlu0 %1829
        %1831 = vrot.lane.b32.xlu0 %v1768, 124
        %v1832 = vpop.permute.xlu0 %1831
        %1833 = vrot.lane.b32.xlu0 %v1770, 124
        %v1834 = vpop.permute.xlu0 %1833
        %1835 = vrot.lane.b32.xlu0 %v1772, 124
        %v1836 = vpop.permute.xlu0 %1835
        %1837 = vrot.lane.b32.xlu0 %v1774, 124
        %v1838 = vpop.permute.xlu0 %1837
        %1839 = vrot.lane.b32.xlu0 %v1776, 124
        %v1840 = vpop.permute.xlu0 %1839
        %1841 = vrot.lane.b32.xlu0 %v1778, 124
        %v1842 = vpop.permute.xlu0 %1841
        %1843 = vrot.lane.b32.xlu0 %v1780, 124
        %v1844 = vpop.permute.xlu0 %1843
        %1845 = vrot.lane.b32.xlu0 %v1782, 124
        %v1846 = vpop.permute.xlu0 %1845
        %1847 = vrot.lane.b32.xlu0 %v1784, 124
        %v1848 = vpop.permute.xlu0 %1847
        %1849 = vrot.lane.b32.xlu0 %v1786, 124
        %v1850 = vpop.permute.xlu0 %1849
        %1851 = vrot.lane.b32.xlu0 %v1788, 124
        %v1852 = vpop.permute.xlu0 %1851
        %1853 = vrot.lane.b32.xlu0 %v1790, 124
        %v1854 = vpop.permute.xlu0 %1853
        %1855 = vrot.lane.b32.xlu0 %v1792, 124
        %v1856 = vpop.permute.xlu0 %1855
        %1857 = vrot.lane.b32.xlu0 %v1794, 124
        %v1858 = vpop.permute.xlu0 %1857
        %1859 = vrot.lane.b32.xlu0 %v1796, 124
        %v1860 = vpop.permute.xlu0 %1859
        %1861 = vrot.lane.b32.xlu0 %v1798, 124
        %v1862 = vpop.permute.xlu0 %1861
        %1863 = vrot.lane.b32.xlu0 %v1800, 124
        %v1864 = vpop.permute.xlu0 %1863
        %1865 = vrot.lane.b32.xlu0 %v1802, 124
        %v1866 = vpop.permute.xlu0 %1865
        %1867 = vrot.lane.b32.xlu0 %v1804, 124
        %v1868 = vpop.permute.xlu0 %1867
        %1869 = vrot.lane.b32.xlu0 %v1806, 124
        %v1870 = vpop.permute.xlu0 %1869
        %1871 = vrot.lane.b32.xlu0 %v1808, 124
        %v1872 = vpop.permute.xlu0 %1871
        %1873 = vrot.lane.b32.xlu0 %v1810, 124
        %v1874 = vpop.permute.xlu0 %1873
        %1875 = vrot.lane.b32.xlu0 %v1812, 124
        %v1876 = vpop.permute.xlu0 %1875
        %v1877 = vsel %vm824, %v1814, %v1816
        %v1878 = vsel %vm824, %v1818, %v1820
        %v1879 = vsel %vm824, %v1822, %v1824
        %v1880 = vsel %vm824, %v1826, %v1828
        %v1881 = vsel %vm824, %v1830, %v1832
        %v1882 = vsel %vm824, %v1834, %v1836
        %v1883 = vsel %vm824, %v1838, %v1840
        %v1884 = vsel %vm824, %v1842, %v1844
        %v1885 = vsel %vm824, %v1846, %v1848
        %v1886 = vsel %vm824, %v1850, %v1852
        %v1887 = vsel %vm824, %v1854, %v1856
        %v1888 = vsel %vm824, %v1858, %v1860
        %v1889 = vsel %vm824, %v1862, %v1864
        %v1890 = vsel %vm824, %v1866, %v1868
        %v1891 = vsel %vm824, %v1870, %v1872
        %v1892 = vsel %vm824, %v1874, %v1876
        %v1909 = vadd.f32 %v1663, %v1877
        %v1910 = vadd.f32 %v1664, %v1878
        %v1911 = vadd.f32 %v1665, %v1879
        %v1912 = vadd.f32 %v1666, %v1880
        %v1913 = vadd.f32 %v1667, %v1881
        %v1914 = vadd.f32 %v1668, %v1882
        %v1915 = vadd.f32 %v1669, %v1883
        %v1916 = vadd.f32 %v1670, %v1884
        %v1917 = vadd.f32 %v1671, %v1885
        %v1918 = vadd.f32 %v1672, %v1886
        %v1919 = vadd.f32 %v1673, %v1887
        %v1920 = vadd.f32 %v1674, %v1888
        %v1921 = vadd.f32 %v1675, %v1889
        %v1922 = vadd.f32 %v1676, %v1890
        %v1923 = vadd.f32 %v1677, %v1891
        %v1924 = vadd.f32 %v1678, %v1892
        %v1925 = vmul.f32 %v147, 0.0011053781
        %vm1927 = vcmask 1045504
        %v1928 = vrot.slane %v342, 2
        %v1929 = vrot.slane %v344, 2
        %v1930 = vsel %vm1927, %v1928, %v1929
        %v1931 = vrot.slane %v346, 2
        %v1932 = vsel %vm1927, %v1929, %v1931
        %v1933 = vrot.slane %v348, 2
        %v1934 = vsel %vm1927, %v1931, %v1933
        %v1935 = vrot.slane %v350, 2
        %v1936 = vsel %vm1927, %v1933, %v1935
        %v1937 = vrot.slane %v352, 2
        %v1938 = vsel %vm1927, %v1935, %v1937
        %v1939 = vrot.slane %v354, 2
        %v1940 = vsel %vm1927, %v1937, %v1939
        %v1941 = vrot.slane %v356, 2
        %v1942 = vsel %vm1927, %v1939, %v1941
        %v1943 = vrot.slane %v358, 2
        %v1944 = vsel %vm1927, %v1941, %v1943
        %v1945 = vrot.slane %v360, 2
        %v1946 = vsel %vm1927, %v1943, %v1945
        %v1947 = vrot.slane %v362, 2
        %v1948 = vsel %vm1927, %v1945, %v1947
        %v1949 = vrot.slane %v364, 2
        %v1950 = vsel %vm1927, %v1947, %v1949
        %v1951 = vrot.slane %v366, 2
        %v1952 = vsel %vm1927, %v1949, %v1951
        %v1953 = vrot.slane %v368, 2
        %v1954 = vsel %vm1927, %v1951, %v1953
        %v1955 = vrot.slane %v370, 2
        %v1956 = vsel %vm1927, %v1953, %v1955
        %v1957 = vrot.slane %v372, 2
        %v1958 = vsel %vm1927, %v1955, %v1957
        %v1959 = vrot.slane %v1925, 2
        %v1960 = vsel %vm1927, %v1957, %v1959
        %v1977 = vadd.f32 %v1909, %v1930
        %v1978 = vadd.f32 %v1910, %v1932
        %v1979 = vadd.f32 %v1911, %v1934
        %v1980 = vadd.f32 %v1912, %v1936
        %v1981 = vadd.f32 %v1913, %v1938
        %v1982 = vadd.f32 %v1914, %v1940
        %v1983 = vadd.f32 %v1915, %v1942
        %v1984 = vadd.f32 %v1916, %v1944
        %v1985 = vadd.f32 %v1917, %v1946
        %v1986 = vadd.f32 %v1918, %v1948
        %v1987 = vadd.f32 %v1919, %v1950
        %v1988 = vadd.f32 %v1920, %v1952
        %v1989 = vadd.f32 %v1921, %v1954
        %v1990 = vadd.f32 %v1922, %v1956
        %v1991 = vadd.f32 %v1923, %v1958
        %v1992 = vadd.f32 %v1924, %v1960
        %v1993 = vrot.slane %v1187, 2
        %v1994 = vrot.slane %v1189, 2
        %v1995 = vsel %vm1927, %v1993, %v1994
        %v1996 = vrot.slane %v1188, 2
        %v1997 = vrot.slane %v1190, 2
        %v1998 = vsel %vm1927, %v1996, %v1997
        %v1999 = vrot.slane %v1191, 2
        %v2000 = vsel %vm1927, %v1994, %v1999
        %v2001 = vrot.slane %v1192, 2
        %v2002 = vsel %vm1927, %v1997, %v2001
        %v2003 = vrot.slane %v1193, 2
        %v2004 = vsel %vm1927, %v1999, %v2003
        %v2005 = vrot.slane %v1194, 2
        %v2006 = vsel %vm1927, %v2001, %v2005
        %v2007 = vrot.slane %v1195, 2
        %v2008 = vsel %vm1927, %v2003, %v2007
        %v2009 = vrot.slane %v1196, 2
        %v2010 = vsel %vm1927, %v2005, %v2009
        %v2011 = vrot.slane %v1197, 2
        %v2012 = vsel %vm1927, %v2007, %v2011
        %v2013 = vrot.slane %v1198, 2
        %v2014 = vsel %vm1927, %v2009, %v2013
        %v2015 = vrot.slane %v1199, 2
        %v2016 = vsel %vm1927, %v2011, %v2015
        %v2017 = vrot.slane %v1200, 2
        %v2018 = vsel %vm1927, %v2013, %v2017
        %v2019 = vrot.slane %v1201, 2
        %v2020 = vsel %vm1927, %v2015, %v2019
        %v2021 = vrot.slane %v1202, 2
        %v2022 = vsel %vm1927, %v2017, %v2021
        %v2023 = vrot.slane %v1203, 2
        %v2024 = vsel %vm1927, %v2019, %v2023
        %v2025 = vrot.slane %v1204, 2
        %v2026 = vsel %vm1927, %v2021, %v2025
        %v2027 = vrot.slane %v1205, 2
        %v2028 = vsel %vm1927, %v2023, %v2027
        %v2029 = vrot.slane %v1206, 2
        %v2030 = vsel %vm1927, %v2025, %v2029
        %v2031 = vrot.slane %v1207, 2
        %v2032 = vsel %vm1927, %v2027, %v2031
        %v2033 = vrot.slane %v1208, 2
        %v2034 = vsel %vm1927, %v2029, %v2033
        %v2035 = vrot.slane %v1209, 2
        %v2036 = vsel %vm1927, %v2031, %v2035
        %v2037 = vrot.slane %v1210, 2
        %v2038 = vsel %vm1927, %v2033, %v2037
        %v2039 = vrot.slane %v1211, 2
        %v2040 = vsel %vm1927, %v2035, %v2039
        %v2041 = vrot.slane %v1212, 2
        %v2042 = vsel %vm1927, %v2037, %v2041
        %v2043 = vrot.slane %v1213, 2
        %v2044 = vsel %vm1927, %v2039, %v2043
        %v2045 = vrot.slane %v1214, 2
        %v2046 = vsel %vm1927, %v2041, %v2045
        %v2047 = vrot.slane %v1215, 2
        %v2048 = vsel %vm1927, %v2043, %v2047
        %v2049 = vrot.slane %v1216, 2
        %v2050 = vsel %vm1927, %v2045, %v2049
        %v2051 = vrot.slane %v1217, 2
        %v2052 = vsel %vm1927, %v2047, %v2051
        %v2053 = vrot.slane %v1218, 2
        %v2054 = vsel %vm1927, %v2049, %v2053
        %v2055 = vrot.slane %v1219, 2
        %v2056 = vsel %vm1927, %v2051, %v2055
        %v2057 = vrot.slane %v1220, 2
        %v2058 = vsel %vm1927, %v2053, %v2057
        %2059 = vrot.lane.b32.xlu0 %v1995, 127
        %v2060 = vpop.permute.xlu0 %2059
        %2061 = vrot.lane.b32.xlu0 %v1998, 127
        %v2062 = vpop.permute.xlu0 %2061
        %2063 = vrot.lane.b32.xlu0 %v2000, 127
        %v2064 = vpop.permute.xlu0 %2063
        %2065 = vrot.lane.b32.xlu0 %v2002, 127
        %v2066 = vpop.permute.xlu0 %2065
        %2067 = vrot.lane.b32.xlu0 %v2004, 127
        %v2068 = vpop.permute.xlu0 %2067
        %2069 = vrot.lane.b32.xlu0 %v2006, 127
        %v2070 = vpop.permute.xlu0 %2069
        %2071 = vrot.lane.b32.xlu0 %v2008, 127
        %v2072 = vpop.permute.xlu0 %2071
        %2073 = vrot.lane.b32.xlu0 %v2010, 127
        %v2074 = vpop.permute.xlu0 %2073
        %2075 = vrot.lane.b32.xlu0 %v2012, 127
        %v2076 = vpop.permute.xlu0 %2075
        %2077 = vrot.lane.b32.xlu0 %v2014, 127
        %v2078 = vpop.permute.xlu0 %2077
        %2079 = vrot.lane.b32.xlu0 %v2016, 127
        %v2080 = vpop.permute.xlu0 %2079
        %2081 = vrot.lane.b32.xlu0 %v2018, 127
        %v2082 = vpop.permute.xlu0 %2081
        %2083 = vrot.lane.b32.xlu0 %v2020, 127
        %v2084 = vpop.permute.xlu0 %2083
        %2085 = vrot.lane.b32.xlu0 %v2022, 127
        %v2086 = vpop.permute.xlu0 %2085
        %2087 = vrot.lane.b32.xlu0 %v2024, 127
        %v2088 = vpop.permute.xlu0 %2087
        %2089 = vrot.lane.b32.xlu0 %v2026, 127
        %v2090 = vpop.permute.xlu0 %2089
        %2091 = vrot.lane.b32.xlu0 %v2028, 127
        %v2092 = vpop.permute.xlu0 %2091
        %2093 = vrot.lane.b32.xlu0 %v2030, 127
        %v2094 = vpop.permute.xlu0 %2093
        %2095 = vrot.lane.b32.xlu0 %v2032, 127
        %v2096 = vpop.permute.xlu0 %2095
        %2097 = vrot.lane.b32.xlu0 %v2034, 127
        %v2098 = vpop.permute.xlu0 %2097
        %2099 = vrot.lane.b32.xlu0 %v2036, 127
        %v2100 = vpop.permute.xlu0 %2099
        %2101 = vrot.lane.b32.xlu0 %v2038, 127
        %v2102 = vpop.permute.xlu0 %2101
        %2103 = vrot.lane.b32.xlu0 %v2040, 127
        %v2104 = vpop.permute.xlu0 %2103
        %2105 = vrot.lane.b32.xlu0 %v2042, 127
        %v2106 = vpop.permute.xlu0 %2105
        %2107 = vrot.lane.b32.xlu0 %v2044, 127
        %v2108 = vpop.permute.xlu0 %2107
        %2109 = vrot.lane.b32.xlu0 %v2046, 127
        %v2110 = vpop.permute.xlu0 %2109
        %2111 = vrot.lane.b32.xlu0 %v2048, 127
        %v2112 = vpop.permute.xlu0 %2111
        %2113 = vrot.lane.b32.xlu0 %v2050, 127
        %v2114 = vpop.permute.xlu0 %2113
        %2115 = vrot.lane.b32.xlu0 %v2052, 127
        %v2116 = vpop.permute.xlu0 %2115
        %2117 = vrot.lane.b32.xlu0 %v2054, 127
        %v2118 = vpop.permute.xlu0 %2117
        %2119 = vrot.lane.b32.xlu0 %v2056, 127
        %v2120 = vpop.permute.xlu0 %2119
        %2121 = vrot.lane.b32.xlu0 %v2058, 127
        %v2122 = vpop.permute.xlu0 %2121
        %v2123 = vsel %vm293, %v2060, %v2062
        %v2124 = vsel %vm293, %v2064, %v2066
        %v2125 = vsel %vm293, %v2068, %v2070
        %v2126 = vsel %vm293, %v2072, %v2074
        %v2127 = vsel %vm293, %v2076, %v2078
        %v2128 = vsel %vm293, %v2080, %v2082
        %v2129 = vsel %vm293, %v2084, %v2086
        %v2130 = vsel %vm293, %v2088, %v2090
        %v2131 = vsel %vm293, %v2092, %v2094
        %v2132 = vsel %vm293, %v2096, %v2098
        %v2133 = vsel %vm293, %v2100, %v2102
        %v2134 = vsel %vm293, %v2104, %v2106
        %v2135 = vsel %vm293, %v2108, %v2110
        %v2136 = vsel %vm293, %v2112, %v2114
        %v2137 = vsel %vm293, %v2116, %v2118
        %v2138 = vsel %vm293, %v2120, %v2122
        %v2155 = vadd.f32 %v1977, %v2123
        %v2156 = vadd.f32 %v1978, %v2124
        %v2157 = vadd.f32 %v1979, %v2125
        %v2158 = vadd.f32 %v1980, %v2126
        %v2159 = vadd.f32 %v1981, %v2127
        %v2160 = vadd.f32 %v1982, %v2128
        %v2161 = vadd.f32 %v1983, %v2129
        %v2162 = vadd.f32 %v1984, %v2130
        %v2163 = vadd.f32 %v1985, %v2131
        %v2164 = vadd.f32 %v1986, %v2132
        %v2165 = vadd.f32 %v1987, %v2133
        %v2166 = vadd.f32 %v1988, %v2134
        %v2167 = vadd.f32 %v1989, %v2135
        %v2168 = vadd.f32 %v1990, %v2136
        %v2169 = vadd.f32 %v1991, %v2137
        %v2170 = vadd.f32 %v1992, %v2138
        %v2171 = vmul.f32 %v115, 0.058614966
        %v2172 = vmul.f32 %v116, 0.058614966
        %v2173 = vmul.f32 %v117, 0.058614966
        %v2174 = vmul.f32 %v118, 0.058614966
        %v2175 = vmul.f32 %v119, 0.058614966
        %v2176 = vmul.f32 %v120, 0.058614966
        %v2177 = vmul.f32 %v121, 0.058614966
        %v2178 = vmul.f32 %v122, 0.058614966
        %v2179 = vmul.f32 %v123, 0.058614966
        %v2180 = vmul.f32 %v124, 0.058614966
        %v2181 = vmul.f32 %v125, 0.058614966
        %v2182 = vmul.f32 %v126, 0.058614966
        %v2183 = vmul.f32 %v127, 0.058614966
        %v2184 = vmul.f32 %v128, 0.058614966
        %v2185 = vmul.f32 %v129, 0.058614966
        %v2186 = vmul.f32 %v130, 0.058614966
        %v2187 = vmul.f32 %v131, 0.058614966
        %v2188 = vmul.f32 %v132, 0.058614966
        %v2189 = vmul.f32 %v133, 0.058614966
        %v2190 = vmul.f32 %v134, 0.058614966
        %v2191 = vmul.f32 %v135, 0.058614966
        %v2192 = vmul.f32 %v136, 0.058614966
        %v2193 = vmul.f32 %v137, 0.058614966
        %v2194 = vmul.f32 %v138, 0.058614966
        %v2195 = vmul.f32 %v139, 0.058614966
        %v2196 = vmul.f32 %v140, 0.058614966
        %v2197 = vmul.f32 %v141, 0.058614966
        %v2198 = vmul.f32 %v142, 0.058614966
        %v2199 = vmul.f32 %v143, 0.058614966
        %v2200 = vmul.f32 %v144, 0.058614966
        %v2201 = vmul.f32 %v145, 0.058614966
        %v2202 = vmul.f32 %v146, 0.058614966
        %v2203 = vmul.f32 %v147, 0.058614966
        %v2204 = vmul.f32 %v148, 0.058614966
        %v2239 = vrot.slane %v2171, 2
        %v2240 = vrot.slane %v2173, 2
        %v2241 = vsel %vm1927, %v2239, %v2240
        %v2242 = vrot.slane %v2172, 2
        %v2243 = vrot.slane %v2174, 2
        %v2244 = vsel %vm1927, %v2242, %v2243
        %v2245 = vrot.slane %v2175, 2
        %v2246 = vsel %vm1927, %v2240, %v2245
        %v2247 = vrot.slane %v2176, 2
        %v2248 = vsel %vm1927, %v2243, %v2247
        %v2249 = vrot.slane %v2177, 2
        %v2250 = vsel %vm1927, %v2245, %v2249
        %v2251 = vrot.slane %v2178, 2
        %v2252 = vsel %vm1927, %v2247, %v2251
        %v2253 = vrot.slane %v2179, 2
        %v2254 = vsel %vm1927, %v2249, %v2253
        %v2255 = vrot.slane %v2180, 2
        %v2256 = vsel %vm1927, %v2251, %v2255
        %v2257 = vrot.slane %v2181, 2
        %v2258 = vsel %vm1927, %v2253, %v2257
        %v2259 = vrot.slane %v2182, 2
        %v2260 = vsel %vm1927, %v2255, %v2259
        %v2261 = vrot.slane %v2183, 2
        %v2262 = vsel %vm1927, %v2257, %v2261
        %v2263 = vrot.slane %v2184, 2
        %v2264 = vsel %vm1927, %v2259, %v2263
        %v2265 = vrot.slane %v2185, 2
        %v2266 = vsel %vm1927, %v2261, %v2265
        %v2267 = vrot.slane %v2186, 2
        %v2268 = vsel %vm1927, %v2263, %v2267
        %v2269 = vrot.slane %v2187, 2
        %v2270 = vsel %vm1927, %v2265, %v2269
        %v2271 = vrot.slane %v2188, 2
        %v2272 = vsel %vm1927, %v2267, %v2271
        %v2273 = vrot.slane %v2189, 2
        %v2274 = vsel %vm1927, %v2269, %v2273
        %v2275 = vrot.slane %v2190, 2
        %v2276 = vsel %vm1927, %v2271, %v2275
        %v2277 = vrot.slane %v2191, 2
        %v2278 = vsel %vm1927, %v2273, %v2277
        %v2279 = vrot.slane %v2192, 2
        %v2280 = vsel %vm1927, %v2275, %v2279
        %v2281 = vrot.slane %v2193, 2
        %v2282 = vsel %vm1927, %v2277, %v2281
        %v2283 = vrot.slane %v2194, 2
        %v2284 = vsel %vm1927, %v2279, %v2283
        %v2285 = vrot.slane %v2195, 2
        %v2286 = vsel %vm1927, %v2281, %v2285
        %v2287 = vrot.slane %v2196, 2
        %v2288 = vsel %vm1927, %v2283, %v2287
        %v2289 = vrot.slane %v2197, 2
        %v2290 = vsel %vm1927, %v2285, %v2289
        %v2291 = vrot.slane %v2198, 2
        %v2292 = vsel %vm1927, %v2287, %v2291
        %v2293 = vrot.slane %v2199, 2
        %v2294 = vsel %vm1927, %v2289, %v2293
        %v2295 = vrot.slane %v2200, 2
        %v2296 = vsel %vm1927, %v2291, %v2295
        %v2297 = vrot.slane %v2201, 2
        %v2298 = vsel %vm1927, %v2293, %v2297
        %v2299 = vrot.slane %v2202, 2
        %v2300 = vsel %vm1927, %v2295, %v2299
        %v2301 = vrot.slane %v2203, 2
        %v2302 = vsel %vm1927, %v2297, %v2301
        %v2303 = vrot.slane %v2204, 2
        %v2304 = vsel %vm1927, %v2299, %v2303
        %2305 = vrot.lane.b32.xlu0 %v2241, 126
        %v2306 = vpop.permute.xlu0 %2305
        %2307 = vrot.lane.b32.xlu0 %v2244, 126
        %v2308 = vpop.permute.xlu0 %2307
        %2309 = vrot.lane.b32.xlu0 %v2246, 126
        %v2310 = vpop.permute.xlu0 %2309
        %2311 = vrot.lane.b32.xlu0 %v2248, 126
        %v2312 = vpop.permute.xlu0 %2311
        %2313 = vrot.lane.b32.xlu0 %v2250, 126
        %v2314 = vpop.permute.xlu0 %2313
        %2315 = vrot.lane.b32.xlu0 %v2252, 126
        %v2316 = vpop.permute.xlu0 %2315
        %2317 = vrot.lane.b32.xlu0 %v2254, 126
        %v2318 = vpop.permute.xlu0 %2317
        %2319 = vrot.lane.b32.xlu0 %v2256, 126
        %v2320 = vpop.permute.xlu0 %2319
        %2321 = vrot.lane.b32.xlu0 %v2258, 126
        %v2322 = vpop.permute.xlu0 %2321
        %2323 = vrot.lane.b32.xlu0 %v2260, 126
        %v2324 = vpop.permute.xlu0 %2323
        %2325 = vrot.lane.b32.xlu0 %v2262, 126
        %v2326 = vpop.permute.xlu0 %2325
        %2327 = vrot.lane.b32.xlu0 %v2264, 126
        %v2328 = vpop.permute.xlu0 %2327
        %2329 = vrot.lane.b32.xlu0 %v2266, 126
        %v2330 = vpop.permute.xlu0 %2329
        %2331 = vrot.lane.b32.xlu0 %v2268, 126
        %v2332 = vpop.permute.xlu0 %2331
        %2333 = vrot.lane.b32.xlu0 %v2270, 126
        %v2334 = vpop.permute.xlu0 %2333
        %2335 = vrot.lane.b32.xlu0 %v2272, 126
        %v2336 = vpop.permute.xlu0 %2335
        %2337 = vrot.lane.b32.xlu0 %v2274, 126
        %v2338 = vpop.permute.xlu0 %2337
        %2339 = vrot.lane.b32.xlu0 %v2276, 126
        %v2340 = vpop.permute.xlu0 %2339
        %2341 = vrot.lane.b32.xlu0 %v2278, 126
        %v2342 = vpop.permute.xlu0 %2341
        %2343 = vrot.lane.b32.xlu0 %v2280, 126
        %v2344 = vpop.permute.xlu0 %2343
        %2345 = vrot.lane.b32.xlu0 %v2282, 126
        %v2346 = vpop.permute.xlu0 %2345
        %2347 = vrot.lane.b32.xlu0 %v2284, 126
        %v2348 = vpop.permute.xlu0 %2347
        %2349 = vrot.lane.b32.xlu0 %v2286, 126
        %v2350 = vpop.permute.xlu0 %2349
        %2351 = vrot.lane.b32.xlu0 %v2288, 126
        %v2352 = vpop.permute.xlu0 %2351
        %2353 = vrot.lane.b32.xlu0 %v2290, 126
        %v2354 = vpop.permute.xlu0 %2353
        %2355 = vrot.lane.b32.xlu0 %v2292, 126
        %v2356 = vpop.permute.xlu0 %2355
        %2357 = vrot.lane.b32.xlu0 %v2294, 126
        %v2358 = vpop.permute.xlu0 %2357
        %2359 = vrot.lane.b32.xlu0 %v2296, 126
        %v2360 = vpop.permute.xlu0 %2359
        %2361 = vrot.lane.b32.xlu0 %v2298, 126
        %v2362 = vpop.permute.xlu0 %2361
        %2363 = vrot.lane.b32.xlu0 %v2300, 126
        %v2364 = vpop.permute.xlu0 %2363
        %2365 = vrot.lane.b32.xlu0 %v2302, 126
        %v2366 = vpop.permute.xlu0 %2365
        %2367 = vrot.lane.b32.xlu0 %v2304, 126
        %v2368 = vpop.permute.xlu0 %2367
        %v2369 = vsel %vm470, %v2306, %v2308
        %v2370 = vsel %vm470, %v2310, %v2312
        %v2371 = vsel %vm470, %v2314, %v2316
        %v2372 = vsel %vm470, %v2318, %v2320
        %v2373 = vsel %vm470, %v2322, %v2324
        %v2374 = vsel %vm470, %v2326, %v2328
        %v2375 = vsel %vm470, %v2330, %v2332
        %v2376 = vsel %vm470, %v2334, %v2336
        %v2377 = vsel %vm470, %v2338, %v2340
        %v2378 = vsel %vm470, %v2342, %v2344
        %v2379 = vsel %vm470, %v2346, %v2348
        %v2380 = vsel %vm470, %v2350, %v2352
        %v2381 = vsel %vm470, %v2354, %v2356
        %v2382 = vsel %vm470, %v2358, %v2360
        %v2383 = vsel %vm470, %v2362, %v2364
        %v2384 = vsel %vm470, %v2366, %v2368
        %v2401 = vadd.f32 %v2155, %v2369
        %v2402 = vadd.f32 %v2156, %v2370
        %v2403 = vadd.f32 %v2157, %v2371
        %v2404 = vadd.f32 %v2158, %v2372
        %v2405 = vadd.f32 %v2159, %v2373
        %v2406 = vadd.f32 %v2160, %v2374
        %v2407 = vadd.f32 %v2161, %v2375
        %v2408 = vadd.f32 %v2162, %v2376
        %v2409 = vadd.f32 %v2163, %v2377
        %v2410 = vadd.f32 %v2164, %v2378
        %v2411 = vadd.f32 %v2165, %v2379
        %v2412 = vadd.f32 %v2166, %v2380
        %v2413 = vadd.f32 %v2167, %v2381
        %v2414 = vadd.f32 %v2168, %v2382
        %v2415 = vadd.f32 %v2169, %v2383
        %v2416 = vadd.f32 %v2170, %v2384
        %v2417 = vmul.f32 %v115, 0.0976593
        %v2418 = vmul.f32 %v116, 0.0976593
        %v2419 = vmul.f32 %v117, 0.0976593
        %v2420 = vmul.f32 %v118, 0.0976593
        %v2421 = vmul.f32 %v119, 0.0976593
        %v2422 = vmul.f32 %v120, 0.0976593
        %v2423 = vmul.f32 %v121, 0.0976593
        %v2424 = vmul.f32 %v122, 0.0976593
        %v2425 = vmul.f32 %v123, 0.0976593
        %v2426 = vmul.f32 %v124, 0.0976593
        %v2427 = vmul.f32 %v125, 0.0976593
        %v2428 = vmul.f32 %v126, 0.0976593
        %v2429 = vmul.f32 %v127, 0.0976593
        %v2430 = vmul.f32 %v128, 0.0976593
        %v2431 = vmul.f32 %v129, 0.0976593
        %v2432 = vmul.f32 %v130, 0.0976593
        %v2433 = vmul.f32 %v131, 0.0976593
        %v2434 = vmul.f32 %v132, 0.0976593
        %v2435 = vmul.f32 %v133, 0.0976593
        %v2436 = vmul.f32 %v134, 0.0976593
        %v2437 = vmul.f32 %v135, 0.0976593
        %v2438 = vmul.f32 %v136, 0.0976593
        %v2439 = vmul.f32 %v137, 0.0976593
        %v2440 = vmul.f32 %v138, 0.0976593
        %v2441 = vmul.f32 %v139, 0.0976593
        %v2442 = vmul.f32 %v140, 0.0976593
        %v2443 = vmul.f32 %v141, 0.0976593
        %v2444 = vmul.f32 %v142, 0.0976593
        %v2445 = vmul.f32 %v143, 0.0976593
        %v2446 = vmul.f32 %v144, 0.0976593
        %v2447 = vmul.f32 %v145, 0.0976593
        %v2448 = vmul.f32 %v146, 0.0976593
        %v2449 = vmul.f32 %v147, 0.0976593
        %v2450 = vmul.f32 %v148, 0.0976593
        %v2485 = vrot.slane %v2417, 2
        %v2486 = vrot.slane %v2419, 2
        %v2487 = vsel %vm1927, %v2485, %v2486
        %v2488 = vrot.slane %v2418, 2
        %v2489 = vrot.slane %v2420, 2
        %v2490 = vsel %vm1927, %v2488, %v2489
        %v2491 = vrot.slane %v2421, 2
        %v2492 = vsel %vm1927, %v2486, %v2491
        %v2493 = vrot.slane %v2422, 2
        %v2494 = vsel %vm1927, %v2489, %v2493
        %v2495 = vrot.slane %v2423, 2
        %v2496 = vsel %vm1927, %v2491, %v2495
        %v2497 = vrot.slane %v2424, 2
        %v2498 = vsel %vm1927, %v2493, %v2497
        %v2499 = vrot.slane %v2425, 2
        %v2500 = vsel %vm1927, %v2495, %v2499
        %v2501 = vrot.slane %v2426, 2
        %v2502 = vsel %vm1927, %v2497, %v2501
        %v2503 = vrot.slane %v2427, 2
        %v2504 = vsel %vm1927, %v2499, %v2503
        %v2505 = vrot.slane %v2428, 2
        %v2506 = vsel %vm1927, %v2501, %v2505
        %v2507 = vrot.slane %v2429, 2
        %v2508 = vsel %vm1927, %v2503, %v2507
        %v2509 = vrot.slane %v2430, 2
        %v2510 = vsel %vm1927, %v2505, %v2509
        %v2511 = vrot.slane %v2431, 2
        %v2512 = vsel %vm1927, %v2507, %v2511
        %v2513 = vrot.slane %v2432, 2
        %v2514 = vsel %vm1927, %v2509, %v2513
        %v2515 = vrot.slane %v2433, 2
        %v2516 = vsel %vm1927, %v2511, %v2515
        %v2517 = vrot.slane %v2434, 2
        %v2518 = vsel %vm1927, %v2513, %v2517
        %v2519 = vrot.slane %v2435, 2
        %v2520 = vsel %vm1927, %v2515, %v2519
        %v2521 = vrot.slane %v2436, 2
        %v2522 = vsel %vm1927, %v2517, %v2521
        %v2523 = vrot.slane %v2437, 2
        %v2524 = vsel %vm1927, %v2519, %v2523
        %v2525 = vrot.slane %v2438, 2
        %v2526 = vsel %vm1927, %v2521, %v2525
        %v2527 = vrot.slane %v2439, 2
        %v2528 = vsel %vm1927, %v2523, %v2527
        %v2529 = vrot.slane %v2440, 2
        %v2530 = vsel %vm1927, %v2525, %v2529
        %v2531 = vrot.slane %v2441, 2
        %v2532 = vsel %vm1927, %v2527, %v2531
        %v2533 = vrot.slane %v2442, 2
        %v2534 = vsel %vm1927, %v2529, %v2533
        %v2535 = vrot.slane %v2443, 2
        %v2536 = vsel %vm1927, %v2531, %v2535
        %v2537 = vrot.slane %v2444, 2
        %v2538 = vsel %vm1927, %v2533, %v2537
        %v2539 = vrot.slane %v2445, 2
        %v2540 = vsel %vm1927, %v2535, %v2539
        %v2541 = vrot.slane %v2446, 2
        %v2542 = vsel %vm1927, %v2537, %v2541
        %v2543 = vrot.slane %v2447, 2
        %v2544 = vsel %vm1927, %v2539, %v2543
        %v2545 = vrot.slane %v2448, 2
        %v2546 = vsel %vm1927, %v2541, %v2545
        %v2547 = vrot.slane %v2449, 2
        %v2548 = vsel %vm1927, %v2543, %v2547
        %v2549 = vrot.slane %v2450, 2
        %v2550 = vsel %vm1927, %v2545, %v2549
        %2551 = vrot.lane.b32.xlu0 %v2487, 125
        %v2552 = vpop.permute.xlu0 %2551
        %2553 = vrot.lane.b32.xlu0 %v2490, 125
        %v2554 = vpop.permute.xlu0 %2553
        %2555 = vrot.lane.b32.xlu0 %v2492, 125
        %v2556 = vpop.permute.xlu0 %2555
        %2557 = vrot.lane.b32.xlu0 %v2494, 125
        %v2558 = vpop.permute.xlu0 %2557
        %2559 = vrot.lane.b32.xlu0 %v2496, 125
        %v2560 = vpop.permute.xlu0 %2559
        %2561 = vrot.lane.b32.xlu0 %v2498, 125
        %v2562 = vpop.permute.xlu0 %2561
        %2563 = vrot.lane.b32.xlu0 %v2500, 125
        %v2564 = vpop.permute.xlu0 %2563
        %2565 = vrot.lane.b32.xlu0 %v2502, 125
        %v2566 = vpop.permute.xlu0 %2565
        %2567 = vrot.lane.b32.xlu0 %v2504, 125
        %v2568 = vpop.permute.xlu0 %2567
        %2569 = vrot.lane.b32.xlu0 %v2506, 125
        %v2570 = vpop.permute.xlu0 %2569
        %2571 = vrot.lane.b32.xlu0 %v2508, 125
        %v2572 = vpop.permute.xlu0 %2571
        %2573 = vrot.lane.b32.xlu0 %v2510, 125
        %v2574 = vpop.permute.xlu0 %2573
        %2575 = vrot.lane.b32.xlu0 %v2512, 125
        %v2576 = vpop.permute.xlu0 %2575
        %2577 = vrot.lane.b32.xlu0 %v2514, 125
        %v2578 = vpop.permute.xlu0 %2577
        %2579 = vrot.lane.b32.xlu0 %v2516, 125
        %v2580 = vpop.permute.xlu0 %2579
        %2581 = vrot.lane.b32.xlu0 %v2518, 125
        %v2582 = vpop.permute.xlu0 %2581
        %2583 = vrot.lane.b32.xlu0 %v2520, 125
        %v2584 = vpop.permute.xlu0 %2583
        %2585 = vrot.lane.b32.xlu0 %v2522, 125
        %v2586 = vpop.permute.xlu0 %2585
        %2587 = vrot.lane.b32.xlu0 %v2524, 125
        %v2588 = vpop.permute.xlu0 %2587
        %2589 = vrot.lane.b32.xlu0 %v2526, 125
        %v2590 = vpop.permute.xlu0 %2589
        %2591 = vrot.lane.b32.xlu0 %v2528, 125
        %v2592 = vpop.permute.xlu0 %2591
        %2593 = vrot.lane.b32.xlu0 %v2530, 125
        %v2594 = vpop.permute.xlu0 %2593
        %2595 = vrot.lane.b32.xlu0 %v2532, 125
        %v2596 = vpop.permute.xlu0 %2595
        %2597 = vrot.lane.b32.xlu0 %v2534, 125
        %v2598 = vpop.permute.xlu0 %2597
        %2599 = vrot.lane.b32.xlu0 %v2536, 125
        %v2600 = vpop.permute.xlu0 %2599
        %2601 = vrot.lane.b32.xlu0 %v2538, 125
        %v2602 = vpop.permute.xlu0 %2601
        %2603 = vrot.lane.b32.xlu0 %v2540, 125
        %v2604 = vpop.permute.xlu0 %2603
        %2605 = vrot.lane.b32.xlu0 %v2542, 125
        %v2606 = vpop.permute.xlu0 %2605
        %2607 = vrot.lane.b32.xlu0 %v2544, 125
        %v2608 = vpop.permute.xlu0 %2607
        %2609 = vrot.lane.b32.xlu0 %v2546, 125
        %v2610 = vpop.permute.xlu0 %2609
        %2611 = vrot.lane.b32.xlu0 %v2548, 125
        %v2612 = vpop.permute.xlu0 %2611
        %2613 = vrot.lane.b32.xlu0 %v2550, 125
        %v2614 = vpop.permute.xlu0 %2613
        %v2615 = vsel %vm647, %v2552, %v2554
        %v2616 = vsel %vm647, %v2556, %v2558
        %v2617 = vsel %vm647, %v2560, %v2562
        %v2618 = vsel %vm647, %v2564, %v2566
        %v2619 = vsel %vm647, %v2568, %v2570
        %v2620 = vsel %vm647, %v2572, %v2574
        %v2621 = vsel %vm647, %v2576, %v2578
        %v2622 = vsel %vm647, %v2580, %v2582
        %v2623 = vsel %vm647, %v2584, %v2586
        %v2624 = vsel %vm647, %v2588, %v2590
        %v2625 = vsel %vm647, %v2592, %v2594
        %v2626 = vsel %vm647, %v2596, %v2598
        %v2627 = vsel %vm647, %v2600, %v2602
        %v2628 = vsel %vm647, %v2604, %v2606
        %v2629 = vsel %vm647, %v2608, %v2610
        %v2630 = vsel %vm647, %v2612, %v2614
        %v2647 = vadd.f32 %v2401, %v2615
        %v2648 = vadd.f32 %v2402, %v2616
        %v2649 = vadd.f32 %v2403, %v2617
        %v2650 = vadd.f32 %v2404, %v2618
        %v2651 = vadd.f32 %v2405, %v2619
        %v2652 = vadd.f32 %v2406, %v2620
        %v2653 = vadd.f32 %v2407, %v2621
        %v2654 = vadd.f32 %v2408, %v2622
        %v2655 = vadd.f32 %v2409, %v2623
        %v2656 = vadd.f32 %v2410, %v2624
        %v2657 = vadd.f32 %v2411, %v2625
        %v2658 = vadd.f32 %v2412, %v2626
        %v2659 = vadd.f32 %v2413, %v2627
        %v2660 = vadd.f32 %v2414, %v2628
        %v2661 = vadd.f32 %v2415, %v2629
        %v2662 = vadd.f32 %v2416, %v2630
        %v2663 = vmul.f32 %v115, 0.0716541
        %v2664 = vmul.f32 %v116, 0.0716541
        %v2665 = vmul.f32 %v117, 0.0716541
        %v2666 = vmul.f32 %v118, 0.0716541
        %v2667 = vmul.f32 %v119, 0.0716541
        %v2668 = vmul.f32 %v120, 0.0716541
        %v2669 = vmul.f32 %v121, 0.0716541
        %v2670 = vmul.f32 %v122, 0.0716541
        %v2671 = vmul.f32 %v123, 0.0716541
        %v2672 = vmul.f32 %v124, 0.0716541
        %v2673 = vmul.f32 %v125, 0.0716541
        %v2674 = vmul.f32 %v126, 0.0716541
        %v2675 = vmul.f32 %v127, 0.0716541
        %v2676 = vmul.f32 %v128, 0.0716541
        %v2677 = vmul.f32 %v129, 0.0716541
        %v2678 = vmul.f32 %v130, 0.0716541
        %v2679 = vmul.f32 %v131, 0.0716541
        %v2680 = vmul.f32 %v132, 0.0716541
        %v2681 = vmul.f32 %v133, 0.0716541
        %v2682 = vmul.f32 %v134, 0.0716541
        %v2683 = vmul.f32 %v135, 0.0716541
        %v2684 = vmul.f32 %v136, 0.0716541
        %v2685 = vmul.f32 %v137, 0.0716541
        %v2686 = vmul.f32 %v138, 0.0716541
        %v2687 = vmul.f32 %v139, 0.0716541
        %v2688 = vmul.f32 %v140, 0.0716541
        %v2689 = vmul.f32 %v141, 0.0716541
        %v2690 = vmul.f32 %v142, 0.0716541
        %v2691 = vmul.f32 %v143, 0.0716541
        %v2692 = vmul.f32 %v144, 0.0716541
        %v2693 = vmul.f32 %v145, 0.0716541
        %v2694 = vmul.f32 %v146, 0.0716541
        %v2695 = vmul.f32 %v147, 0.0716541
        %v2696 = vmul.f32 %v148, 0.0716541
        %v2731 = vrot.slane %v2663, 2
        %v2732 = vrot.slane %v2665, 2
        %v2733 = vsel %vm1927, %v2731, %v2732
        %v2734 = vrot.slane %v2664, 2
        %v2735 = vrot.slane %v2666, 2
        %v2736 = vsel %vm1927, %v2734, %v2735
        %v2737 = vrot.slane %v2667, 2
        %v2738 = vsel %vm1927, %v2732, %v2737
        %v2739 = vrot.slane %v2668, 2
        %v2740 = vsel %vm1927, %v2735, %v2739
        %v2741 = vrot.slane %v2669, 2
        %v2742 = vsel %vm1927, %v2737, %v2741
        %v2743 = vrot.slane %v2670, 2
        %v2744 = vsel %vm1927, %v2739, %v2743
        %v2745 = vrot.slane %v2671, 2
        %v2746 = vsel %vm1927, %v2741, %v2745
        %v2747 = vrot.slane %v2672, 2
        %v2748 = vsel %vm1927, %v2743, %v2747
        %v2749 = vrot.slane %v2673, 2
        %v2750 = vsel %vm1927, %v2745, %v2749
        %v2751 = vrot.slane %v2674, 2
        %v2752 = vsel %vm1927, %v2747, %v2751
        %v2753 = vrot.slane %v2675, 2
        %v2754 = vsel %vm1927, %v2749, %v2753
        %v2755 = vrot.slane %v2676, 2
        %v2756 = vsel %vm1927, %v2751, %v2755
        %v2757 = vrot.slane %v2677, 2
        %v2758 = vsel %vm1927, %v2753, %v2757
        %v2759 = vrot.slane %v2678, 2
        %v2760 = vsel %vm1927, %v2755, %v2759
        %v2761 = vrot.slane %v2679, 2
        %v2762 = vsel %vm1927, %v2757, %v2761
        %v2763 = vrot.slane %v2680, 2
        %v2764 = vsel %vm1927, %v2759, %v2763
        %v2765 = vrot.slane %v2681, 2
        %v2766 = vsel %vm1927, %v2761, %v2765
        %v2767 = vrot.slane %v2682, 2
        %v2768 = vsel %vm1927, %v2763, %v2767
        %v2769 = vrot.slane %v2683, 2
        %v2770 = vsel %vm1927, %v2765, %v2769
        %v2771 = vrot.slane %v2684, 2
        %v2772 = vsel %vm1927, %v2767, %v2771
        %v2773 = vrot.slane %v2685, 2
        %v2774 = vsel %vm1927, %v2769, %v2773
        %v2775 = vrot.slane %v2686, 2
        %v2776 = vsel %vm1927, %v2771, %v2775
        %v2777 = vrot.slane %v2687, 2
        %v2778 = vsel %vm1927, %v2773, %v2777
        %v2779 = vrot.slane %v2688, 2
        %v2780 = vsel %vm1927, %v2775, %v2779
        %v2781 = vrot.slane %v2689, 2
        %v2782 = vsel %vm1927, %v2777, %v2781
        %v2783 = vrot.slane %v2690, 2
        %v2784 = vsel %vm1927, %v2779, %v2783
        %v2785 = vrot.slane %v2691, 2
        %v2786 = vsel %vm1927, %v2781, %v2785
        %v2787 = vrot.slane %v2692, 2
        %v2788 = vsel %vm1927, %v2783, %v2787
        %v2789 = vrot.slane %v2693, 2
        %v2790 = vsel %vm1927, %v2785, %v2789
        %v2791 = vrot.slane %v2694, 2
        %v2792 = vsel %vm1927, %v2787, %v2791
        %v2793 = vrot.slane %v2695, 2
        %v2794 = vsel %vm1927, %v2789, %v2793
        %v2795 = vrot.slane %v2696, 2
        %v2796 = vsel %vm1927, %v2791, %v2795
        %2797 = vrot.lane.b32.xlu0 %v2733, 124
        %v2798 = vpop.permute.xlu0 %2797
        %2799 = vrot.lane.b32.xlu0 %v2736, 124
        %v2800 = vpop.permute.xlu0 %2799
        %2801 = vrot.lane.b32.xlu0 %v2738, 124
        %v2802 = vpop.permute.xlu0 %2801
        %2803 = vrot.lane.b32.xlu0 %v2740, 124
        %v2804 = vpop.permute.xlu0 %2803
        %2805 = vrot.lane.b32.xlu0 %v2742, 124
        %v2806 = vpop.permute.xlu0 %2805
        %2807 = vrot.lane.b32.xlu0 %v2744, 124
        %v2808 = vpop.permute.xlu0 %2807
        %2809 = vrot.lane.b32.xlu0 %v2746, 124
        %v2810 = vpop.permute.xlu0 %2809
        %2811 = vrot.lane.b32.xlu0 %v2748, 124
        %v2812 = vpop.permute.xlu0 %2811
        %2813 = vrot.lane.b32.xlu0 %v2750, 124
        %v2814 = vpop.permute.xlu0 %2813
        %2815 = vrot.lane.b32.xlu0 %v2752, 124
        %v2816 = vpop.permute.xlu0 %2815
        %2817 = vrot.lane.b32.xlu0 %v2754, 124
        %v2818 = vpop.permute.xlu0 %2817
        %2819 = vrot.lane.b32.xlu0 %v2756, 124
        %v2820 = vpop.permute.xlu0 %2819
        %2821 = vrot.lane.b32.xlu0 %v2758, 124
        %v2822 = vpop.permute.xlu0 %2821
        %2823 = vrot.lane.b32.xlu0 %v2760, 124
        %v2824 = vpop.permute.xlu0 %2823
        %2825 = vrot.lane.b32.xlu0 %v2762, 124
        %v2826 = vpop.permute.xlu0 %2825
        %2827 = vrot.lane.b32.xlu0 %v2764, 124
        %v2828 = vpop.permute.xlu0 %2827
        %2829 = vrot.lane.b32.xlu0 %v2766, 124
        %v2830 = vpop.permute.xlu0 %2829
        %2831 = vrot.lane.b32.xlu0 %v2768, 124
        %v2832 = vpop.permute.xlu0 %2831
        %2833 = vrot.lane.b32.xlu0 %v2770, 124
        %v2834 = vpop.permute.xlu0 %2833
        %2835 = vrot.lane.b32.xlu0 %v2772, 124
        %v2836 = vpop.permute.xlu0 %2835
        %2837 = vrot.lane.b32.xlu0 %v2774, 124
        %v2838 = vpop.permute.xlu0 %2837
        %2839 = vrot.lane.b32.xlu0 %v2776, 124
        %v2840 = vpop.permute.xlu0 %2839
        %2841 = vrot.lane.b32.xlu0 %v2778, 124
        %v2842 = vpop.permute.xlu0 %2841
        %2843 = vrot.lane.b32.xlu0 %v2780, 124
        %v2844 = vpop.permute.xlu0 %2843
        %2845 = vrot.lane.b32.xlu0 %v2782, 124
        %v2846 = vpop.permute.xlu0 %2845
        %2847 = vrot.lane.b32.xlu0 %v2784, 124
        %v2848 = vpop.permute.xlu0 %2847
        %2849 = vrot.lane.b32.xlu0 %v2786, 124
        %v2850 = vpop.permute.xlu0 %2849
        %2851 = vrot.lane.b32.xlu0 %v2788, 124
        %v2852 = vpop.permute.xlu0 %2851
        %2853 = vrot.lane.b32.xlu0 %v2790, 124
        %v2854 = vpop.permute.xlu0 %2853
        %2855 = vrot.lane.b32.xlu0 %v2792, 124
        %v2856 = vpop.permute.xlu0 %2855
        %2857 = vrot.lane.b32.xlu0 %v2794, 124
        %v2858 = vpop.permute.xlu0 %2857
        %2859 = vrot.lane.b32.xlu0 %v2796, 124
        %v2860 = vpop.permute.xlu0 %2859
        %v2861 = vsel %vm824, %v2798, %v2800
        %v2862 = vsel %vm824, %v2802, %v2804
        %v2863 = vsel %vm824, %v2806, %v2808
        %v2864 = vsel %vm824, %v2810, %v2812
        %v2865 = vsel %vm824, %v2814, %v2816
        %v2866 = vsel %vm824, %v2818, %v2820
        %v2867 = vsel %vm824, %v2822, %v2824
        %v2868 = vsel %vm824, %v2826, %v2828
        %v2869 = vsel %vm824, %v2830, %v2832
        %v2870 = vsel %vm824, %v2834, %v2836
        %v2871 = vsel %vm824, %v2838, %v2840
        %v2872 = vsel %vm824, %v2842, %v2844
        %v2873 = vsel %vm824, %v2846, %v2848
        %v2874 = vsel %vm824, %v2850, %v2852
        %v2875 = vsel %vm824, %v2854, %v2856
        %v2876 = vsel %vm824, %v2858, %v2860
        %v2893 = vadd.f32 %v2647, %v2861
        %v2894 = vadd.f32 %v2648, %v2862
        %v2895 = vadd.f32 %v2649, %v2863
        %v2896 = vadd.f32 %v2650, %v2864
        %v2897 = vadd.f32 %v2651, %v2865
        %v2898 = vadd.f32 %v2652, %v2866
        %v2899 = vadd.f32 %v2653, %v2867
        %v2900 = vadd.f32 %v2654, %v2868
        %v2901 = vadd.f32 %v2655, %v2869
        %v2902 = vadd.f32 %v2656, %v2870
        %v2903 = vadd.f32 %v2657, %v2871
        %v2904 = vadd.f32 %v2658, %v2872
        %v2905 = vadd.f32 %v2659, %v2873
        %v2906 = vadd.f32 %v2660, %v2874
        %v2907 = vadd.f32 %v2661, %v2875
        %v2908 = vadd.f32 %v2662, %v2876
        %v2909 = vmul.f32 %v147, 0.0018416876
        %vm2911 = vcmask 1044480
        %v2912 = vrot.slane %v519, 3
        %v2913 = vrot.slane %v521, 3
        %v2914 = vsel %vm2911, %v2912, %v2913
        %v2915 = vrot.slane %v523, 3
        %v2916 = vsel %vm2911, %v2913, %v2915
        %v2917 = vrot.slane %v525, 3
        %v2918 = vsel %vm2911, %v2915, %v2917
        %v2919 = vrot.slane %v527, 3
        %v2920 = vsel %vm2911, %v2917, %v2919
        %v2921 = vrot.slane %v529, 3
        %v2922 = vsel %vm2911, %v2919, %v2921
        %v2923 = vrot.slane %v531, 3
        %v2924 = vsel %vm2911, %v2921, %v2923
        %v2925 = vrot.slane %v533, 3
        %v2926 = vsel %vm2911, %v2923, %v2925
        %v2927 = vrot.slane %v535, 3
        %v2928 = vsel %vm2911, %v2925, %v2927
        %v2929 = vrot.slane %v537, 3
        %v2930 = vsel %vm2911, %v2927, %v2929
        %v2931 = vrot.slane %v539, 3
        %v2932 = vsel %vm2911, %v2929, %v2931
        %v2933 = vrot.slane %v541, 3
        %v2934 = vsel %vm2911, %v2931, %v2933
        %v2935 = vrot.slane %v543, 3
        %v2936 = vsel %vm2911, %v2933, %v2935
        %v2937 = vrot.slane %v545, 3
        %v2938 = vsel %vm2911, %v2935, %v2937
        %v2939 = vrot.slane %v547, 3
        %v2940 = vsel %vm2911, %v2937, %v2939
        %v2941 = vrot.slane %v549, 3
        %v2942 = vsel %vm2911, %v2939, %v2941
        %v2943 = vrot.slane %v2909, 3
        %v2944 = vsel %vm2911, %v2941, %v2943
        %v2961 = vadd.f32 %v2893, %v2914
        %v2962 = vadd.f32 %v2894, %v2916
        %v2963 = vadd.f32 %v2895, %v2918
        %v2964 = vadd.f32 %v2896, %v2920
        %v2965 = vadd.f32 %v2897, %v2922
        %v2966 = vadd.f32 %v2898, %v2924
        %v2967 = vadd.f32 %v2899, %v2926
        %v2968 = vadd.f32 %v2900, %v2928
        %v2969 = vadd.f32 %v2901, %v2930
        %v2970 = vadd.f32 %v2902, %v2932
        %v2971 = vadd.f32 %v2903, %v2934
        %v2972 = vadd.f32 %v2904, %v2936
        %v2973 = vadd.f32 %v2905, %v2938
        %v2974 = vadd.f32 %v2906, %v2940
        %v2975 = vadd.f32 %v2907, %v2942
        %v2976 = vadd.f32 %v2908, %v2944
        %v2977 = vrot.slane %v1433, 3
        %v2978 = vrot.slane %v1435, 3
        %v2979 = vsel %vm2911, %v2977, %v2978
        %v2980 = vrot.slane %v1434, 3
        %v2981 = vrot.slane %v1436, 3
        %v2982 = vsel %vm2911, %v2980, %v2981
        %v2983 = vrot.slane %v1437, 3
        %v2984 = vsel %vm2911, %v2978, %v2983
        %v2985 = vrot.slane %v1438, 3
        %v2986 = vsel %vm2911, %v2981, %v2985
        %v2987 = vrot.slane %v1439, 3
        %v2988 = vsel %vm2911, %v2983, %v2987
        %v2989 = vrot.slane %v1440, 3
        %v2990 = vsel %vm2911, %v2985, %v2989
        %v2991 = vrot.slane %v1441, 3
        %v2992 = vsel %vm2911, %v2987, %v2991
        %v2993 = vrot.slane %v1442, 3
        %v2994 = vsel %vm2911, %v2989, %v2993
        %v2995 = vrot.slane %v1443, 3
        %v2996 = vsel %vm2911, %v2991, %v2995
        %v2997 = vrot.slane %v1444, 3
        %v2998 = vsel %vm2911, %v2993, %v2997
        %v2999 = vrot.slane %v1445, 3
        %v3000 = vsel %vm2911, %v2995, %v2999
        %v3001 = vrot.slane %v1446, 3
        %v3002 = vsel %vm2911, %v2997, %v3001
        %v3003 = vrot.slane %v1447, 3
        %v3004 = vsel %vm2911, %v2999, %v3003
        %v3005 = vrot.slane %v1448, 3
        %v3006 = vsel %vm2911, %v3001, %v3005
        %v3007 = vrot.slane %v1449, 3
        %v3008 = vsel %vm2911, %v3003, %v3007
        %v3009 = vrot.slane %v1450, 3
        %v3010 = vsel %vm2911, %v3005, %v3009
        %v3011 = vrot.slane %v1451, 3
        %v3012 = vsel %vm2911, %v3007, %v3011
        %v3013 = vrot.slane %v1452, 3
        %v3014 = vsel %vm2911, %v3009, %v3013
        %v3015 = vrot.slane %v1453, 3
        %v3016 = vsel %vm2911, %v3011, %v3015
        %v3017 = vrot.slane %v1454, 3
        %v3018 = vsel %vm2911, %v3013, %v3017
        %v3019 = vrot.slane %v1455, 3
        %v3020 = vsel %vm2911, %v3015, %v3019
        %v3021 = vrot.slane %v1456, 3
        %v3022 = vsel %vm2911, %v3017, %v3021
        %v3023 = vrot.slane %v1457, 3
        %v3024 = vsel %vm2911, %v3019, %v3023
        %v3025 = vrot.slane %v1458, 3
        %v3026 = vsel %vm2911, %v3021, %v3025
        %v3027 = vrot.slane %v1459, 3
        %v3028 = vsel %vm2911, %v3023, %v3027
        %v3029 = vrot.slane %v1460, 3
        %v3030 = vsel %vm2911, %v3025, %v3029
        %v3031 = vrot.slane %v1461, 3
        %v3032 = vsel %vm2911, %v3027, %v3031
        %v3033 = vrot.slane %v1462, 3
        %v3034 = vsel %vm2911, %v3029, %v3033
        %v3035 = vrot.slane %v1463, 3
        %v3036 = vsel %vm2911, %v3031, %v3035
        %v3037 = vrot.slane %v1464, 3
        %v3038 = vsel %vm2911, %v3033, %v3037
        %v3039 = vrot.slane %v1465, 3
        %v3040 = vsel %vm2911, %v3035, %v3039
        %v3041 = vrot.slane %v1466, 3
        %v3042 = vsel %vm2911, %v3037, %v3041
        %3043 = vrot.lane.b32.xlu0 %v2979, 127
        %v3044 = vpop.permute.xlu0 %3043
        %3045 = vrot.lane.b32.xlu0 %v2982, 127
        %v3046 = vpop.permute.xlu0 %3045
        %3047 = vrot.lane.b32.xlu0 %v2984, 127
        %v3048 = vpop.permute.xlu0 %3047
        %3049 = vrot.lane.b32.xlu0 %v2986, 127
        %v3050 = vpop.permute.xlu0 %3049
        %3051 = vrot.lane.b32.xlu0 %v2988, 127
        %v3052 = vpop.permute.xlu0 %3051
        %3053 = vrot.lane.b32.xlu0 %v2990, 127
        %v3054 = vpop.permute.xlu0 %3053
        %3055 = vrot.lane.b32.xlu0 %v2992, 127
        %v3056 = vpop.permute.xlu0 %3055
        %3057 = vrot.lane.b32.xlu0 %v2994, 127
        %v3058 = vpop.permute.xlu0 %3057
        %3059 = vrot.lane.b32.xlu0 %v2996, 127
        %v3060 = vpop.permute.xlu0 %3059
        %3061 = vrot.lane.b32.xlu0 %v2998, 127
        %v3062 = vpop.permute.xlu0 %3061
        %3063 = vrot.lane.b32.xlu0 %v3000, 127
        %v3064 = vpop.permute.xlu0 %3063
        %3065 = vrot.lane.b32.xlu0 %v3002, 127
        %v3066 = vpop.permute.xlu0 %3065
        %3067 = vrot.lane.b32.xlu0 %v3004, 127
        %v3068 = vpop.permute.xlu0 %3067
        %3069 = vrot.lane.b32.xlu0 %v3006, 127
        %v3070 = vpop.permute.xlu0 %3069
        %3071 = vrot.lane.b32.xlu0 %v3008, 127
        %v3072 = vpop.permute.xlu0 %3071
        %3073 = vrot.lane.b32.xlu0 %v3010, 127
        %v3074 = vpop.permute.xlu0 %3073
        %3075 = vrot.lane.b32.xlu0 %v3012, 127
        %v3076 = vpop.permute.xlu0 %3075
        %3077 = vrot.lane.b32.xlu0 %v3014, 127
        %v3078 = vpop.permute.xlu0 %3077
        %3079 = vrot.lane.b32.xlu0 %v3016, 127
        %v3080 = vpop.permute.xlu0 %3079
        %3081 = vrot.lane.b32.xlu0 %v3018, 127
        %v3082 = vpop.permute.xlu0 %3081
        %3083 = vrot.lane.b32.xlu0 %v3020, 127
        %v3084 = vpop.permute.xlu0 %3083
        %3085 = vrot.lane.b32.xlu0 %v3022, 127
        %v3086 = vpop.permute.xlu0 %3085
        %3087 = vrot.lane.b32.xlu0 %v3024, 127
        %v3088 = vpop.permute.xlu0 %3087
        %3089 = vrot.lane.b32.xlu0 %v3026, 127
        %v3090 = vpop.permute.xlu0 %3089
        %3091 = vrot.lane.b32.xlu0 %v3028, 127
        %v3092 = vpop.permute.xlu0 %3091
        %3093 = vrot.lane.b32.xlu0 %v3030, 127
        %v3094 = vpop.permute.xlu0 %3093
        %3095 = vrot.lane.b32.xlu0 %v3032, 127
        %v3096 = vpop.permute.xlu0 %3095
        %3097 = vrot.lane.b32.xlu0 %v3034, 127
        %v3098 = vpop.permute.xlu0 %3097
        %3099 = vrot.lane.b32.xlu0 %v3036, 127
        %v3100 = vpop.permute.xlu0 %3099
        %3101 = vrot.lane.b32.xlu0 %v3038, 127
        %v3102 = vpop.permute.xlu0 %3101
        %3103 = vrot.lane.b32.xlu0 %v3040, 127
        %v3104 = vpop.permute.xlu0 %3103
        %3105 = vrot.lane.b32.xlu0 %v3042, 127
        %v3106 = vpop.permute.xlu0 %3105
        %v3107 = vsel %vm293, %v3044, %v3046
        %v3108 = vsel %vm293, %v3048, %v3050
        %v3109 = vsel %vm293, %v3052, %v3054
        %v3110 = vsel %vm293, %v3056, %v3058
        %v3111 = vsel %vm293, %v3060, %v3062
        %v3112 = vsel %vm293, %v3064, %v3066
        %v3113 = vsel %vm293, %v3068, %v3070
        %v3114 = vsel %vm293, %v3072, %v3074
        %v3115 = vsel %vm293, %v3076, %v3078
        %v3116 = vsel %vm293, %v3080, %v3082
        %v3117 = vsel %vm293, %v3084, %v3086
        %v3118 = vsel %vm293, %v3088, %v3090
        %v3119 = vsel %vm293, %v3092, %v3094
        %v3120 = vsel %vm293, %v3096, %v3098
        %v3121 = vsel %vm293, %v3100, %v3102
        %v3122 = vsel %vm293, %v3104, %v3106
        %v3139 = vadd.f32 %v2961, %v3107
        %v3140 = vadd.f32 %v2962, %v3108
        %v3141 = vadd.f32 %v2963, %v3109
        %v3142 = vadd.f32 %v2964, %v3110
        %v3143 = vadd.f32 %v2965, %v3111
        %v3144 = vadd.f32 %v2966, %v3112
        %v3145 = vadd.f32 %v2967, %v3113
        %v3146 = vadd.f32 %v2968, %v3114
        %v3147 = vadd.f32 %v2969, %v3115
        %v3148 = vadd.f32 %v2970, %v3116
        %v3149 = vadd.f32 %v2971, %v3117
        %v3150 = vadd.f32 %v2972, %v3118
        %v3151 = vadd.f32 %v2973, %v3119
        %v3152 = vadd.f32 %v2974, %v3120
        %v3153 = vadd.f32 %v2975, %v3121
        %v3154 = vadd.f32 %v2976, %v3122
        %v3155 = vrot.slane %v2417, 3
        %v3156 = vrot.slane %v2419, 3
        %v3157 = vsel %vm2911, %v3155, %v3156
        %v3158 = vrot.slane %v2418, 3
        %v3159 = vrot.slane %v2420, 3
        %v3160 = vsel %vm2911, %v3158, %v3159
        %v3161 = vrot.slane %v2421, 3
        %v3162 = vsel %vm2911, %v3156, %v3161
        %v3163 = vrot.slane %v2422, 3
        %v3164 = vsel %vm2911, %v3159, %v3163
        %v3165 = vrot.slane %v2423, 3
        %v3166 = vsel %vm2911, %v3161, %v3165
        %v3167 = vrot.slane %v2424, 3
        %v3168 = vsel %vm2911, %v3163, %v3167
        %v3169 = vrot.slane %v2425, 3
        %v3170 = vsel %vm2911, %v3165, %v3169
        %v3171 = vrot.slane %v2426, 3
        %v3172 = vsel %vm2911, %v3167, %v3171
        %v3173 = vrot.slane %v2427, 3
        %v3174 = vsel %vm2911, %v3169, %v3173
        %v3175 = vrot.slane %v2428, 3
        %v3176 = vsel %vm2911, %v3171, %v3175
        %v3177 = vrot.slane %v2429, 3
        %v3178 = vsel %vm2911, %v3173, %v3177
        %v3179 = vrot.slane %v2430, 3
        %v3180 = vsel %vm2911, %v3175, %v3179
        %v3181 = vrot.slane %v2431, 3
        %v3182 = vsel %vm2911, %v3177, %v3181
        %v3183 = vrot.slane %v2432, 3
        %v3184 = vsel %vm2911, %v3179, %v3183
        %v3185 = vrot.slane %v2433, 3
        %v3186 = vsel %vm2911, %v3181, %v3185
        %v3187 = vrot.slane %v2434, 3
        %v3188 = vsel %vm2911, %v3183, %v3187
        %v3189 = vrot.slane %v2435, 3
        %v3190 = vsel %vm2911, %v3185, %v3189
        %v3191 = vrot.slane %v2436, 3
        %v3192 = vsel %vm2911, %v3187, %v3191
        %v3193 = vrot.slane %v2437, 3
        %v3194 = vsel %vm2911, %v3189, %v3193
        %v3195 = vrot.slane %v2438, 3
        %v3196 = vsel %vm2911, %v3191, %v3195
        %v3197 = vrot.slane %v2439, 3
        %v3198 = vsel %vm2911, %v3193, %v3197
        %v3199 = vrot.slane %v2440, 3
        %v3200 = vsel %vm2911, %v3195, %v3199
        %v3201 = vrot.slane %v2441, 3
        %v3202 = vsel %vm2911, %v3197, %v3201
        %v3203 = vrot.slane %v2442, 3
        %v3204 = vsel %vm2911, %v3199, %v3203
        %v3205 = vrot.slane %v2443, 3
        %v3206 = vsel %vm2911, %v3201, %v3205
        %v3207 = vrot.slane %v2444, 3
        %v3208 = vsel %vm2911, %v3203, %v3207
        %v3209 = vrot.slane %v2445, 3
        %v3210 = vsel %vm2911, %v3205, %v3209
        %v3211 = vrot.slane %v2446, 3
        %v3212 = vsel %vm2911, %v3207, %v3211
        %v3213 = vrot.slane %v2447, 3
        %v3214 = vsel %vm2911, %v3209, %v3213
        %v3215 = vrot.slane %v2448, 3
        %v3216 = vsel %vm2911, %v3211, %v3215
        %v3217 = vrot.slane %v2449, 3
        %v3218 = vsel %vm2911, %v3213, %v3217
        %v3219 = vrot.slane %v2450, 3
        %v3220 = vsel %vm2911, %v3215, %v3219
        %3221 = vrot.lane.b32.xlu0 %v3157, 126
        %v3222 = vpop.permute.xlu0 %3221
        %3223 = vrot.lane.b32.xlu0 %v3160, 126
        %v3224 = vpop.permute.xlu0 %3223
        %3225 = vrot.lane.b32.xlu0 %v3162, 126
        %v3226 = vpop.permute.xlu0 %3225
        %3227 = vrot.lane.b32.xlu0 %v3164, 126
        %v3228 = vpop.permute.xlu0 %3227
        %3229 = vrot.lane.b32.xlu0 %v3166, 126
        %v3230 = vpop.permute.xlu0 %3229
        %3231 = vrot.lane.b32.xlu0 %v3168, 126
        %v3232 = vpop.permute.xlu0 %3231
        %3233 = vrot.lane.b32.xlu0 %v3170, 126
        %v3234 = vpop.permute.xlu0 %3233
        %3235 = vrot.lane.b32.xlu0 %v3172, 126
        %v3236 = vpop.permute.xlu0 %3235
        %3237 = vrot.lane.b32.xlu0 %v3174, 126
        %v3238 = vpop.permute.xlu0 %3237
        %3239 = vrot.lane.b32.xlu0 %v3176, 126
        %v3240 = vpop.permute.xlu0 %3239
        %3241 = vrot.lane.b32.xlu0 %v3178, 126
        %v3242 = vpop.permute.xlu0 %3241
        %3243 = vrot.lane.b32.xlu0 %v3180, 126
        %v3244 = vpop.permute.xlu0 %3243
        %3245 = vrot.lane.b32.xlu0 %v3182, 126
        %v3246 = vpop.permute.xlu0 %3245
        %3247 = vrot.lane.b32.xlu0 %v3184, 126
        %v3248 = vpop.permute.xlu0 %3247
        %3249 = vrot.lane.b32.xlu0 %v3186, 126
        %v3250 = vpop.permute.xlu0 %3249
        %3251 = vrot.lane.b32.xlu0 %v3188, 126
        %v3252 = vpop.permute.xlu0 %3251
        %3253 = vrot.lane.b32.xlu0 %v3190, 126
        %v3254 = vpop.permute.xlu0 %3253
        %3255 = vrot.lane.b32.xlu0 %v3192, 126
        %v3256 = vpop.permute.xlu0 %3255
        %3257 = vrot.lane.b32.xlu0 %v3194, 126
        %v3258 = vpop.permute.xlu0 %3257
        %3259 = vrot.lane.b32.xlu0 %v3196, 126
        %v3260 = vpop.permute.xlu0 %3259
        %3261 = vrot.lane.b32.xlu0 %v3198, 126
        %v3262 = vpop.permute.xlu0 %3261
        %3263 = vrot.lane.b32.xlu0 %v3200, 126
        %v3264 = vpop.permute.xlu0 %3263
        %3265 = vrot.lane.b32.xlu0 %v3202, 126
        %v3266 = vpop.permute.xlu0 %3265
        %3267 = vrot.lane.b32.xlu0 %v3204, 126
        %v3268 = vpop.permute.xlu0 %3267
        %3269 = vrot.lane.b32.xlu0 %v3206, 126
        %v3270 = vpop.permute.xlu0 %3269
        %3271 = vrot.lane.b32.xlu0 %v3208, 126
        %v3272 = vpop.permute.xlu0 %3271
        %3273 = vrot.lane.b32.xlu0 %v3210, 126
        %v3274 = vpop.permute.xlu0 %3273
        %3275 = vrot.lane.b32.xlu0 %v3212, 126
        %v3276 = vpop.permute.xlu0 %3275
        %3277 = vrot.lane.b32.xlu0 %v3214, 126
        %v3278 = vpop.permute.xlu0 %3277
        %3279 = vrot.lane.b32.xlu0 %v3216, 126
        %v3280 = vpop.permute.xlu0 %3279
        %3281 = vrot.lane.b32.xlu0 %v3218, 126
        %v3282 = vpop.permute.xlu0 %3281
        %3283 = vrot.lane.b32.xlu0 %v3220, 126
        %v3284 = vpop.permute.xlu0 %3283
        %v3285 = vsel %vm470, %v3222, %v3224
        %v3286 = vsel %vm470, %v3226, %v3228
        %v3287 = vsel %vm470, %v3230, %v3232
        %v3288 = vsel %vm470, %v3234, %v3236
        %v3289 = vsel %vm470, %v3238, %v3240
        %v3290 = vsel %vm470, %v3242, %v3244
        %v3291 = vsel %vm470, %v3246, %v3248
        %v3292 = vsel %vm470, %v3250, %v3252
        %v3293 = vsel %vm470, %v3254, %v3256
        %v3294 = vsel %vm470, %v3258, %v3260
        %v3295 = vsel %vm470, %v3262, %v3264
        %v3296 = vsel %vm470, %v3266, %v3268
        %v3297 = vsel %vm470, %v3270, %v3272
        %v3298 = vsel %vm470, %v3274, %v3276
        %v3299 = vsel %vm470, %v3278, %v3280
        %v3300 = vsel %vm470, %v3282, %v3284
        %v3317 = vadd.f32 %v3139, %v3285
        %v3318 = vadd.f32 %v3140, %v3286
        %v3319 = vadd.f32 %v3141, %v3287
        %v3320 = vadd.f32 %v3142, %v3288
        %v3321 = vadd.f32 %v3143, %v3289
        %v3322 = vadd.f32 %v3144, %v3290
        %v3323 = vadd.f32 %v3145, %v3291
        %v3324 = vadd.f32 %v3146, %v3292
        %v3325 = vadd.f32 %v3147, %v3293
        %v3326 = vadd.f32 %v3148, %v3294
        %v3327 = vadd.f32 %v3149, %v3295
        %v3328 = vadd.f32 %v3150, %v3296
        %v3329 = vadd.f32 %v3151, %v3297
        %v3330 = vadd.f32 %v3152, %v3298
        %v3331 = vadd.f32 %v3153, %v3299
        %v3332 = vadd.f32 %v3154, %v3300
        %v3333 = vmul.f32 %v115, 0.16271167
        %v3334 = vmul.f32 %v116, 0.16271167
        %v3335 = vmul.f32 %v117, 0.16271167
        %v3336 = vmul.f32 %v118, 0.16271167
        %v3337 = vmul.f32 %v119, 0.16271167
        %v3338 = vmul.f32 %v120, 0.16271167
        %v3339 = vmul.f32 %v121, 0.16271167
        %v3340 = vmul.f32 %v122, 0.16271167
        %v3341 = vmul.f32 %v123, 0.16271167
        %v3342 = vmul.f32 %v124, 0.16271167
        %v3343 = vmul.f32 %v125, 0.16271167
        %v3344 = vmul.f32 %v126, 0.16271167
        %v3345 = vmul.f32 %v127, 0.16271167
        %v3346 = vmul.f32 %v128, 0.16271167
        %v3347 = vmul.f32 %v129, 0.16271167
        %v3348 = vmul.f32 %v130, 0.16271167
        %v3349 = vmul.f32 %v131, 0.16271167
        %v3350 = vmul.f32 %v132, 0.16271167
        %v3351 = vmul.f32 %v133, 0.16271167
        %v3352 = vmul.f32 %v134, 0.16271167
        %v3353 = vmul.f32 %v135, 0.16271167
        %v3354 = vmul.f32 %v136, 0.16271167
        %v3355 = vmul.f32 %v137, 0.16271167
        %v3356 = vmul.f32 %v138, 0.16271167
        %v3357 = vmul.f32 %v139, 0.16271167
        %v3358 = vmul.f32 %v140, 0.16271167
        %v3359 = vmul.f32 %v141, 0.16271167
        %v3360 = vmul.f32 %v142, 0.16271167
        %v3361 = vmul.f32 %v143, 0.16271167
        %v3362 = vmul.f32 %v144, 0.16271167
        %v3363 = vmul.f32 %v145, 0.16271167
        %v3364 = vmul.f32 %v146, 0.16271167
        %v3365 = vmul.f32 %v147, 0.16271167
        %v3366 = vmul.f32 %v148, 0.16271167
        %v3401 = vrot.slane %v3333, 3
        %v3402 = vrot.slane %v3335, 3
        %v3403 = vsel %vm2911, %v3401, %v3402
        %v3404 = vrot.slane %v3334, 3
        %v3405 = vrot.slane %v3336, 3
        %v3406 = vsel %vm2911, %v3404, %v3405
        %v3407 = vrot.slane %v3337, 3
        %v3408 = vsel %vm2911, %v3402, %v3407
        %v3409 = vrot.slane %v3338, 3
        %v3410 = vsel %vm2911, %v3405, %v3409
        %v3411 = vrot.slane %v3339, 3
        %v3412 = vsel %vm2911, %v3407, %v3411
        %v3413 = vrot.slane %v3340, 3
        %v3414 = vsel %vm2911, %v3409, %v3413
        %v3415 = vrot.slane %v3341, 3
        %v3416 = vsel %vm2911, %v3411, %v3415
        %v3417 = vrot.slane %v3342, 3
        %v3418 = vsel %vm2911, %v3413, %v3417
        %v3419 = vrot.slane %v3343, 3
        %v3420 = vsel %vm2911, %v3415, %v3419
        %v3421 = vrot.slane %v3344, 3
        %v3422 = vsel %vm2911, %v3417, %v3421
        %v3423 = vrot.slane %v3345, 3
        %v3424 = vsel %vm2911, %v3419, %v3423
        %v3425 = vrot.slane %v3346, 3
        %v3426 = vsel %vm2911, %v3421, %v3425
        %v3427 = vrot.slane %v3347, 3
        %v3428 = vsel %vm2911, %v3423, %v3427
        %v3429 = vrot.slane %v3348, 3
        %v3430 = vsel %vm2911, %v3425, %v3429
        %v3431 = vrot.slane %v3349, 3
        %v3432 = vsel %vm2911, %v3427, %v3431
        %v3433 = vrot.slane %v3350, 3
        %v3434 = vsel %vm2911, %v3429, %v3433
        %v3435 = vrot.slane %v3351, 3
        %v3436 = vsel %vm2911, %v3431, %v3435
        %v3437 = vrot.slane %v3352, 3
        %v3438 = vsel %vm2911, %v3433, %v3437
        %v3439 = vrot.slane %v3353, 3
        %v3440 = vsel %vm2911, %v3435, %v3439
        %v3441 = vrot.slane %v3354, 3
        %v3442 = vsel %vm2911, %v3437, %v3441
        %v3443 = vrot.slane %v3355, 3
        %v3444 = vsel %vm2911, %v3439, %v3443
        %v3445 = vrot.slane %v3356, 3
        %v3446 = vsel %vm2911, %v3441, %v3445
        %v3447 = vrot.slane %v3357, 3
        %v3448 = vsel %vm2911, %v3443, %v3447
        %v3449 = vrot.slane %v3358, 3
        %v3450 = vsel %vm2911, %v3445, %v3449
        %v3451 = vrot.slane %v3359, 3
        %v3452 = vsel %vm2911, %v3447, %v3451
        %v3453 = vrot.slane %v3360, 3
        %v3454 = vsel %vm2911, %v3449, %v3453
        %v3455 = vrot.slane %v3361, 3
        %v3456 = vsel %vm2911, %v3451, %v3455
        %v3457 = vrot.slane %v3362, 3
        %v3458 = vsel %vm2911, %v3453, %v3457
        %v3459 = vrot.slane %v3363, 3
        %v3460 = vsel %vm2911, %v3455, %v3459
        %v3461 = vrot.slane %v3364, 3
        %v3462 = vsel %vm2911, %v3457, %v3461
        %v3463 = vrot.slane %v3365, 3
        %v3464 = vsel %vm2911, %v3459, %v3463
        %v3465 = vrot.slane %v3366, 3
        %v3466 = vsel %vm2911, %v3461, %v3465
        %3467 = vrot.lane.b32.xlu0 %v3403, 125
        %v3468 = vpop.permute.xlu0 %3467
        %3469 = vrot.lane.b32.xlu0 %v3406, 125
        %v3470 = vpop.permute.xlu0 %3469
        %3471 = vrot.lane.b32.xlu0 %v3408, 125
        %v3472 = vpop.permute.xlu0 %3471
        %3473 = vrot.lane.b32.xlu0 %v3410, 125
        %v3474 = vpop.permute.xlu0 %3473
        %3475 = vrot.lane.b32.xlu0 %v3412, 125
        %v3476 = vpop.permute.xlu0 %3475
        %3477 = vrot.lane.b32.xlu0 %v3414, 125
        %v3478 = vpop.permute.xlu0 %3477
        %3479 = vrot.lane.b32.xlu0 %v3416, 125
        %v3480 = vpop.permute.xlu0 %3479
        %3481 = vrot.lane.b32.xlu0 %v3418, 125
        %v3482 = vpop.permute.xlu0 %3481
        %3483 = vrot.lane.b32.xlu0 %v3420, 125
        %v3484 = vpop.permute.xlu0 %3483
        %3485 = vrot.lane.b32.xlu0 %v3422, 125
        %v3486 = vpop.permute.xlu0 %3485
        %3487 = vrot.lane.b32.xlu0 %v3424, 125
        %v3488 = vpop.permute.xlu0 %3487
        %3489 = vrot.lane.b32.xlu0 %v3426, 125
        %v3490 = vpop.permute.xlu0 %3489
        %3491 = vrot.lane.b32.xlu0 %v3428, 125
        %v3492 = vpop.permute.xlu0 %3491
        %3493 = vrot.lane.b32.xlu0 %v3430, 125
        %v3494 = vpop.permute.xlu0 %3493
        %3495 = vrot.lane.b32.xlu0 %v3432, 125
        %v3496 = vpop.permute.xlu0 %3495
        %3497 = vrot.lane.b32.xlu0 %v3434, 125
        %v3498 = vpop.permute.xlu0 %3497
        %3499 = vrot.lane.b32.xlu0 %v3436, 125
        %v3500 = vpop.permute.xlu0 %3499
        %3501 = vrot.lane.b32.xlu0 %v3438, 125
        %v3502 = vpop.permute.xlu0 %3501
        %3503 = vrot.lane.b32.xlu0 %v3440, 125
        %v3504 = vpop.permute.xlu0 %3503
        %3505 = vrot.lane.b32.xlu0 %v3442, 125
        %v3506 = vpop.permute.xlu0 %3505
        %3507 = vrot.lane.b32.xlu0 %v3444, 125
        %v3508 = vpop.permute.xlu0 %3507
        %3509 = vrot.lane.b32.xlu0 %v3446, 125
        %v3510 = vpop.permute.xlu0 %3509
        %3511 = vrot.lane.b32.xlu0 %v3448, 125
        %v3512 = vpop.permute.xlu0 %3511
        %3513 = vrot.lane.b32.xlu0 %v3450, 125
        %v3514 = vpop.permute.xlu0 %3513
        %3515 = vrot.lane.b32.xlu0 %v3452, 125
        %v3516 = vpop.permute.xlu0 %3515
        %3517 = vrot.lane.b32.xlu0 %v3454, 125
        %v3518 = vpop.permute.xlu0 %3517
        %3519 = vrot.lane.b32.xlu0 %v3456, 125
        %v3520 = vpop.permute.xlu0 %3519
        %3521 = vrot.lane.b32.xlu0 %v3458, 125
        %v3522 = vpop.permute.xlu0 %3521
        %3523 = vrot.lane.b32.xlu0 %v3460, 125
        %v3524 = vpop.permute.xlu0 %3523
        %3525 = vrot.lane.b32.xlu0 %v3462, 125
        %v3526 = vpop.permute.xlu0 %3525
        %3527 = vrot.lane.b32.xlu0 %v3464, 125
        %v3528 = vpop.permute.xlu0 %3527
        %3529 = vrot.lane.b32.xlu0 %v3466, 125
        %v3530 = vpop.permute.xlu0 %3529
        %v3531 = vsel %vm647, %v3468, %v3470
        %v3532 = vsel %vm647, %v3472, %v3474
        %v3533 = vsel %vm647, %v3476, %v3478
        %v3534 = vsel %vm647, %v3480, %v3482
        %v3535 = vsel %vm647, %v3484, %v3486
        %v3536 = vsel %vm647, %v3488, %v3490
        %v3537 = vsel %vm647, %v3492, %v3494
        %v3538 = vsel %vm647, %v3496, %v3498
        %v3539 = vsel %vm647, %v3500, %v3502
        %v3540 = vsel %vm647, %v3504, %v3506
        %v3541 = vsel %vm647, %v3508, %v3510
        %v3542 = vsel %vm647, %v3512, %v3514
        %v3543 = vsel %vm647, %v3516, %v3518
        %v3544 = vsel %vm647, %v3520, %v3522
        %v3545 = vsel %vm647, %v3524, %v3526
        %v3546 = vsel %vm647, %v3528, %v3530
        %v3563 = vadd.f32 %v3317, %v3531
        %v3564 = vadd.f32 %v3318, %v3532
        %v3565 = vadd.f32 %v3319, %v3533
        %v3566 = vadd.f32 %v3320, %v3534
        %v3567 = vadd.f32 %v3321, %v3535
        %v3568 = vadd.f32 %v3322, %v3536
        %v3569 = vadd.f32 %v3323, %v3537
        %v3570 = vadd.f32 %v3324, %v3538
        %v3571 = vadd.f32 %v3325, %v3539
        %v3572 = vadd.f32 %v3326, %v3540
        %v3573 = vadd.f32 %v3327, %v3541
        %v3574 = vadd.f32 %v3328, %v3542
        %v3575 = vadd.f32 %v3329, %v3543
        %v3576 = vadd.f32 %v3330, %v3544
        %v3577 = vadd.f32 %v3331, %v3545
        %v3578 = vadd.f32 %v3332, %v3546
        %v3579 = vmul.f32 %v115, 0.119384
        %v3580 = vmul.f32 %v116, 0.119384
        %v3581 = vmul.f32 %v117, 0.119384
        %v3582 = vmul.f32 %v118, 0.119384
        %v3583 = vmul.f32 %v119, 0.119384
        %v3584 = vmul.f32 %v120, 0.119384
        %v3585 = vmul.f32 %v121, 0.119384
        %v3586 = vmul.f32 %v122, 0.119384
        %v3587 = vmul.f32 %v123, 0.119384
        %v3588 = vmul.f32 %v124, 0.119384
        %v3589 = vmul.f32 %v125, 0.119384
        %v3590 = vmul.f32 %v126, 0.119384
        %v3591 = vmul.f32 %v127, 0.119384
        %v3592 = vmul.f32 %v128, 0.119384
        %v3593 = vmul.f32 %v129, 0.119384
        %v3594 = vmul.f32 %v130, 0.119384
        %v3595 = vmul.f32 %v131, 0.119384
        %v3596 = vmul.f32 %v132, 0.119384
        %v3597 = vmul.f32 %v133, 0.119384
        %v3598 = vmul.f32 %v134, 0.119384
        %v3599 = vmul.f32 %v135, 0.119384
        %v3600 = vmul.f32 %v136, 0.119384
        %v3601 = vmul.f32 %v137, 0.119384
        %v3602 = vmul.f32 %v138, 0.119384
        %v3603 = vmul.f32 %v139, 0.119384
        %v3604 = vmul.f32 %v140, 0.119384
        %v3605 = vmul.f32 %v141, 0.119384
        %v3606 = vmul.f32 %v142, 0.119384
        %v3607 = vmul.f32 %v143, 0.119384
        %v3608 = vmul.f32 %v144, 0.119384
        %v3609 = vmul.f32 %v145, 0.119384
        %v3610 = vmul.f32 %v146, 0.119384
        %v3611 = vmul.f32 %v147, 0.119384
        %v3612 = vmul.f32 %v148, 0.119384
        %v3647 = vrot.slane %v3579, 3
        %v3648 = vrot.slane %v3581, 3
        %v3649 = vsel %vm2911, %v3647, %v3648
        %v3650 = vrot.slane %v3580, 3
        %v3651 = vrot.slane %v3582, 3
        %v3652 = vsel %vm2911, %v3650, %v3651
        %v3653 = vrot.slane %v3583, 3
        %v3654 = vsel %vm2911, %v3648, %v3653
        %v3655 = vrot.slane %v3584, 3
        %v3656 = vsel %vm2911, %v3651, %v3655
        %v3657 = vrot.slane %v3585, 3
        %v3658 = vsel %vm2911, %v3653, %v3657
        %v3659 = vrot.slane %v3586, 3
        %v3660 = vsel %vm2911, %v3655, %v3659
        %v3661 = vrot.slane %v3587, 3
        %v3662 = vsel %vm2911, %v3657, %v3661
        %v3663 = vrot.slane %v3588, 3
        %v3664 = vsel %vm2911, %v3659, %v3663
        %v3665 = vrot.slane %v3589, 3
        %v3666 = vsel %vm2911, %v3661, %v3665
        %v3667 = vrot.slane %v3590, 3
        %v3668 = vsel %vm2911, %v3663, %v3667
        %v3669 = vrot.slane %v3591, 3
        %v3670 = vsel %vm2911, %v3665, %v3669
        %v3671 = vrot.slane %v3592, 3
        %v3672 = vsel %vm2911, %v3667, %v3671
        %v3673 = vrot.slane %v3593, 3
        %v3674 = vsel %vm2911, %v3669, %v3673
        %v3675 = vrot.slane %v3594, 3
        %v3676 = vsel %vm2911, %v3671, %v3675
        %v3677 = vrot.slane %v3595, 3
        %v3678 = vsel %vm2911, %v3673, %v3677
        %v3679 = vrot.slane %v3596, 3
        %v3680 = vsel %vm2911, %v3675, %v3679
        %v3681 = vrot.slane %v3597, 3
        %v3682 = vsel %vm2911, %v3677, %v3681
        %v3683 = vrot.slane %v3598, 3
        %v3684 = vsel %vm2911, %v3679, %v3683
        %v3685 = vrot.slane %v3599, 3
        %v3686 = vsel %vm2911, %v3681, %v3685
        %v3687 = vrot.slane %v3600, 3
        %v3688 = vsel %vm2911, %v3683, %v3687
        %v3689 = vrot.slane %v3601, 3
        %v3690 = vsel %vm2911, %v3685, %v3689
        %v3691 = vrot.slane %v3602, 3
        %v3692 = vsel %vm2911, %v3687, %v3691
        %v3693 = vrot.slane %v3603, 3
        %v3694 = vsel %vm2911, %v3689, %v3693
        %v3695 = vrot.slane %v3604, 3
        %v3696 = vsel %vm2911, %v3691, %v3695
        %v3697 = vrot.slane %v3605, 3
        %v3698 = vsel %vm2911, %v3693, %v3697
        %v3699 = vrot.slane %v3606, 3
        %v3700 = vsel %vm2911, %v3695, %v3699
        %v3701 = vrot.slane %v3607, 3
        %v3702 = vsel %vm2911, %v3697, %v3701
        %v3703 = vrot.slane %v3608, 3
        %v3704 = vsel %vm2911, %v3699, %v3703
        %v3705 = vrot.slane %v3609, 3
        %v3706 = vsel %vm2911, %v3701, %v3705
        %v3707 = vrot.slane %v3610, 3
        %v3708 = vsel %vm2911, %v3703, %v3707
        %v3709 = vrot.slane %v3611, 3
        %v3710 = vsel %vm2911, %v3705, %v3709
        %v3711 = vrot.slane %v3612, 3
        %v3712 = vsel %vm2911, %v3707, %v3711
        %3713 = vrot.lane.b32.xlu0 %v3649, 124
        %v3714 = vpop.permute.xlu0 %3713
        %3715 = vrot.lane.b32.xlu0 %v3652, 124
        %v3716 = vpop.permute.xlu0 %3715
        %3717 = vrot.lane.b32.xlu0 %v3654, 124
        %v3718 = vpop.permute.xlu0 %3717
        %3719 = vrot.lane.b32.xlu0 %v3656, 124
        %v3720 = vpop.permute.xlu0 %3719
        %3721 = vrot.lane.b32.xlu0 %v3658, 124
        %v3722 = vpop.permute.xlu0 %3721
        %3723 = vrot.lane.b32.xlu0 %v3660, 124
        %v3724 = vpop.permute.xlu0 %3723
        %3725 = vrot.lane.b32.xlu0 %v3662, 124
        %v3726 = vpop.permute.xlu0 %3725
        %3727 = vrot.lane.b32.xlu0 %v3664, 124
        %v3728 = vpop.permute.xlu0 %3727
        %3729 = vrot.lane.b32.xlu0 %v3666, 124
        %v3730 = vpop.permute.xlu0 %3729
        %3731 = vrot.lane.b32.xlu0 %v3668, 124
        %v3732 = vpop.permute.xlu0 %3731
        %3733 = vrot.lane.b32.xlu0 %v3670, 124
        %v3734 = vpop.permute.xlu0 %3733
        %3735 = vrot.lane.b32.xlu0 %v3672, 124
        %v3736 = vpop.permute.xlu0 %3735
        %3737 = vrot.lane.b32.xlu0 %v3674, 124
        %v3738 = vpop.permute.xlu0 %3737
        %3739 = vrot.lane.b32.xlu0 %v3676, 124
        %v3740 = vpop.permute.xlu0 %3739
        %3741 = vrot.lane.b32.xlu0 %v3678, 124
        %v3742 = vpop.permute.xlu0 %3741
        %3743 = vrot.lane.b32.xlu0 %v3680, 124
        %v3744 = vpop.permute.xlu0 %3743
        %3745 = vrot.lane.b32.xlu0 %v3682, 124
        %v3746 = vpop.permute.xlu0 %3745
        %3747 = vrot.lane.b32.xlu0 %v3684, 124
        %v3748 = vpop.permute.xlu0 %3747
        %3749 = vrot.lane.b32.xlu0 %v3686, 124
        %v3750 = vpop.permute.xlu0 %3749
        %3751 = vrot.lane.b32.xlu0 %v3688, 124
        %v3752 = vpop.permute.xlu0 %3751
        %3753 = vrot.lane.b32.xlu0 %v3690, 124
        %v3754 = vpop.permute.xlu0 %3753
        %3755 = vrot.lane.b32.xlu0 %v3692, 124
        %v3756 = vpop.permute.xlu0 %3755
        %3757 = vrot.lane.b32.xlu0 %v3694, 124
        %v3758 = vpop.permute.xlu0 %3757
        %3759 = vrot.lane.b32.xlu0 %v3696, 124
        %v3760 = vpop.permute.xlu0 %3759
        %3761 = vrot.lane.b32.xlu0 %v3698, 124
        %v3762 = vpop.permute.xlu0 %3761
        %3763 = vrot.lane.b32.xlu0 %v3700, 124
        %v3764 = vpop.permute.xlu0 %3763
        %3765 = vrot.lane.b32.xlu0 %v3702, 124
        %v3766 = vpop.permute.xlu0 %3765
        %3767 = vrot.lane.b32.xlu0 %v3704, 124
        %v3768 = vpop.permute.xlu0 %3767
        %3769 = vrot.lane.b32.xlu0 %v3706, 124
        %v3770 = vpop.permute.xlu0 %3769
        %3771 = vrot.lane.b32.xlu0 %v3708, 124
        %v3772 = vpop.permute.xlu0 %3771
        %3773 = vrot.lane.b32.xlu0 %v3710, 124
        %v3774 = vpop.permute.xlu0 %3773
        %3775 = vrot.lane.b32.xlu0 %v3712, 124
        %v3776 = vpop.permute.xlu0 %3775
        %v3777 = vsel %vm824, %v3714, %v3716
        %v3778 = vsel %vm824, %v3718, %v3720
        %v3779 = vsel %vm824, %v3722, %v3724
        %v3780 = vsel %vm824, %v3726, %v3728
        %v3781 = vsel %vm824, %v3730, %v3732
        %v3782 = vsel %vm824, %v3734, %v3736
        %v3783 = vsel %vm824, %v3738, %v3740
        %v3784 = vsel %vm824, %v3742, %v3744
        %v3785 = vsel %vm824, %v3746, %v3748
        %v3786 = vsel %vm824, %v3750, %v3752
        %v3787 = vsel %vm824, %v3754, %v3756
        %v3788 = vsel %vm824, %v3758, %v3760
        %v3789 = vsel %vm824, %v3762, %v3764
        %v3790 = vsel %vm824, %v3766, %v3768
        %v3791 = vsel %vm824, %v3770, %v3772
        %v3792 = vsel %vm824, %v3774, %v3776
        %v3809 = vadd.f32 %v3563, %v3777
        %v3810 = vadd.f32 %v3564, %v3778
        %v3811 = vadd.f32 %v3565, %v3779
        %v3812 = vadd.f32 %v3566, %v3780
        %v3813 = vadd.f32 %v3567, %v3781
        %v3814 = vadd.f32 %v3568, %v3782
        %v3815 = vadd.f32 %v3569, %v3783
        %v3816 = vadd.f32 %v3570, %v3784
        %v3817 = vadd.f32 %v3571, %v3785
        %v3818 = vadd.f32 %v3572, %v3786
        %v3819 = vadd.f32 %v3573, %v3787
        %v3820 = vadd.f32 %v3574, %v3788
        %v3821 = vadd.f32 %v3575, %v3789
        %v3822 = vadd.f32 %v3576, %v3790
        %v3823 = vadd.f32 %v3577, %v3791
        %v3824 = vadd.f32 %v3578, %v3792
        %v3825 = vmul.f32 %v147, 0.001351274
        %vm3827 = vcmask 1043456
        %v3828 = vrot.slane %v696, 4
        %v3829 = vrot.slane %v698, 4
        %v3830 = vsel %vm3827, %v3828, %v3829
        %v3831 = vrot.slane %v700, 4
        %v3832 = vsel %vm3827, %v3829, %v3831
        %v3833 = vrot.slane %v702, 4
        %v3834 = vsel %vm3827, %v3831, %v3833
        %v3835 = vrot.slane %v704, 4
        %v3836 = vsel %vm3827, %v3833, %v3835
        %v3837 = vrot.slane %v706, 4
        %v3838 = vsel %vm3827, %v3835, %v3837
        %v3839 = vrot.slane %v708, 4
        %v3840 = vsel %vm3827, %v3837, %v3839
        %v3841 = vrot.slane %v710, 4
        %v3842 = vsel %vm3827, %v3839, %v3841
        %v3843 = vrot.slane %v712, 4
        %v3844 = vsel %vm3827, %v3841, %v3843
        %v3845 = vrot.slane %v714, 4
        %v3846 = vsel %vm3827, %v3843, %v3845
        %v3847 = vrot.slane %v716, 4
        %v3848 = vsel %vm3827, %v3845, %v3847
        %v3849 = vrot.slane %v718, 4
        %v3850 = vsel %vm3827, %v3847, %v3849
        %v3851 = vrot.slane %v720, 4
        %v3852 = vsel %vm3827, %v3849, %v3851
        %v3853 = vrot.slane %v722, 4
        %v3854 = vsel %vm3827, %v3851, %v3853
        %v3855 = vrot.slane %v724, 4
        %v3856 = vsel %vm3827, %v3853, %v3855
        %v3857 = vrot.slane %v726, 4
        %v3858 = vsel %vm3827, %v3855, %v3857
        %v3859 = vrot.slane %v3825, 4
        %v3860 = vsel %vm3827, %v3857, %v3859
        %v3877 = vadd.f32 %v3809, %v3830
        %v3878 = vadd.f32 %v3810, %v3832
        %v3879 = vadd.f32 %v3811, %v3834
        %v3880 = vadd.f32 %v3812, %v3836
        %v3881 = vadd.f32 %v3813, %v3838
        %v3882 = vadd.f32 %v3814, %v3840
        %v3883 = vadd.f32 %v3815, %v3842
        %v3884 = vadd.f32 %v3816, %v3844
        %v3885 = vadd.f32 %v3817, %v3846
        %v3886 = vadd.f32 %v3818, %v3848
        %v3887 = vadd.f32 %v3819, %v3850
        %v3888 = vadd.f32 %v3820, %v3852
        %v3889 = vadd.f32 %v3821, %v3854
        %v3890 = vadd.f32 %v3822, %v3856
        %v3891 = vadd.f32 %v3823, %v3858
        %v3892 = vadd.f32 %v3824, %v3860
        %v3893 = vrot.slane %v1679, 4
        %v3894 = vrot.slane %v1681, 4
        %v3895 = vsel %vm3827, %v3893, %v3894
        %v3896 = vrot.slane %v1680, 4
        %v3897 = vrot.slane %v1682, 4
        %v3898 = vsel %vm3827, %v3896, %v3897
        %v3899 = vrot.slane %v1683, 4
        %v3900 = vsel %vm3827, %v3894, %v3899
        %v3901 = vrot.slane %v1684, 4
        %v3902 = vsel %vm3827, %v3897, %v3901
        %v3903 = vrot.slane %v1685, 4
        %v3904 = vsel %vm3827, %v3899, %v3903
        %v3905 = vrot.slane %v1686, 4
        %v3906 = vsel %vm3827, %v3901, %v3905
        %v3907 = vrot.slane %v1687, 4
        %v3908 = vsel %vm3827, %v3903, %v3907
        %v3909 = vrot.slane %v1688, 4
        %v3910 = vsel %vm3827, %v3905, %v3909
        %v3911 = vrot.slane %v1689, 4
        %v3912 = vsel %vm3827, %v3907, %v3911
        %v3913 = vrot.slane %v1690, 4
        %v3914 = vsel %vm3827, %v3909, %v3913
        %v3915 = vrot.slane %v1691, 4
        %v3916 = vsel %vm3827, %v3911, %v3915
        %v3917 = vrot.slane %v1692, 4
        %v3918 = vsel %vm3827, %v3913, %v3917
        %v3919 = vrot.slane %v1693, 4
        %v3920 = vsel %vm3827, %v3915, %v3919
        %v3921 = vrot.slane %v1694, 4
        %v3922 = vsel %vm3827, %v3917, %v3921
        %v3923 = vrot.slane %v1695, 4
        %v3924 = vsel %vm3827, %v3919, %v3923
        %v3925 = vrot.slane %v1696, 4
        %v3926 = vsel %vm3827, %v3921, %v3925
        %v3927 = vrot.slane %v1697, 4
        %v3928 = vsel %vm3827, %v3923, %v3927
        %v3929 = vrot.slane %v1698, 4
        %v3930 = vsel %vm3827, %v3925, %v3929
        %v3931 = vrot.slane %v1699, 4
        %v3932 = vsel %vm3827, %v3927, %v3931
        %v3933 = vrot.slane %v1700, 4
        %v3934 = vsel %vm3827, %v3929, %v3933
        %v3935 = vrot.slane %v1701, 4
        %v3936 = vsel %vm3827, %v3931, %v3935
        %v3937 = vrot.slane %v1702, 4
        %v3938 = vsel %vm3827, %v3933, %v3937
        %v3939 = vrot.slane %v1703, 4
        %v3940 = vsel %vm3827, %v3935, %v3939
        %v3941 = vrot.slane %v1704, 4
        %v3942 = vsel %vm3827, %v3937, %v3941
        %v3943 = vrot.slane %v1705, 4
        %v3944 = vsel %vm3827, %v3939, %v3943
        %v3945 = vrot.slane %v1706, 4
        %v3946 = vsel %vm3827, %v3941, %v3945
        %v3947 = vrot.slane %v1707, 4
        %v3948 = vsel %vm3827, %v3943, %v3947
        %v3949 = vrot.slane %v1708, 4
        %v3950 = vsel %vm3827, %v3945, %v3949
        %v3951 = vrot.slane %v1709, 4
        %v3952 = vsel %vm3827, %v3947, %v3951
        %v3953 = vrot.slane %v1710, 4
        %v3954 = vsel %vm3827, %v3949, %v3953
        %v3955 = vrot.slane %v1711, 4
        %v3956 = vsel %vm3827, %v3951, %v3955
        %v3957 = vrot.slane %v1712, 4
        %v3958 = vsel %vm3827, %v3953, %v3957
        %3959 = vrot.lane.b32.xlu0 %v3895, 127
        %v3960 = vpop.permute.xlu0 %3959
        %3961 = vrot.lane.b32.xlu0 %v3898, 127
        %v3962 = vpop.permute.xlu0 %3961
        %3963 = vrot.lane.b32.xlu0 %v3900, 127
        %v3964 = vpop.permute.xlu0 %3963
        %3965 = vrot.lane.b32.xlu0 %v3902, 127
        %v3966 = vpop.permute.xlu0 %3965
        %3967 = vrot.lane.b32.xlu0 %v3904, 127
        %v3968 = vpop.permute.xlu0 %3967
        %3969 = vrot.lane.b32.xlu0 %v3906, 127
        %v3970 = vpop.permute.xlu0 %3969
        %3971 = vrot.lane.b32.xlu0 %v3908, 127
        %v3972 = vpop.permute.xlu0 %3971
        %3973 = vrot.lane.b32.xlu0 %v3910, 127
        %v3974 = vpop.permute.xlu0 %3973
        %3975 = vrot.lane.b32.xlu0 %v3912, 127
        %v3976 = vpop.permute.xlu0 %3975
        %3977 = vrot.lane.b32.xlu0 %v3914, 127
        %v3978 = vpop.permute.xlu0 %3977
        %3979 = vrot.lane.b32.xlu0 %v3916, 127
        %v3980 = vpop.permute.xlu0 %3979
        %3981 = vrot.lane.b32.xlu0 %v3918, 127
        %v3982 = vpop.permute.xlu0 %3981
        %3983 = vrot.lane.b32.xlu0 %v3920, 127
        %v3984 = vpop.permute.xlu0 %3983
        %3985 = vrot.lane.b32.xlu0 %v3922, 127
        %v3986 = vpop.permute.xlu0 %3985
        %3987 = vrot.lane.b32.xlu0 %v3924, 127
        %v3988 = vpop.permute.xlu0 %3987
        %3989 = vrot.lane.b32.xlu0 %v3926, 127
        %v3990 = vpop.permute.xlu0 %3989
        %3991 = vrot.lane.b32.xlu0 %v3928, 127
        %v3992 = vpop.permute.xlu0 %3991
        %3993 = vrot.lane.b32.xlu0 %v3930, 127
        %v3994 = vpop.permute.xlu0 %3993
        %3995 = vrot.lane.b32.xlu0 %v3932, 127
        %v3996 = vpop.permute.xlu0 %3995
        %3997 = vrot.lane.b32.xlu0 %v3934, 127
        %v3998 = vpop.permute.xlu0 %3997
        %3999 = vrot.lane.b32.xlu0 %v3936, 127
        %v4000 = vpop.permute.xlu0 %3999
        %4001 = vrot.lane.b32.xlu0 %v3938, 127
        %v4002 = vpop.permute.xlu0 %4001
        %4003 = vrot.lane.b32.xlu0 %v3940, 127
        %v4004 = vpop.permute.xlu0 %4003
        %4005 = vrot.lane.b32.xlu0 %v3942, 127
        %v4006 = vpop.permute.xlu0 %4005
        %4007 = vrot.lane.b32.xlu0 %v3944, 127
        %v4008 = vpop.permute.xlu0 %4007
        %4009 = vrot.lane.b32.xlu0 %v3946, 127
        %v4010 = vpop.permute.xlu0 %4009
        %4011 = vrot.lane.b32.xlu0 %v3948, 127
        %v4012 = vpop.permute.xlu0 %4011
        %4013 = vrot.lane.b32.xlu0 %v3950, 127
        %v4014 = vpop.permute.xlu0 %4013
        %4015 = vrot.lane.b32.xlu0 %v3952, 127
        %v4016 = vpop.permute.xlu0 %4015
        %4017 = vrot.lane.b32.xlu0 %v3954, 127
        %v4018 = vpop.permute.xlu0 %4017
        %4019 = vrot.lane.b32.xlu0 %v3956, 127
        %v4020 = vpop.permute.xlu0 %4019
        %4021 = vrot.lane.b32.xlu0 %v3958, 127
        %v4022 = vpop.permute.xlu0 %4021
        %v4023 = vsel %vm293, %v3960, %v3962
        %v4024 = vsel %vm293, %v3964, %v3966
        %v4025 = vsel %vm293, %v3968, %v3970
        %v4026 = vsel %vm293, %v3972, %v3974
        %v4027 = vsel %vm293, %v3976, %v3978
        %v4028 = vsel %vm293, %v3980, %v3982
        %v4029 = vsel %vm293, %v3984, %v3986
        %v4030 = vsel %vm293, %v3988, %v3990
        %v4031 = vsel %vm293, %v3992, %v3994
        %v4032 = vsel %vm293, %v3996, %v3998
        %v4033 = vsel %vm293, %v4000, %v4002
        %v4034 = vsel %vm293, %v4004, %v4006
        %v4035 = vsel %vm293, %v4008, %v4010
        %v4036 = vsel %vm293, %v4012, %v4014
        %v4037 = vsel %vm293, %v4016, %v4018
        %v4038 = vsel %vm293, %v4020, %v4022
        %v4055 = vadd.f32 %v3877, %v4023
        %v4056 = vadd.f32 %v3878, %v4024
        %v4057 = vadd.f32 %v3879, %v4025
        %v4058 = vadd.f32 %v3880, %v4026
        %v4059 = vadd.f32 %v3881, %v4027
        %v4060 = vadd.f32 %v3882, %v4028
        %v4061 = vadd.f32 %v3883, %v4029
        %v4062 = vadd.f32 %v3884, %v4030
        %v4063 = vadd.f32 %v3885, %v4031
        %v4064 = vadd.f32 %v3886, %v4032
        %v4065 = vadd.f32 %v3887, %v4033
        %v4066 = vadd.f32 %v3888, %v4034
        %v4067 = vadd.f32 %v3889, %v4035
        %v4068 = vadd.f32 %v3890, %v4036
        %v4069 = vadd.f32 %v3891, %v4037
        %v4070 = vadd.f32 %v3892, %v4038
        %v4071 = vrot.slane %v2663, 4
        %v4072 = vrot.slane %v2665, 4
        %v4073 = vsel %vm3827, %v4071, %v4072
        %v4074 = vrot.slane %v2664, 4
        %v4075 = vrot.slane %v2666, 4
        %v4076 = vsel %vm3827, %v4074, %v4075
        %v4077 = vrot.slane %v2667, 4
        %v4078 = vsel %vm3827, %v4072, %v4077
        %v4079 = vrot.slane %v2668, 4
        %v4080 = vsel %vm3827, %v4075, %v4079
        %v4081 = vrot.slane %v2669, 4
        %v4082 = vsel %vm3827, %v4077, %v4081
        %v4083 = vrot.slane %v2670, 4
        %v4084 = vsel %vm3827, %v4079, %v4083
        %v4085 = vrot.slane %v2671, 4
        %v4086 = vsel %vm3827, %v4081, %v4085
        %v4087 = vrot.slane %v2672, 4
        %v4088 = vsel %vm3827, %v4083, %v4087
        %v4089 = vrot.slane %v2673, 4
        %v4090 = vsel %vm3827, %v4085, %v4089
        %v4091 = vrot.slane %v2674, 4
        %v4092 = vsel %vm3827, %v4087, %v4091
        %v4093 = vrot.slane %v2675, 4
        %v4094 = vsel %vm3827, %v4089, %v4093
        %v4095 = vrot.slane %v2676, 4
        %v4096 = vsel %vm3827, %v4091, %v4095
        %v4097 = vrot.slane %v2677, 4
        %v4098 = vsel %vm3827, %v4093, %v4097
        %v4099 = vrot.slane %v2678, 4
        %v4100 = vsel %vm3827, %v4095, %v4099
        %v4101 = vrot.slane %v2679, 4
        %v4102 = vsel %vm3827, %v4097, %v4101
        %v4103 = vrot.slane %v2680, 4
        %v4104 = vsel %vm3827, %v4099, %v4103
        %v4105 = vrot.slane %v2681, 4
        %v4106 = vsel %vm3827, %v4101, %v4105
        %v4107 = vrot.slane %v2682, 4
        %v4108 = vsel %vm3827, %v4103, %v4107
        %v4109 = vrot.slane %v2683, 4
        %v4110 = vsel %vm3827, %v4105, %v4109
        %v4111 = vrot.slane %v2684, 4
        %v4112 = vsel %vm3827, %v4107, %v4111
        %v4113 = vrot.slane %v2685, 4
        %v4114 = vsel %vm3827, %v4109, %v4113
        %v4115 = vrot.slane %v2686, 4
        %v4116 = vsel %vm3827, %v4111, %v4115
        %v4117 = vrot.slane %v2687, 4
        %v4118 = vsel %vm3827, %v4113, %v4117
        %v4119 = vrot.slane %v2688, 4
        %v4120 = vsel %vm3827, %v4115, %v4119
        %v4121 = vrot.slane %v2689, 4
        %v4122 = vsel %vm3827, %v4117, %v4121
        %v4123 = vrot.slane %v2690, 4
        %v4124 = vsel %vm3827, %v4119, %v4123
        %v4125 = vrot.slane %v2691, 4
        %v4126 = vsel %vm3827, %v4121, %v4125
        %v4127 = vrot.slane %v2692, 4
        %v4128 = vsel %vm3827, %v4123, %v4127
        %v4129 = vrot.slane %v2693, 4
        %v4130 = vsel %vm3827, %v4125, %v4129
        %v4131 = vrot.slane %v2694, 4
        %v4132 = vsel %vm3827, %v4127, %v4131
        %v4133 = vrot.slane %v2695, 4
        %v4134 = vsel %vm3827, %v4129, %v4133
        %v4135 = vrot.slane %v2696, 4
        %v4136 = vsel %vm3827, %v4131, %v4135
        %4137 = vrot.lane.b32.xlu0 %v4073, 126
        %v4138 = vpop.permute.xlu0 %4137
        %4139 = vrot.lane.b32.xlu0 %v4076, 126
        %v4140 = vpop.permute.xlu0 %4139
        %4141 = vrot.lane.b32.xlu0 %v4078, 126
        %v4142 = vpop.permute.xlu0 %4141
        %4143 = vrot.lane.b32.xlu0 %v4080, 126
        %v4144 = vpop.permute.xlu0 %4143
        %4145 = vrot.lane.b32.xlu0 %v4082, 126
        %v4146 = vpop.permute.xlu0 %4145
        %4147 = vrot.lane.b32.xlu0 %v4084, 126
        %v4148 = vpop.permute.xlu0 %4147
        %4149 = vrot.lane.b32.xlu0 %v4086, 126
        %v4150 = vpop.permute.xlu0 %4149
        %4151 = vrot.lane.b32.xlu0 %v4088, 126
        %v4152 = vpop.permute.xlu0 %4151
        %4153 = vrot.lane.b32.xlu0 %v4090, 126
        %v4154 = vpop.permute.xlu0 %4153
        %4155 = vrot.lane.b32.xlu0 %v4092, 126
        %v4156 = vpop.permute.xlu0 %4155
        %4157 = vrot.lane.b32.xlu0 %v4094, 126
        %v4158 = vpop.permute.xlu0 %4157
        %4159 = vrot.lane.b32.xlu0 %v4096, 126
        %v4160 = vpop.permute.xlu0 %4159
        %4161 = vrot.lane.b32.xlu0 %v4098, 126
        %v4162 = vpop.permute.xlu0 %4161
        %4163 = vrot.lane.b32.xlu0 %v4100, 126
        %v4164 = vpop.permute.xlu0 %4163
        %4165 = vrot.lane.b32.xlu0 %v4102, 126
        %v4166 = vpop.permute.xlu0 %4165
        %4167 = vrot.lane.b32.xlu0 %v4104, 126
        %v4168 = vpop.permute.xlu0 %4167
        %4169 = vrot.lane.b32.xlu0 %v4106, 126
        %v4170 = vpop.permute.xlu0 %4169
        %4171 = vrot.lane.b32.xlu0 %v4108, 126
        %v4172 = vpop.permute.xlu0 %4171
        %4173 = vrot.lane.b32.xlu0 %v4110, 126
        %v4174 = vpop.permute.xlu0 %4173
        %4175 = vrot.lane.b32.xlu0 %v4112, 126
        %v4176 = vpop.permute.xlu0 %4175
        %4177 = vrot.lane.b32.xlu0 %v4114, 126
        %v4178 = vpop.permute.xlu0 %4177
        %4179 = vrot.lane.b32.xlu0 %v4116, 126
        %v4180 = vpop.permute.xlu0 %4179
        %4181 = vrot.lane.b32.xlu0 %v4118, 126
        %v4182 = vpop.permute.xlu0 %4181
        %4183 = vrot.lane.b32.xlu0 %v4120, 126
        %v4184 = vpop.permute.xlu0 %4183
        %4185 = vrot.lane.b32.xlu0 %v4122, 126
        %v4186 = vpop.permute.xlu0 %4185
        %4187 = vrot.lane.b32.xlu0 %v4124, 126
        %v4188 = vpop.permute.xlu0 %4187
        %4189 = vrot.lane.b32.xlu0 %v4126, 126
        %v4190 = vpop.permute.xlu0 %4189
        %4191 = vrot.lane.b32.xlu0 %v4128, 126
        %v4192 = vpop.permute.xlu0 %4191
        %4193 = vrot.lane.b32.xlu0 %v4130, 126
        %v4194 = vpop.permute.xlu0 %4193
        %4195 = vrot.lane.b32.xlu0 %v4132, 126
        %v4196 = vpop.permute.xlu0 %4195
        %4197 = vrot.lane.b32.xlu0 %v4134, 126
        %v4198 = vpop.permute.xlu0 %4197
        %4199 = vrot.lane.b32.xlu0 %v4136, 126
        %v4200 = vpop.permute.xlu0 %4199
        %v4201 = vsel %vm470, %v4138, %v4140
        %v4202 = vsel %vm470, %v4142, %v4144
        %v4203 = vsel %vm470, %v4146, %v4148
        %v4204 = vsel %vm470, %v4150, %v4152
        %v4205 = vsel %vm470, %v4154, %v4156
        %v4206 = vsel %vm470, %v4158, %v4160
        %v4207 = vsel %vm470, %v4162, %v4164
        %v4208 = vsel %vm470, %v4166, %v4168
        %v4209 = vsel %vm470, %v4170, %v4172
        %v4210 = vsel %vm470, %v4174, %v4176
        %v4211 = vsel %vm470, %v4178, %v4180
        %v4212 = vsel %vm470, %v4182, %v4184
        %v4213 = vsel %vm470, %v4186, %v4188
        %v4214 = vsel %vm470, %v4190, %v4192
        %v4215 = vsel %vm470, %v4194, %v4196
        %v4216 = vsel %vm470, %v4198, %v4200
        %v4233 = vadd.f32 %v4055, %v4201
        %v4234 = vadd.f32 %v4056, %v4202
        %v4235 = vadd.f32 %v4057, %v4203
        %v4236 = vadd.f32 %v4058, %v4204
        %v4237 = vadd.f32 %v4059, %v4205
        %v4238 = vadd.f32 %v4060, %v4206
        %v4239 = vadd.f32 %v4061, %v4207
        %v4240 = vadd.f32 %v4062, %v4208
        %v4241 = vadd.f32 %v4063, %v4209
        %v4242 = vadd.f32 %v4064, %v4210
        %v4243 = vadd.f32 %v4065, %v4211
        %v4244 = vadd.f32 %v4066, %v4212
        %v4245 = vadd.f32 %v4067, %v4213
        %v4246 = vadd.f32 %v4068, %v4214
        %v4247 = vadd.f32 %v4069, %v4215
        %v4248 = vadd.f32 %v4070, %v4216
        %v4249 = vrot.slane %v3579, 4
        %v4250 = vrot.slane %v3581, 4
        %v4251 = vsel %vm3827, %v4249, %v4250
        %v4252 = vrot.slane %v3580, 4
        %v4253 = vrot.slane %v3582, 4
        %v4254 = vsel %vm3827, %v4252, %v4253
        %v4255 = vrot.slane %v3583, 4
        %v4256 = vsel %vm3827, %v4250, %v4255
        %v4257 = vrot.slane %v3584, 4
        %v4258 = vsel %vm3827, %v4253, %v4257
        %v4259 = vrot.slane %v3585, 4
        %v4260 = vsel %vm3827, %v4255, %v4259
        %v4261 = vrot.slane %v3586, 4
        %v4262 = vsel %vm3827, %v4257, %v4261
        %v4263 = vrot.slane %v3587, 4
        %v4264 = vsel %vm3827, %v4259, %v4263
        %v4265 = vrot.slane %v3588, 4
        %v4266 = vsel %vm3827, %v4261, %v4265
        %v4267 = vrot.slane %v3589, 4
        %v4268 = vsel %vm3827, %v4263, %v4267
        %v4269 = vrot.slane %v3590, 4
        %v4270 = vsel %vm3827, %v4265, %v4269
        %v4271 = vrot.slane %v3591, 4
        %v4272 = vsel %vm3827, %v4267, %v4271
        %v4273 = vrot.slane %v3592, 4
        %v4274 = vsel %vm3827, %v4269, %v4273
        %v4275 = vrot.slane %v3593, 4
        %v4276 = vsel %vm3827, %v4271, %v4275
        %v4277 = vrot.slane %v3594, 4
        %v4278 = vsel %vm3827, %v4273, %v4277
        %v4279 = vrot.slane %v3595, 4
        %v4280 = vsel %vm3827, %v4275, %v4279
        %v4281 = vrot.slane %v3596, 4
        %v4282 = vsel %vm3827, %v4277, %v4281
        %v4283 = vrot.slane %v3597, 4
        %v4284 = vsel %vm3827, %v4279, %v4283
        %v4285 = vrot.slane %v3598, 4
        %v4286 = vsel %vm3827, %v4281, %v4285
        %v4287 = vrot.slane %v3599, 4
        %v4288 = vsel %vm3827, %v4283, %v4287
        %v4289 = vrot.slane %v3600, 4
        %v4290 = vsel %vm3827, %v4285, %v4289
        %v4291 = vrot.slane %v3601, 4
        %v4292 = vsel %vm3827, %v4287, %v4291
        %v4293 = vrot.slane %v3602, 4
        %v4294 = vsel %vm3827, %v4289, %v4293
        %v4295 = vrot.slane %v3603, 4
        %v4296 = vsel %vm3827, %v4291, %v4295
        %v4297 = vrot.slane %v3604, 4
        %v4298 = vsel %vm3827, %v4293, %v4297
        %v4299 = vrot.slane %v3605, 4
        %v4300 = vsel %vm3827, %v4295, %v4299
        %v4301 = vrot.slane %v3606, 4
        %v4302 = vsel %vm3827, %v4297, %v4301
        %v4303 = vrot.slane %v3607, 4
        %v4304 = vsel %vm3827, %v4299, %v4303
        %v4305 = vrot.slane %v3608, 4
        %v4306 = vsel %vm3827, %v4301, %v4305
        %v4307 = vrot.slane %v3609, 4
        %v4308 = vsel %vm3827, %v4303, %v4307
        %v4309 = vrot.slane %v3610, 4
        %v4310 = vsel %vm3827, %v4305, %v4309
        %v4311 = vrot.slane %v3611, 4
        %v4312 = vsel %vm3827, %v4307, %v4311
        %v4313 = vrot.slane %v3612, 4
        %v4314 = vsel %vm3827, %v4309, %v4313
        %4315 = vrot.lane.b32.xlu0 %v4251, 125
        %v4316 = vpop.permute.xlu0 %4315
        %4317 = vrot.lane.b32.xlu0 %v4254, 125
        %v4318 = vpop.permute.xlu0 %4317
        %4319 = vrot.lane.b32.xlu0 %v4256, 125
        %v4320 = vpop.permute.xlu0 %4319
        %4321 = vrot.lane.b32.xlu0 %v4258, 125
        %v4322 = vpop.permute.xlu0 %4321
        %4323 = vrot.lane.b32.xlu0 %v4260, 125
        %v4324 = vpop.permute.xlu0 %4323
        %4325 = vrot.lane.b32.xlu0 %v4262, 125
        %v4326 = vpop.permute.xlu0 %4325
        %4327 = vrot.lane.b32.xlu0 %v4264, 125
        %v4328 = vpop.permute.xlu0 %4327
        %4329 = vrot.lane.b32.xlu0 %v4266, 125
        %v4330 = vpop.permute.xlu0 %4329
        %4331 = vrot.lane.b32.xlu0 %v4268, 125
        %v4332 = vpop.permute.xlu0 %4331
        %4333 = vrot.lane.b32.xlu0 %v4270, 125
        %v4334 = vpop.permute.xlu0 %4333
        %4335 = vrot.lane.b32.xlu0 %v4272, 125
        %v4336 = vpop.permute.xlu0 %4335
        %4337 = vrot.lane.b32.xlu0 %v4274, 125
        %v4338 = vpop.permute.xlu0 %4337
        %4339 = vrot.lane.b32.xlu0 %v4276, 125
        %v4340 = vpop.permute.xlu0 %4339
        %4341 = vrot.lane.b32.xlu0 %v4278, 125
        %v4342 = vpop.permute.xlu0 %4341
        %4343 = vrot.lane.b32.xlu0 %v4280, 125
        %v4344 = vpop.permute.xlu0 %4343
        %4345 = vrot.lane.b32.xlu0 %v4282, 125
        %v4346 = vpop.permute.xlu0 %4345
        %4347 = vrot.lane.b32.xlu0 %v4284, 125
        %v4348 = vpop.permute.xlu0 %4347
        %4349 = vrot.lane.b32.xlu0 %v4286, 125
        %v4350 = vpop.permute.xlu0 %4349
        %4351 = vrot.lane.b32.xlu0 %v4288, 125
        %v4352 = vpop.permute.xlu0 %4351
        %4353 = vrot.lane.b32.xlu0 %v4290, 125
        %v4354 = vpop.permute.xlu0 %4353
        %4355 = vrot.lane.b32.xlu0 %v4292, 125
        %v4356 = vpop.permute.xlu0 %4355
        %4357 = vrot.lane.b32.xlu0 %v4294, 125
        %v4358 = vpop.permute.xlu0 %4357
        %4359 = vrot.lane.b32.xlu0 %v4296, 125
        %v4360 = vpop.permute.xlu0 %4359
        %4361 = vrot.lane.b32.xlu0 %v4298, 125
        %v4362 = vpop.permute.xlu0 %4361
        %4363 = vrot.lane.b32.xlu0 %v4300, 125
        %v4364 = vpop.permute.xlu0 %4363
        %4365 = vrot.lane.b32.xlu0 %v4302, 125
        %v4366 = vpop.permute.xlu0 %4365
        %4367 = vrot.lane.b32.xlu0 %v4304, 125
        %v4368 = vpop.permute.xlu0 %4367
        %4369 = vrot.lane.b32.xlu0 %v4306, 125
        %v4370 = vpop.permute.xlu0 %4369
        %4371 = vrot.lane.b32.xlu0 %v4308, 125
        %v4372 = vpop.permute.xlu0 %4371
        %4373 = vrot.lane.b32.xlu0 %v4310, 125
        %v4374 = vpop.permute.xlu0 %4373
        %4375 = vrot.lane.b32.xlu0 %v4312, 125
        %v4376 = vpop.permute.xlu0 %4375
        %4377 = vrot.lane.b32.xlu0 %v4314, 125
        %v4378 = vpop.permute.xlu0 %4377
        %v4379 = vsel %vm647, %v4316, %v4318
        %v4380 = vsel %vm647, %v4320, %v4322
        %v4381 = vsel %vm647, %v4324, %v4326
        %v4382 = vsel %vm647, %v4328, %v4330
        %v4383 = vsel %vm647, %v4332, %v4334
        %v4384 = vsel %vm647, %v4336, %v4338
        %v4385 = vsel %vm647, %v4340, %v4342
        %v4386 = vsel %vm647, %v4344, %v4346
        %v4387 = vsel %vm647, %v4348, %v4350
        %v4388 = vsel %vm647, %v4352, %v4354
        %v4389 = vsel %vm647, %v4356, %v4358
        %v4390 = vsel %vm647, %v4360, %v4362
        %v4391 = vsel %vm647, %v4364, %v4366
        %v4392 = vsel %vm647, %v4368, %v4370
        %v4393 = vsel %vm647, %v4372, %v4374
        %v4394 = vsel %vm647, %v4376, %v4378
        %v4411 = vadd.f32 %v4233, %v4379
        %v4412 = vadd.f32 %v4234, %v4380
        %v4413 = vadd.f32 %v4235, %v4381
        %v4414 = vadd.f32 %v4236, %v4382
        %v4415 = vadd.f32 %v4237, %v4383
        %v4416 = vadd.f32 %v4238, %v4384
        %v4417 = vadd.f32 %v4239, %v4385
        %v4418 = vadd.f32 %v4240, %v4386
        %v4419 = vadd.f32 %v4241, %v4387
        %v4420 = vadd.f32 %v4242, %v4388
        %v4421 = vadd.f32 %v4243, %v4389
        %v4422 = vadd.f32 %v4244, %v4390
        %v4423 = vadd.f32 %v4245, %v4391
        %v4424 = vadd.f32 %v4246, %v4392
        %v4425 = vadd.f32 %v4247, %v4393
        %v4426 = vadd.f32 %v4248, %v4394
        %v4427 = vmul.f32 %v115, 0.087593846
        %v4428 = vmul.f32 %v116, 0.087593846
        %v4429 = vmul.f32 %v117, 0.087593846
        %v4430 = vmul.f32 %v118, 0.087593846
        %v4431 = vmul.f32 %v119, 0.087593846
        %v4432 = vmul.f32 %v120, 0.087593846
        %v4433 = vmul.f32 %v121, 0.087593846
        %v4434 = vmul.f32 %v122, 0.087593846
        %v4435 = vmul.f32 %v123, 0.087593846
        %v4436 = vmul.f32 %v124, 0.087593846
        %v4437 = vmul.f32 %v125, 0.087593846
        %v4438 = vmul.f32 %v126, 0.087593846
        %v4439 = vmul.f32 %v127, 0.087593846
        %v4440 = vmul.f32 %v128, 0.087593846
        %v4441 = vmul.f32 %v129, 0.087593846
        %v4442 = vmul.f32 %v130, 0.087593846
        %v4443 = vmul.f32 %v131, 0.087593846
        %v4444 = vmul.f32 %v132, 0.087593846
        %v4445 = vmul.f32 %v133, 0.087593846
        %v4446 = vmul.f32 %v134, 0.087593846
        %v4447 = vmul.f32 %v135, 0.087593846
        %v4448 = vmul.f32 %v136, 0.087593846
        %v4449 = vmul.f32 %v137, 0.087593846
        %v4450 = vmul.f32 %v138, 0.087593846
        %v4451 = vmul.f32 %v139, 0.087593846
        %v4452 = vmul.f32 %v140, 0.087593846
        %v4453 = vmul.f32 %v141, 0.087593846
        %v4454 = vmul.f32 %v142, 0.087593846
        %v4455 = vmul.f32 %v143, 0.087593846
        %v4456 = vmul.f32 %v144, 0.087593846
        %v4457 = vmul.f32 %v145, 0.087593846
        %v4458 = vmul.f32 %v146, 0.087593846
        %v4459 = vmul.f32 %v147, 0.087593846
        %v4460 = vmul.f32 %v148, 0.087593846
        %v4495 = vrot.slane %v4427, 4
        %v4496 = vrot.slane %v4429, 4
        %v4497 = vsel %vm3827, %v4495, %v4496
        %v4498 = vrot.slane %v4428, 4
        %v4499 = vrot.slane %v4430, 4
        %v4500 = vsel %vm3827, %v4498, %v4499
        %v4501 = vrot.slane %v4431, 4
        %v4502 = vsel %vm3827, %v4496, %v4501
        %v4503 = vrot.slane %v4432, 4
        %v4504 = vsel %vm3827, %v4499, %v4503
        %v4505 = vrot.slane %v4433, 4
        %v4506 = vsel %vm3827, %v4501, %v4505
        %v4507 = vrot.slane %v4434, 4
        %v4508 = vsel %vm3827, %v4503, %v4507
        %v4509 = vrot.slane %v4435, 4
        %v4510 = vsel %vm3827, %v4505, %v4509
        %v4511 = vrot.slane %v4436, 4
        %v4512 = vsel %vm3827, %v4507, %v4511
        %v4513 = vrot.slane %v4437, 4
        %v4514 = vsel %vm3827, %v4509, %v4513
        %v4515 = vrot.slane %v4438, 4
        %v4516 = vsel %vm3827, %v4511, %v4515
        %v4517 = vrot.slane %v4439, 4
        %v4518 = vsel %vm3827, %v4513, %v4517
        %v4519 = vrot.slane %v4440, 4
        %v4520 = vsel %vm3827, %v4515, %v4519
        %v4521 = vrot.slane %v4441, 4
        %v4522 = vsel %vm3827, %v4517, %v4521
        %v4523 = vrot.slane %v4442, 4
        %v4524 = vsel %vm3827, %v4519, %v4523
        %v4525 = vrot.slane %v4443, 4
        %v4526 = vsel %vm3827, %v4521, %v4525
        %v4527 = vrot.slane %v4444, 4
        %v4528 = vsel %vm3827, %v4523, %v4527
        %v4529 = vrot.slane %v4445, 4
        %v4530 = vsel %vm3827, %v4525, %v4529
        %v4531 = vrot.slane %v4446, 4
        %v4532 = vsel %vm3827, %v4527, %v4531
        %v4533 = vrot.slane %v4447, 4
        %v4534 = vsel %vm3827, %v4529, %v4533
        %v4535 = vrot.slane %v4448, 4
        %v4536 = vsel %vm3827, %v4531, %v4535
        %v4537 = vrot.slane %v4449, 4
        %v4538 = vsel %vm3827, %v4533, %v4537
        %v4539 = vrot.slane %v4450, 4
        %v4540 = vsel %vm3827, %v4535, %v4539
        %v4541 = vrot.slane %v4451, 4
        %v4542 = vsel %vm3827, %v4537, %v4541
        %v4543 = vrot.slane %v4452, 4
        %v4544 = vsel %vm3827, %v4539, %v4543
        %v4545 = vrot.slane %v4453, 4
        %v4546 = vsel %vm3827, %v4541, %v4545
        %v4547 = vrot.slane %v4454, 4
        %v4548 = vsel %vm3827, %v4543, %v4547
        %v4549 = vrot.slane %v4455, 4
        %v4550 = vsel %vm3827, %v4545, %v4549
        %v4551 = vrot.slane %v4456, 4
        %v4552 = vsel %vm3827, %v4547, %v4551
        %v4553 = vrot.slane %v4457, 4
        %v4554 = vsel %vm3827, %v4549, %v4553
        %v4555 = vrot.slane %v4458, 4
        %v4556 = vsel %vm3827, %v4551, %v4555
        %v4557 = vrot.slane %v4459, 4
        %v4558 = vsel %vm3827, %v4553, %v4557
        %v4559 = vrot.slane %v4460, 4
        %v4560 = vsel %vm3827, %v4555, %v4559
        %4561 = vrot.lane.b32.xlu0 %v4497, 124
        %v4562 = vpop.permute.xlu0 %4561
        %4563 = vrot.lane.b32.xlu0 %v4500, 124
        %v4564 = vpop.permute.xlu0 %4563
        %4565 = vrot.lane.b32.xlu0 %v4502, 124
        %v4566 = vpop.permute.xlu0 %4565
        %4567 = vrot.lane.b32.xlu0 %v4504, 124
        %v4568 = vpop.permute.xlu0 %4567
        %4569 = vrot.lane.b32.xlu0 %v4506, 124
        %v4570 = vpop.permute.xlu0 %4569
        %4571 = vrot.lane.b32.xlu0 %v4508, 124
        %v4572 = vpop.permute.xlu0 %4571
        %4573 = vrot.lane.b32.xlu0 %v4510, 124
        %v4574 = vpop.permute.xlu0 %4573
        %4575 = vrot.lane.b32.xlu0 %v4512, 124
        %v4576 = vpop.permute.xlu0 %4575
        %4577 = vrot.lane.b32.xlu0 %v4514, 124
        %v4578 = vpop.permute.xlu0 %4577
        %4579 = vrot.lane.b32.xlu0 %v4516, 124
        %v4580 = vpop.permute.xlu0 %4579
        %4581 = vrot.lane.b32.xlu0 %v4518, 124
        %v4582 = vpop.permute.xlu0 %4581
        %4583 = vrot.lane.b32.xlu0 %v4520, 124
        %v4584 = vpop.permute.xlu0 %4583
        %4585 = vrot.lane.b32.xlu0 %v4522, 124
        %v4586 = vpop.permute.xlu0 %4585
        %4587 = vrot.lane.b32.xlu0 %v4524, 124
        %v4588 = vpop.permute.xlu0 %4587
        %4589 = vrot.lane.b32.xlu0 %v4526, 124
        %v4590 = vpop.permute.xlu0 %4589
        %4591 = vrot.lane.b32.xlu0 %v4528, 124
        %v4592 = vpop.permute.xlu0 %4591
        %4593 = vrot.lane.b32.xlu0 %v4530, 124
        %v4594 = vpop.permute.xlu0 %4593
        %4595 = vrot.lane.b32.xlu0 %v4532, 124
        %v4596 = vpop.permute.xlu0 %4595
        %4597 = vrot.lane.b32.xlu0 %v4534, 124
        %v4598 = vpop.permute.xlu0 %4597
        %4599 = vrot.lane.b32.xlu0 %v4536, 124
        %v4600 = vpop.permute.xlu0 %4599
        %4601 = vrot.lane.b32.xlu0 %v4538, 124
        %v4602 = vpop.permute.xlu0 %4601
        %4603 = vrot.lane.b32.xlu0 %v4540, 124
        %v4604 = vpop.permute.xlu0 %4603
        %4605 = vrot.lane.b32.xlu0 %v4542, 124
        %v4606 = vpop.permute.xlu0 %4605
        %4607 = vrot.lane.b32.xlu0 %v4544, 124
        %v4608 = vpop.permute.xlu0 %4607
        %4609 = vrot.lane.b32.xlu0 %v4546, 124
        %v4610 = vpop.permute.xlu0 %4609
        %4611 = vrot.lane.b32.xlu0 %v4548, 124
        %v4612 = vpop.permute.xlu0 %4611
        %4613 = vrot.lane.b32.xlu0 %v4550, 124
        %v4614 = vpop.permute.xlu0 %4613
        %4615 = vrot.lane.b32.xlu0 %v4552, 124
        %v4616 = vpop.permute.xlu0 %4615
        %4617 = vrot.lane.b32.xlu0 %v4554, 124
        %v4618 = vpop.permute.xlu0 %4617
        %4619 = vrot.lane.b32.xlu0 %v4556, 124
        %v4620 = vpop.permute.xlu0 %4619
        %4621 = vrot.lane.b32.xlu0 %v4558, 124
        %v4622 = vpop.permute.xlu0 %4621
        %4623 = vrot.lane.b32.xlu0 %v4560, 124
        %v4624 = vpop.permute.xlu0 %4623
        %v4625 = vsel %vm824, %v4562, %v4564
        %v4626 = vsel %vm824, %v4566, %v4568
        %v4627 = vsel %vm824, %v4570, %v4572
        %v4628 = vsel %vm824, %v4574, %v4576
        %v4629 = vsel %vm824, %v4578, %v4580
        %v4630 = vsel %vm824, %v4582, %v4584
        %v4631 = vsel %vm824, %v4586, %v4588
        %v4632 = vsel %vm824, %v4590, %v4592
        %v4633 = vsel %vm824, %v4594, %v4596
        %v4634 = vsel %vm824, %v4598, %v4600
        %v4635 = vsel %vm824, %v4602, %v4604
        %v4636 = vsel %vm824, %v4606, %v4608
        %v4637 = vsel %vm824, %v4610, %v4612
        %v4638 = vsel %vm824, %v4614, %v4616
        %v4639 = vsel %vm824, %v4618, %v4620
        %v4640 = vsel %vm824, %v4622, %v4624
        %v4657 = vadd.f32 %v4411, %v4625
        %v4658 = vadd.f32 %v4412, %v4626
        %v4659 = vadd.f32 %v4413, %v4627
        %v4660 = vadd.f32 %v4414, %v4628
        %v4661 = vadd.f32 %v4415, %v4629
        %v4662 = vadd.f32 %v4416, %v4630
        %v4663 = vadd.f32 %v4417, %v4631
        %v4664 = vadd.f32 %v4418, %v4632
        %v4665 = vadd.f32 %v4419, %v4633
        %v4666 = vadd.f32 %v4420, %v4634
        %v4667 = vadd.f32 %v4421, %v4635
        %v4668 = vadd.f32 %v4422, %v4636
        %v4669 = vadd.f32 %v4423, %v4637
        %v4670 = vadd.f32 %v4424, %v4638
        %v4671 = vadd.f32 %v4425, %v4639
        %v4672 = vadd.f32 %v4426, %v4640
        %4673 = vst [vmem:[%s109] sm:$0xff] %v4657
        %4674 = vst [vmem:[%s109 + $0x8] sm:$0xff] %v4658
        %4675 = vst [vmem:[%s109 + $0x10] sm:$0xff] %v4659
        %4676 = vst [vmem:[%s109 + $0x18] sm:$0xff] %v4660
        %4677 = vst [vmem:[%s109 + $0x20] sm:$0xff] %v4661
        %4678 = vst [vmem:[%s109 + $0x28] sm:$0xff] %v4662
        %4679 = vst [vmem:[%s109 + $0x30] sm:$0xff] %v4663
        %4680 = vst [vmem:[%s109 + $0x38] sm:$0xff] %v4664
        %4681 = vst [vmem:[%s109 + $0x40] sm:$0xff] %v4665
        %4682 = vst [vmem:[%s109 + $0x48] sm:$0xff] %v4666
        %4683 = vst [vmem:[%s109 + $0x50] sm:$0xff] %v4667
        %4684 = vst [vmem:[%s109 + $0x58] sm:$0xff] %v4668
        %4685 = vst [vmem:[%s109 + $0x60] sm:$0xff] %v4669
        %4686 = vst [vmem:[%s109 + $0x68] sm:$0xff] %v4670
        %4687 = vst [vmem:[%s109 + $0x70] sm:$0xff] %v4671
        %4688 = vst [vmem:[%s109 + $0x78] sm:$0xff] %v4672
        %s4689 = sand.u32 %s49, 1
        %s4690 = scalar_lea.sflag [#allocation3], %s4689
        %s4691 = sand.u32 %s49, 1
        %s4692 = smul.addr %s4691, 128
        %s4693 = scalar_lea.vmem [#allocation2], %s4692
        // Predicated region
        $region25: #{gaussian_layer.1} parent=23 // pred_check
          %p4694 = pneg %p59
        $region26: #{gaussian_layer.1} parent=23 // pred_check_branch
          %4696 = sbr.rel (%p4694) target = $region28
        $region27: #{gaussian_layer.1} parent=23 // pred_region
          %s4698 = ssub.s32 2048, 2048
          %4699 = vsyncadd %s4690, %s4698
          %s4700 = smul.addr %s15, 16
          %s4701 = smul.addr %s4700, 128
          %s4702 = scalar_lea.hbm %s1, %s4701
          %s4703 = sshll.u32 %s4693, 4
          %s4704 = int_to_ptr.vmem [resolvable:$true] %s4703
          %4709 = dma.vmem_to_hbm [thread:$0]  %s4704, 2048, %s4702, %s4690, 128, 128, 8
        $region28: #{gaussian_layer.1} parent=23 // pred_fallthru
          _
      $region24: #{gaussian_layer.1} parent=5 // pred_fallthru
        _
      %p4710 = scmp.le.s32.totalorder 2, %s10
      // Predicated region
      $region29: #{gaussian_layer.1} parent=5 // pred_check
        %p4711 = pneg %p4710
      $region30: #{gaussian_layer.1} parent=5 // pred_check_branch
        %4713 = sbr.rel (%p4711) target = $region32
      $region31: #{gaussian_layer.1} parent=5 // pred_region
        %s4714 = ssub.s32 %s10, 2
        // Predicated region
        $region33: #{gaussian_layer.1} parent=31 // pred_check
          %p4715 = pneg %p65
        $region34: #{gaussian_layer.1} parent=31 // pred_check_branch
          %4717 = sbr.rel (%p4715) target = $region36
        $region35: #{gaussian_layer.1} parent=31 // pred_region
          %s4718 = sand.u32 %s50, 1
          %s4719 = scalar_lea.sflag [#allocation3], %s4718
          %s4720 = sand.u32 %s50, 1
          %s4721 = smul.addr %s4720, 128
          %s4722 = scalar_lea.vmem [#allocation2], %s4721
          %4723 = dma.done %s4719, 2048
        $region36: #{gaussian_layer.1} parent=31 // pred_fallthru
          _
      $region32: #{gaussian_layer.1} parent=5 // pred_fallthru
        _
    $region6: #{gaussian_layer.1} parent=1 // loop_footer
      %s14 = sadd.s32 1, %s10
    $region7: #{gaussian_layer.1} parent=1 // loop_footer_branch
      %9 = sbr.rel target = $region3
    $region8: #{gaussian_layer.1} parent=1 // loop_exit
      _
    %4724 = vsyncpa [#allocation3], 1
    %s4725 = scalar_lea.sflag [#allocation3], 1
    %4726 = vsyncpa %s4725, 1

</llo_original>
